<compile_context>
chip_gen: v6e
topology: v6e:2x2x1
jax: 0.10.0
libtpu: 0.0.40
codegen_flags: <defaults>
</compile_context>

<pallas_src>
import math

import jax
import jax.numpy as jnp
import numpy as np
from jax.experimental import pallas as pl
from jax.experimental.pallas import tpu as pltpu

LANE = 128                       # feature dims padded to this -> lane-dense stores
FUSED_MAX_NODES = 2048           # bf16 A_hat <= 8 MiB -> keep resident in VMEM
RESIDENT_RHS_MAX_NODES = 32768   # full-height (n_pad, 128) bf16 rhs <= 8 MiB
VMEM_LIMIT = 48 * 1024 * 1024    # <= v7x physical 64 MiB; plenty on v5e/v6e


def _round_up(x, m):
    return (x + m - 1) // m * m


def _resolve(n, mode, tm, tk):
    if mode == "auto":
        mode = "fused" if _round_up(n, LANE) <= FUSED_MAX_NODES else "tiled"
    if mode == "fused":
        return mode, _round_up(n, LANE)
    if mode != "tiled":
        raise ValueError(f"unknown mode {mode!r}")
    return mode, _round_up(n, math.lcm(tm, tk))


def padded_size(n, mode="auto", tm=512, tk=512):
    """Padded node count the kernels expect A_hat to be built at."""
    return _resolve(n, mode, tm, tk)[1]


def build_normalized_adjacency(edge_index, num_nodes, n_pad=None,
                               dtype=jnp.bfloat16):
    """Dense A_hat = D^{-1/2}(A+I)D^{-1/2}, built directly at padded size/dtype.

    Padded rows/cols are exactly zero (no self loops there), so padded nodes
    never contribute to real outputs.  Note: .at[...].set deduplicates repeated
    edges (fine for simple graphs; PyG sums duplicate messages on multigraphs).
    """
    if n_pad is None:
        n_pad = num_nodes
    src = edge_index[0]
    dst = edge_index[1]
    a = jnp.zeros((n_pad, n_pad), jnp.float32)
    a = a.at[dst, src].set(1.0)                       # message flows src -> dst
    diag = jnp.arange(num_nodes)
    a = a.at[diag, diag].add(1.0)                     # self loops on real nodes
    deg = a.sum(axis=1)
    d_inv_sqrt = jnp.where(deg > 0, jax.lax.rsqrt(deg), 0.0)
    # normalization + cast fuse into a single elementwise pass -> one bf16 write.
    return (d_inv_sqrt[:, None] * a * d_inv_sqrt[None, :]).astype(dtype)


# ---------------------------------------------------------------------------
# Fused path: A_hat resident in VMEM, whole forward in one kernel.
# ---------------------------------------------------------------------------
def _gnn_fused_kernel(a_ref, xw1_ref, b1_ref, w2_ref, b2_ref, w3_ref, b3_ref,
                      feats_ref, out_ref):
    a = a_ref[...]                                             # (n_pad, n_pad) bf16
    # conv1 + ReLU (dropout in eval mode = identity).
    h = jnp.dot(a, xw1_ref[...], preferred_element_type=jnp.float32)
    h = jnp.maximum(h + b1_ref[...], 0.0).astype(jnp.bfloat16)
    # conv2: feats = (A_hat @ H) @ W2 + b2   (all MXU matmuls bf16, f32 acc).
    ah = jnp.dot(a, h, preferred_element_type=jnp.float32).astype(jnp.bfloat16)
    f = jnp.dot(ah, w2_ref[...], preferred_element_type=jnp.float32) + b2_ref[...]
    feats_ref[...] = f.astype(feats_ref.dtype)
    # linear head on relu(feats) (dropout = identity).
    g = jnp.maximum(f, 0.0).astype(jnp.bfloat16)
    out_ref[...] = (jnp.dot(g, w3_ref[...], preferred_element_type=jnp.float32)
                    + b3_ref[...]).astype(out_ref.dtype)


# ---------------------------------------------------------------------------
# Tiled two-pass path (large graphs): grid = (row tiles, k tiles) over A_hat.
# ---------------------------------------------------------------------------
def _make_agg1_kernel(resident_rhs, tk):
    # Pass 1: H = relu(A_hat @ XW1 + b1)
    def kernel(a_ref, r_ref, b1_ref, h_ref, acc_ref):
        k = pl.program_id(1)

        @pl.when(k == 0)
        def _init():
            acc_ref[...] = jnp.zeros_like(acc_ref)

        if resident_rhs:
            start = pl.multiple_of(k * tk, tk)
            rhs = r_ref[pl.ds(start, tk), :]       # full XW1 resident; slice k-chunk
        else:
            rhs = r_ref[...]                       # k-streamed chunk
        acc_ref[...] += jnp.dot(a_ref[...], rhs, preferred_element_type=jnp.float32)

        @pl.when(k == pl.num_programs(1) - 1)
        def _finalize():
            # Padded rows become relu(b1) != 0, but they are cancelled by the
            # zero padded columns of A_hat in pass 2 and sliced away at the end.
            h_ref[...] = jnp.maximum(acc_ref[...] + b1_ref[...],
                                     0.0).astype(h_ref.dtype)

    return kernel


def _make_agg2_kernel(resident_rhs, tk):
    # Pass 2: feats = (A_hat @ H) @ W2 + b2 ; logits = relu(feats) @ W3 + b3
    def kernel(a_ref, h_ref, w2_ref, b2_ref, w3_ref, b3_ref,
               feats_ref, out_ref, acc_ref):
        k = pl.program_id(1)

        @pl.when(k == 0)
        def _init():
            acc_ref[...] = jnp.zeros_like(acc_ref)

        if resident_rhs:
            start = pl.multiple_of(k * tk, tk)
            rhs = h_ref[pl.ds(start, tk), :]
        else:
            rhs = h_ref[...]
        acc_ref[...] += jnp.dot(a_ref[...], rhs, preferred_element_type=jnp.float32)

        @pl.when(k == pl.num_programs(1) - 1)
        def _finalize():
            ah = acc_ref[...].astype(jnp.bfloat16)     # bf16-only MXU matmuls
            f = (jnp.dot(ah, w2_ref[...], preferred_element_type=jnp.float32)
                 + b2_ref[...])
            feats_ref[...] = f.astype(feats_ref.dtype)
            g = jnp.maximum(f, 0.0).astype(jnp.bfloat16)
            out_ref[...] = (jnp.dot(g, w3_ref[...],
                                    preferred_element_type=jnp.float32)
                            + b3_ref[...]).astype(out_ref.dtype)

    return kernel


def gnn_forward(a_hat, x, w1, b1, w2, b2, w3, b3, *,
                mode="auto", tm=512, tk=512, resident_rhs=None):
    """Returns (logits (N, OUT) f32, x_feats (N, HID) f32).

    a_hat should ideally be pre-built padded + bf16 via
    build_normalized_adjacency(edge_index, n, padded_size(n, ...)); a plain
    unpadded matrix is also accepted (padded/cast here as a fallback).
    For v7x megacore balance, pick tm so n_pad // tm is even and >= 2.
    """
    n = x.shape[0]
    hid = w1.shape[1]
    out_c = w3.shape[1]

    mode, n_pad = _resolve(n, mode, tm, tk)
    h_pad = _round_up(hid, LANE)
    o_pad = _round_up(out_c, LANE)

    # A_hat: use caller's padded bf16 matrix directly (no O(N^2) re-pad/cast).
    if a_hat.shape == (n_pad, n_pad) and a_hat.dtype == jnp.bfloat16:
        a_p = a_hat
    else:
        a_p = jnp.zeros((n_pad, n_pad), jnp.bfloat16).at[:n, :n].set(
            a_hat[:n, :n].astype(jnp.bfloat16))

    # conv1's feature transform X @ W1 is tiny (n x f_in x hid) -> hoist to the
    # wrapper so no kernel ever runs an f32 MXU matmul.
    xw1 = x.astype(jnp.float32) @ w1.astype(jnp.float32)
    xw1_p = jnp.zeros((n_pad, h_pad), jnp.bfloat16).at[:n, :hid].set(
        xw1.astype(jnp.bfloat16))

    b1_p = jnp.zeros((1, h_pad), jnp.float32).at[:, :hid].set(b1.reshape(1, -1))
    w2_p = jnp.zeros((h_pad, h_pad), jnp.bfloat16).at[:hid, :hid].set(
        w2.astype(jnp.bfloat16))
    b2_p = jnp.zeros((1, h_pad), jnp.float32).at[:, :hid].set(b2.reshape(1, -1))
    w3_p = jnp.zeros((h_pad, o_pad), jnp.bfloat16).at[:hid, :out_c].set(
        w3.astype(jnp.bfloat16))
    b3_p = jnp.zeros((1, o_pad), jnp.float32).at[:, :out_c].set(b3.reshape(1, -1))

    # ----------------------------- fused path -------------------------------
    if mode == "fused":
        feats_p, out_p = pl.pallas_call(
            _gnn_fused_kernel,
            out_shape=(jax.ShapeDtypeStruct((n_pad, h_pad), jnp.bfloat16),
                       jax.ShapeDtypeStruct((n_pad, o_pad), jnp.float32)),
            compiler_params=pltpu.CompilerParams(vmem_limit_bytes=VMEM_LIMIT),
        )(a_p, xw1_p, b1_p, w2_p, b2_p, w3_p, b3_p)
        return out_p[:n, :out_c], feats_p[:n, :hid].astype(jnp.float32)

    # ----------------------------- tiled path -------------------------------
    if resident_rhs is None:
        resident_rhs = n_pad <= RESIDENT_RHS_MAX_NODES

    grid = (n_pad // tm, n_pad // tk)
    cparams = pltpu.CompilerParams(
        dimension_semantics=("parallel", "arbitrary"),  # row tiles -> megacore
        vmem_limit_bytes=VMEM_LIMIT,
    )

    if resident_rhs:
        # DMA'd once, stays resident across the whole grid (constant index map).
        rhs_spec = pl.BlockSpec((n_pad, h_pad), lambda i, k: (0, 0))
    else:
        rhs_spec = pl.BlockSpec((tk, h_pad), lambda i, k: (k, 0))

    # Pass 1: H = relu(A_hat @ XW1 + b1)
    cost1 = pl.CostEstimate(
        flops=2 * n_pad * n_pad * h_pad,
        transcendentals=0,
        bytes_accessed=n_pad * n_pad * 2 + 2 * n_pad * h_pad * 2,
    )
    h_bf16 = pl.pallas_call(
        _make_agg1_kernel(resident_rhs, tk),
        out_shape=jax.ShapeDtypeStruct((n_pad, h_pad), jnp.bfloat16),
        grid=grid,
        in_specs=[
            pl.BlockSpec((tm, tk), lambda i, k: (i, k)),      # A_hat tile
            rhs_spec,                                         # XW1
            pl.BlockSpec((1, h_pad), lambda i, k: (0, 0)),    # b1
        ],
        out_specs=pl.BlockSpec((tm, h_pad), lambda i, k: (i, 0)),
        scratch_shapes=[pltpu.VMEM((tm, h_pad), jnp.float32)],
        compiler_params=cparams,
        cost_estimate=cost1,
    )(a_p, xw1_p, b1_p)

    # Pass 2: feats = (A_hat @ H) @ W2 + b2 ; logits = relu(feats) @ W3 + b3
    cost2 = pl.CostEstimate(
        flops=(2 * n_pad * n_pad * h_pad + 2 * n_pad * h_pad * h_pad
               + 2 * n_pad * h_pad * o_pad),
        transcendentals=0,
        bytes_accessed=(n_pad * n_pad * 2 + 2 * n_pad * h_pad * 2
                        + n_pad * o_pad * 4 + h_pad * h_pad * 2
                        + h_pad * o_pad * 2),
    )
    feats_p, out_p = pl.pallas_call(
        _make_agg2_kernel(resident_rhs, tk),
        out_shape=(jax.ShapeDtypeStruct((n_pad, h_pad), jnp.bfloat16),
                   jax.ShapeDtypeStruct((n_pad, o_pad), jnp.float32)),
        grid=grid,
        in_specs=[
            pl.BlockSpec((tm, tk), lambda i, k: (i, k)),      # A_hat tile
            rhs_spec,                                         # H
            pl.BlockSpec((h_pad, h_pad), lambda i, k: (0, 0)),  # W2 (bf16)
            pl.BlockSpec((1, h_pad), lambda i, k: (0, 0)),      # b2
            pl.BlockSpec((h_pad, o_pad), lambda i, k: (0, 0)),  # W3 (bf16)
            pl.BlockSpec((1, o_pad), lambda i, k: (0, 0)),      # b3
        ],
        out_specs=(
            pl.BlockSpec((tm, h_pad), lambda i, k: (i, 0)),
            pl.BlockSpec((tm, o_pad), lambda i, k: (i, 0)),
        ),
        scratch_shapes=[pltpu.VMEM((tm, h_pad), jnp.float32)],
        compiler_params=cparams,
        cost_estimate=cost2,
    )(a_p, h_bf16, w2_p, b2_p, w3_p, b3_p)

    return out_p[:n, :out_c], feats_p[:n, :hid].astype(jnp.float32)


if __name__ == "__main__":
    # Ring graph, large enough to exercise the tiled grid (768 pad -> 3x3 tiles
    # of 256) while the fused path uses n_pad = 640.
    N, F_IN, HID, OUT = 600, 8, 32, 4

    key = jax.random.PRNGKey(0)
    k_x, k_w1, k_b1, k_w2, k_b2, k_w3, k_b3 = jax.random.split(key, 7)

    x = jax.random.normal(k_x, (N, F_IN), jnp.float32)

    idx = np.arange(N)
    src = np.concatenate([idx, (idx + 1) % N])
    dst = np.concatenate([(idx + 1) % N, idx])
    edge_index = jnp.asarray(np.stack([src, dst]), jnp.int32)

    # Parameters (deterministic synthetic init). GCNConv weight: (in, out);
    # torch Linear stores (out, in) -> we pass its transpose (in, out).
    w1 = jax.random.normal(k_w1, (F_IN, HID), jnp.float32) * 0.1
    b1 = jax.random.normal(k_b1, (HID,), jnp.float32) * 0.1
    w2 = jax.random.normal(k_w2, (HID, HID), jnp.float32) * 0.1
    b2 = jax.random.normal(k_b2, (HID,), jnp.float32) * 0.1
    w3 = jax.random.normal(k_w3, (HID, OUT), jnp.float32) * 0.1
    b3 = jax.random.normal(k_b3, (OUT,), jnp.float32) * 0.1

    # ----- references -----
    a_f32 = build_normalized_adjacency(edge_index, N, n_pad=N, dtype=jnp.float32)
    a_bf = a_f32.astype(jnp.bfloat16).astype(jnp.float32)

    def bf(v):
        return v.astype(jnp.bfloat16).astype(jnp.float32)

    # Reference 1: mirrors the kernel's bf16 rounding steps (tight check).
    xw1_bf = bf(x @ w1)
    h_ref = bf(jnp.maximum(a_bf @ xw1_bf + b1[None, :], 0.0))
    ah_ref = bf(a_bf @ h_ref)
    f_ref = ah_ref @ bf(w2) + b2[None, :]
    feats_ref = bf(f_ref)
    o_ref = bf(jnp.maximum(f_ref, 0.0)) @ bf(w3) + b3[None, :]

    # Reference 2: pure f32 original formulation (loose check, bf16 is an
    # intentional inference-precision choice).
    h32 = jnp.maximum(a_f32 @ (x @ w1) + b1[None, :], 0.0)
    f32_ref = a_f32 @ (h32 @ w2) + b2[None, :]
    o32_ref = jnp.maximum(f32_ref, 0.0) @ w3 + b3[None, :]

    def check(out, feats, name):
        out = np.asarray(jax.block_until_ready(out))
        feats = np.asarray(jax.block_until_ready(feats))
        assert np.allclose(feats, np.asarray(feats_ref), atol=1e-2, rtol=1e-2), name
        assert np.allclose(out, np.asarray(o_ref), atol=1e-2, rtol=1e-2), name
        assert np.allclose(feats, np.asarray(f32_ref), atol=6e-2, rtol=6e-2), name
        assert np.allclose(out, np.asarray(o32_ref), atol=6e-2, rtol=6e-2), name

    # 1) fused single-kernel path (A_hat resident in VMEM).
    n_pad_f = padded_size(N)                              # auto -> fused, 640
    a_pf = build_normalized_adjacency(edge_index, N, n_pad=n_pad_f)
    out_f, feats_f = gnn_forward(a_pf, x, w1, b1, w2, b2, w3, b3)
    check(out_f, feats_f, "fused")

    # 2) tiled two-pass path, resident XW1/H, 3x3 grid of 256x256 A tiles.
    n_pad_t = padded_size(N, mode="tiled", tm=256, tk=256)
    a_pt = build_normalized_adjacency(edge_index, N, n_pad=n_pad_t)
    out_t, feats_t = gnn_forward(a_pt, x, w1, b1, w2, b2, w3, b3,
                                 mode="tiled", tm=256, tk=256)
    check(out_t, feats_t, "tiled-resident")

    # 3) tiled path with the k-streamed RHS fallback (used for very large N).
    out_s, feats_s = gnn_forward(a_pt, x, w1, b1, w2, b2, w3, b3,
                                 mode="tiled", tm=256, tk=256,
                                 resident_rhs=False)
    check(out_s, feats_s, "tiled-streamed")

    print("KERNEL_OK")
</pallas_src>

<mosaic_0001>
module attributes {stable_mosaic.version = 11 : i64} {
  func.func @_gnn_fused_kernel(%arg0: memref<640x640xbf16, #tpu.memory_space<vmem>>, %arg1: memref<640x128xbf16, #tpu.memory_space<vmem>>, %arg2: memref<1x128xf32, #tpu.memory_space<vmem>>, %arg3: memref<128x128xbf16, #tpu.memory_space<vmem>>, %arg4: memref<1x128xf32, #tpu.memory_space<vmem>>, %arg5: memref<128x128xbf16, #tpu.memory_space<vmem>>, %arg6: memref<1x128xf32, #tpu.memory_space<vmem>>, %arg7: memref<640x128xbf16, #tpu.memory_space<vmem>>, %arg8: memref<640x128xf32, #tpu.memory_space<vmem>>) attributes {dimension_semantics = [], scalar_prefetch = 0 : i64, scratch_operands = 0 : i64, tpu.core_type = #tpu.core_type<tc>} {
    %c0 = arith.constant 0 : index
    %c0_0 = arith.constant 0 : index
    %0 = vector.load %arg0[%c0, %c0_0] : memref<640x640xbf16, #tpu.memory_space<vmem>>, vector<640x640xbf16>
    %c0_1 = arith.constant 0 : index
    %c0_2 = arith.constant 0 : index
    %1 = vector.load %arg1[%c0_1, %c0_2] : memref<640x128xbf16, #tpu.memory_space<vmem>>, vector<640x128xbf16>
    %cst = arith.constant dense<0.000000e+00> : vector<640x128xf32>
    %2 = tpu.matmul %0, %1, %cst {dimension_numbers = #tpu.dot_dimension_numbers<[1], [0], [0], [1], [0, 0, 1, 1], [], []>} : vector<640x640xbf16>, vector<640x128xbf16>, vector<640x128xf32> -> vector<640x128xf32>
    %c0_3 = arith.constant 0 : index
    %c0_4 = arith.constant 0 : index
    %3 = vector.load %arg2[%c0_3, %c0_4] : memref<1x128xf32, #tpu.memory_space<vmem>>, vector<1x128xf32>
    %4 = vector.broadcast %3 : vector<1x128xf32> to vector<640x128xf32>
    %5 = arith.addf %2, %4 : vector<640x128xf32>
    %cst_5 = arith.constant 0.000000e+00 : f32
    %6 = vector.broadcast %cst_5 : f32 to vector<640x128xf32>
    %7 = arith.maximumf %5, %6 : vector<640x128xf32>
    %8 = arith.truncf %7 : vector<640x128xf32> to vector<640x128xbf16>
    %cst_6 = arith.constant dense<0.000000e+00> : vector<640x128xf32>
    %9 = tpu.matmul %0, %8, %cst_6 {dimension_numbers = #tpu.dot_dimension_numbers<[1], [0], [0], [1], [0, 0, 1, 1], [], []>} : vector<640x640xbf16>, vector<640x128xbf16>, vector<640x128xf32> -> vector<640x128xf32>
    %10 = arith.truncf %9 : vector<640x128xf32> to vector<640x128xbf16>
    %c0_7 = arith.constant 0 : index
    %c0_8 = arith.constant 0 : index
    %11 = vector.load %arg3[%c0_7, %c0_8] : memref<128x128xbf16, #tpu.memory_space<vmem>>, vector<128x128xbf16>
    %cst_9 = arith.constant dense<0.000000e+00> : vector<640x128xf32>
    %12 = tpu.matmul %10, %11, %cst_9 {dimension_numbers = #tpu.dot_dimension_numbers<[1], [0], [0], [1], [0, 0, 1, 1], [], []>} : vector<640x128xbf16>, vector<128x128xbf16>, vector<640x128xf32> -> vector<640x128xf32>
    %c0_10 = arith.constant 0 : index
    %c0_11 = arith.constant 0 : index
    %13 = vector.load %arg4[%c0_10, %c0_11] : memref<1x128xf32, #tpu.memory_space<vmem>>, vector<1x128xf32>
    %14 = vector.broadcast %13 : vector<1x128xf32> to vector<640x128xf32>
    %15 = arith.addf %12, %14 : vector<640x128xf32>
    %16 = arith.truncf %15 : vector<640x128xf32> to vector<640x128xbf16>
    %c0_12 = arith.constant 0 : index
    %c0_13 = arith.constant 0 : index
    %17 = vector.load %arg7[%c0_12, %c0_13] : memref<640x128xbf16, #tpu.memory_space<vmem>>, vector<640x128xbf16>
    tpu.vector_store %arg7[%c0_12, %c0_13], %16 {strides = array<i32>} : memref<640x128xbf16, #tpu.memory_space<vmem>>, vector<640x128xbf16>,
    %cst_14 = arith.constant 0.000000e+00 : f32
    %18 = vector.broadcast %cst_14 : f32 to vector<640x128xf32>
    %19 = arith.maximumf %15, %18 : vector<640x128xf32>
    %20 = arith.truncf %19 : vector<640x128xf32> to vector<640x128xbf16>
    %c0_15 = arith.constant 0 : index
    %c0_16 = arith.constant 0 : index
    %21 = vector.load %arg5[%c0_15, %c0_16] : memref<128x128xbf16, #tpu.memory_space<vmem>>, vector<128x128xbf16>
    %cst_17 = arith.constant dense<0.000000e+00> : vector<640x128xf32>
    %22 = tpu.matmul %20, %21, %cst_17 {dimension_numbers = #tpu.dot_dimension_numbers<[1], [0], [0], [1], [0, 0, 1, 1], [], []>} : vector<640x128xbf16>, vector<128x128xbf16>, vector<640x128xf32> -> vector<640x128xf32>
    %c0_18 = arith.constant 0 : index
    %c0_19 = arith.constant 0 : index
    %23 = vector.load %arg6[%c0_18, %c0_19] : memref<1x128xf32, #tpu.memory_space<vmem>>, vector<1x128xf32>
    %24 = vector.broadcast %23 : vector<1x128xf32> to vector<640x128xf32>
    %25 = arith.addf %22, %24 : vector<640x128xf32>
    %c0_20 = arith.constant 0 : index
    %c0_21 = arith.constant 0 : index
    %26 = vector.load %arg8[%c0_20, %c0_21] : memref<640x128xf32, #tpu.memory_space<vmem>>, vector<640x128xf32>
    tpu.vector_store %arg8[%c0_20, %c0_21], %25 {strides = array<i32>} : memref<640x128xf32, #tpu.memory_space<vmem>>, vector<640x128xf32>,
    return
  }
}

</mosaic_0001>

<llo_original>
// kernel: tpu_custom_call.1
$region0: #{tpu_custom_call.1}
  #allocation0 [shape = 'u32[]', space=smem, size = 0x4, offset = 0x4, fixed_abs, tag = 'smem constant byte address 0x4 - core index']
  #allocation1 [shape = 'u32[144,128]{1,0:T(1,128)}', space=vmem, size = 0x12000, scoped, tag = 'internal scratch']
  %s0 = inlined_call_operand.hbm [shape: bf16[640,640], index: 0, kind: input, shape index: {}]
  %s1 = inlined_call_operand.hbm [shape: bf16[640,128], index: 1, kind: input, shape index: {}]
  %s2 = inlined_call_operand.vmem [shape: f32[1,128], index: 2, kind: input, shape index: {}]
  %s3 = inlined_call_operand.hbm [shape: bf16[128,128], index: 3, kind: input, shape index: {}]
  %s4 = inlined_call_operand.vmem [shape: f32[1,128], index: 4, kind: input, shape index: {}]
  %s5 = inlined_call_operand.hbm [shape: bf16[128,128], index: 5, kind: input, shape index: {}]
  %s6 = inlined_call_operand.vmem [shape: f32[1,128], index: 6, kind: input, shape index: {}]
  %s7 = inlined_call_operand.hbm [shape: bf16[640,128], index: 7, kind: output, shape index: {0}]
  %s8 = inlined_call_operand.hbm [shape: f32[640,128], index: 8, kind: output, shape index: {1}]
  %9 = xla_tuple %s7, %s8
  %s10 = sld [smem:[#allocation0]]
  $region62: #{tpu_custom_call.1} parent=0
    _
  %s12 = ssub.s32 1, %s10
  %s13 = scalar_select 0, %s12, %s10
  $region1: #{tpu_custom_call.1} parent=0
    #allocation2 [shape = 'u8[819200]{0}', space=vmem, size = 0xc8000, scoped, tag = 'input window, operand 0, single buffered']
    #allocation3 [shape = 's32[1]{0}', space=sflag, size = 0x4, scoped, tag = 'scoped memory for tpu_custom_call.1']
    #allocation4 [shape = 's32[1]{0}', space=sflag, size = 0x4, scoped, tag = 'scoped memory for tpu_custom_call.1']
    #allocation5 [shape = 'u8[163840]{0}', space=vmem, size = 0x28000, scoped, tag = 'input window, operand 1, single buffered']
    #allocation6 [shape = 's32[1]{0}', space=sflag, size = 0x4, scoped, tag = 'scoped memory for tpu_custom_call.1']
    #allocation7 [shape = 'u8[32768]{0}', space=vmem, size = 0x8000, scoped, tag = 'input window, operand 3, single buffered']
    #allocation8 [shape = 'u8[32768]{0}', space=vmem, size = 0x8000, scoped, tag = 'input window, operand 5, single buffered']
    #allocation9 [shape = 's32[1]{0}', space=sflag, size = 0x4, scoped, tag = 'scoped memory for tpu_custom_call.1']
    #allocation10 [shape = 'u8[163840]{0}', space=vmem, size = 0x28000, scoped, tag = 'output window, operand 0, single buffered']
    #allocation11 [shape = 'u8[327680]{0}', space=vmem, size = 0x50000, scoped, tag = 'output window, operand 1, single buffered']
    #allocation12 [shape = 's32[1]{0}', space=sflag, size = 0x4, scoped, tag = 'scoped memory for tpu_custom_call.1']
    %14 = vsyncpa [#allocation3], 0
    %15 = vsyncpa [#allocation6], 0
    %16 = vsyncpa [#allocation9], 0
    %17 = vsyncpa [#allocation4], 0
    %18 = vsyncpa [#allocation12], 0
    // Predicated region
    $region2: #{tpu_custom_call.1} parent=1 // pred_check
      _
    $region3: #{tpu_custom_call.1} parent=1 // pred_check_branch
      %20 = sbr.rel (0) target = $region5
    $region4: #{tpu_custom_call.1} parent=1 // pred_region
      %s22 = ssub.s32 25600, 25600
      %23 = vsyncadd [#allocation3], %s22
      %s24 = sshll.u32 [#allocation2], 4
      %s25 = int_to_ptr.vmem [resolvable:$true] %s24
      %30 = dma.hbm_to_vmem [thread:$0]  %s0, 25600, %s25, [#allocation3], 320, 320, 20
    $region5: #{tpu_custom_call.1} parent=1 // pred_fallthru
      _
    // Predicated region
    $region6: #{tpu_custom_call.1} parent=1 // pred_check
      _
    $region7: #{tpu_custom_call.1} parent=1 // pred_check_branch
      %32 = sbr.rel (0) target = $region9
    $region8: #{tpu_custom_call.1} parent=1 // pred_region
      %s34 = ssub.s32 5120, 5120
      %35 = vsyncadd [#allocation6], %s34
      %s36 = sshll.u32 [#allocation5], 4
      %s37 = int_to_ptr.vmem [resolvable:$true] %s36
      %42 = dma.hbm_to_vmem [thread:$0]  %s1, 5120, %s37, [#allocation6], 64, 64, 4
    $region9: #{tpu_custom_call.1} parent=1 // pred_fallthru
      _
    // Predicated region
    $region10: #{tpu_custom_call.1} parent=1 // pred_check
      _
    $region11: #{tpu_custom_call.1} parent=1 // pred_check_branch
      %44 = sbr.rel (0) target = $region13
    $region12: #{tpu_custom_call.1} parent=1 // pred_region
      _
    $region13: #{tpu_custom_call.1} parent=1 // pred_fallthru
      _
    // Predicated region
    $region14: #{tpu_custom_call.1} parent=1 // pred_check
      _
    $region15: #{tpu_custom_call.1} parent=1 // pred_check_branch
      %46 = sbr.rel (0) target = $region17
    $region16: #{tpu_custom_call.1} parent=1 // pred_region
      %s48 = ssub.s32 1024, 1024
      %49 = vsyncadd [#allocation6], %s48
      %s50 = sshll.u32 [#allocation7], 4
      %s51 = int_to_ptr.vmem [resolvable:$true] %s50
      %56 = dma.hbm_to_vmem [thread:$0]  %s3, 1024, %s51, [#allocation6], 64, 64, 4
    $region17: #{tpu_custom_call.1} parent=1 // pred_fallthru
      _
    // Predicated region
    $region18: #{tpu_custom_call.1} parent=1 // pred_check
      _
    $region19: #{tpu_custom_call.1} parent=1 // pred_check_branch
      %58 = sbr.rel (0) target = $region21
    $region20: #{tpu_custom_call.1} parent=1 // pred_region
      _
    $region21: #{tpu_custom_call.1} parent=1 // pred_fallthru
      _
    // Predicated region
    $region22: #{tpu_custom_call.1} parent=1 // pred_check
      _
    $region23: #{tpu_custom_call.1} parent=1 // pred_check_branch
      %60 = sbr.rel (0) target = $region25
    $region24: #{tpu_custom_call.1} parent=1 // pred_region
      %s62 = ssub.s32 1024, 1024
      %63 = vsyncadd [#allocation9], %s62
      %s64 = sshll.u32 [#allocation8], 4
      %s65 = int_to_ptr.vmem [resolvable:$true] %s64
      %70 = dma.hbm_to_vmem [thread:$0]  %s5, 1024, %s65, [#allocation9], 64, 64, 4
    $region25: #{tpu_custom_call.1} parent=1 // pred_fallthru
      _
    // Predicated region
    $region26: #{tpu_custom_call.1} parent=1 // pred_check
      _
    $region27: #{tpu_custom_call.1} parent=1 // pred_check_branch
      %72 = sbr.rel (0) target = $region29
    $region28: #{tpu_custom_call.1} parent=1 // pred_region
      _
    $region29: #{tpu_custom_call.1} parent=1 // pred_fallthru
      _
    // Predicated region
    $region30: #{tpu_custom_call.1} parent=1 // pred_check
      _
    $region31: #{tpu_custom_call.1} parent=1 // pred_check_branch
      %74 = sbr.rel (0) target = $region33
    $region32: #{tpu_custom_call.1} parent=1 // pred_region
      %75 = dma.done [#allocation3], 25600
    $region33: #{tpu_custom_call.1} parent=1 // pred_fallthru
      _
    // Predicated region
    $region34: #{tpu_custom_call.1} parent=1 // pred_check
      _
    $region35: #{tpu_custom_call.1} parent=1 // pred_check_branch
      %77 = sbr.rel (0) target = $region37
    $region36: #{tpu_custom_call.1} parent=1 // pred_region
      %78 = dma.done [#allocation6], 5120
    $region37: #{tpu_custom_call.1} parent=1 // pred_fallthru
      _
    // Predicated region
    $region38: #{tpu_custom_call.1} parent=1 // pred_check
      _
    $region39: #{tpu_custom_call.1} parent=1 // pred_check_branch
      %80 = sbr.rel (0) target = $region41
    $region40: #{tpu_custom_call.1} parent=1 // pred_region
      %81 = dma.done [#allocation6], 1024
    $region41: #{tpu_custom_call.1} parent=1 // pred_fallthru
      _
    // Predicated region
    $region42: #{tpu_custom_call.1} parent=1 // pred_check
      _
    $region43: #{tpu_custom_call.1} parent=1 // pred_check_branch
      %83 = sbr.rel (0) target = $region45
    $region44: #{tpu_custom_call.1} parent=1 // pred_region
      %84 = dma.done [#allocation9], 1024
    $region45: #{tpu_custom_call.1} parent=1 // pred_fallthru
      _
    %v86 = vld [vmem:[#allocation2] sm:$0xff]
    %v87 = vld [vmem:[#allocation2 + $0x8] sm:$0xff]
    %v88 = vld [vmem:[#allocation2 + $0x10] sm:$0xf]
    %v89 = vld [vmem:[#allocation2 + $0x14] sm:$0xff]
    %v90 = vld [vmem:[#allocation2 + $0x1c] sm:$0xff]
    %v91 = vld [vmem:[#allocation2 + $0x24] sm:$0xf]
    %v92 = vld [vmem:[#allocation2 + $0x28] sm:$0xff]
    %v93 = vld [vmem:[#allocation2 + $0x30] sm:$0xff]
    %v94 = vld [vmem:[#allocation2 + $0x38] sm:$0xf]
    %v95 = vld [vmem:[#allocation2 + $0x3c] sm:$0xff]
    %v96 = vld [vmem:[#allocation2 + $0x44] sm:$0xff]
    %v97 = vld [vmem:[#allocation2 + $0x4c] sm:$0xf]
    %v98 = vld [vmem:[#allocation2 + $0x50] sm:$0xff]
    %v99 = vld [vmem:[#allocation2 + $0x58] sm:$0xff]
    %v100 = vld [vmem:[#allocation2 + $0x60] sm:$0xf]
    %v101 = vld [vmem:[#allocation2 + $0x64] sm:$0xff]
    %v102 = vld [vmem:[#allocation2 + $0x6c] sm:$0xff]
    %v103 = vld [vmem:[#allocation2 + $0x74] sm:$0xf]
    %v104 = vld [vmem:[#allocation2 + $0x78] sm:$0xff]
    %v105 = vld [vmem:[#allocation2 + $0x80] sm:$0xff]
    %v106 = vld [vmem:[#allocation2 + $0x88] sm:$0xf]
    %v107 = vld [vmem:[#allocation2 + $0x8c] sm:$0xff]
    %v108 = vld [vmem:[#allocation2 + $0x94] sm:$0xff]
    %v109 = vld [vmem:[#allocation2 + $0x9c] sm:$0xf]
    %v110 = vld [vmem:[#allocation2 + $0xa0] sm:$0xff]
    %v111 = vld [vmem:[#allocation2 + $0xa8] sm:$0xff]
    %v112 = vld [vmem:[#allocation2 + $0xb0] sm:$0xf]
    %v113 = vld [vmem:[#allocation2 + $0xb4] sm:$0xff]
    %v114 = vld [vmem:[#allocation2 + $0xbc] sm:$0xff]
    %v115 = vld [vmem:[#allocation2 + $0xc4] sm:$0xf]
    %v116 = vld [vmem:[#allocation2 + $0xc8] sm:$0xff]
    %v117 = vld [vmem:[#allocation2 + $0xd0] sm:$0xff]
    %v118 = vld [vmem:[#allocation2 + $0xd8] sm:$0xf]
    %v119 = vld [vmem:[#allocation2 + $0xdc] sm:$0xff]
    %v120 = vld [vmem:[#allocation2 + $0xe4] sm:$0xff]
    %v121 = vld [vmem:[#allocation2 + $0xec] sm:$0xf]
    %v122 = vld [vmem:[#allocation2 + $0xf0] sm:$0xff]
    %v123 = vld [vmem:[#allocation2 + $0xf8] sm:$0xff]
    %v124 = vld [vmem:[#allocation2 + $0x100] sm:$0xf]
    %v125 = vld [vmem:[#allocation2 + $0x104] sm:$0xff]
    %v126 = vld [vmem:[#allocation2 + $0x10c] sm:$0xff]
    %v127 = vld [vmem:[#allocation2 + $0x114] sm:$0xf]
    %v128 = vld [vmem:[#allocation2 + $0x118] sm:$0xff]
    %v129 = vld [vmem:[#allocation2 + $0x120] sm:$0xff]
    %v130 = vld [vmem:[#allocation2 + $0x128] sm:$0xf]
    %v131 = vld [vmem:[#allocation2 + $0x12c] sm:$0xff]
    %v132 = vld [vmem:[#allocation2 + $0x134] sm:$0xff]
    %v133 = vld [vmem:[#allocation2 + $0x13c] sm:$0xf]
    %v134 = vld [vmem:[#allocation2 + $0x140] sm:$0xff]
    %v135 = vld [vmem:[#allocation2 + $0x148] sm:$0xff]
    %v136 = vld [vmem:[#allocation2 + $0x150] sm:$0xf]
    %v137 = vld [vmem:[#allocation2 + $0x154] sm:$0xff]
    %v138 = vld [vmem:[#allocation2 + $0x15c] sm:$0xff]
    %v139 = vld [vmem:[#allocation2 + $0x164] sm:$0xf]
    %v140 = vld [vmem:[#allocation2 + $0x168] sm:$0xff]
    %v141 = vld [vmem:[#allocation2 + $0x170] sm:$0xff]
    %v142 = vld [vmem:[#allocation2 + $0x178] sm:$0xf]
    %v143 = vld [vmem:[#allocation2 + $0x17c] sm:$0xff]
    %v144 = vld [vmem:[#allocation2 + $0x184] sm:$0xff]
    %v145 = vld [vmem:[#allocation2 + $0x18c] sm:$0xf]
    %v146 = vld [vmem:[#allocation2 + $0x190] sm:$0xff]
    %v147 = vld [vmem:[#allocation2 + $0x198] sm:$0xff]
    %v148 = vld [vmem:[#allocation2 + $0x1a0] sm:$0xf]
    %v149 = vld [vmem:[#allocation2 + $0x1a4] sm:$0xff]
    %v150 = vld [vmem:[#allocation2 + $0x1ac] sm:$0xff]
    %v151 = vld [vmem:[#allocation2 + $0x1b4] sm:$0xf]
    %v152 = vld [vmem:[#allocation2 + $0x1b8] sm:$0xff]
    %v153 = vld [vmem:[#allocation2 + $0x1c0] sm:$0xff]
    %v154 = vld [vmem:[#allocation2 + $0x1c8] sm:$0xf]
    %v155 = vld [vmem:[#allocation2 + $0x1cc] sm:$0xff]
    %v156 = vld [vmem:[#allocation2 + $0x1d4] sm:$0xff]
    %v157 = vld [vmem:[#allocation2 + $0x1dc] sm:$0xf]
    %v158 = vld [vmem:[#allocation2 + $0x1e0] sm:$0xff]
    %v159 = vld [vmem:[#allocation2 + $0x1e8] sm:$0xff]
    %v160 = vld [vmem:[#allocation2 + $0x1f0] sm:$0xf]
    %v161 = vld [vmem:[#allocation2 + $0x1f4] sm:$0xff]
    %v162 = vld [vmem:[#allocation2 + $0x1fc] sm:$0xff]
    %v163 = vld [vmem:[#allocation2 + $0x204] sm:$0xf]
    %v164 = vld [vmem:[#allocation2 + $0x208] sm:$0xff]
    %v165 = vld [vmem:[#allocation2 + $0x210] sm:$0xff]
    %v166 = vld [vmem:[#allocation2 + $0x218] sm:$0xf]
    %v167 = vld [vmem:[#allocation2 + $0x21c] sm:$0xff]
    %v168 = vld [vmem:[#allocation2 + $0x224] sm:$0xff]
    %v169 = vld [vmem:[#allocation2 + $0x22c] sm:$0xf]
    %v170 = vld [vmem:[#allocation2 + $0x230] sm:$0xff]
    %v171 = vld [vmem:[#allocation2 + $0x238] sm:$0xff]
    %v172 = vld [vmem:[#allocation2 + $0x240] sm:$0xf]
    %v173 = vld [vmem:[#allocation2 + $0x244] sm:$0xff]
    %v174 = vld [vmem:[#allocation2 + $0x24c] sm:$0xff]
    %v175 = vld [vmem:[#allocation2 + $0x254] sm:$0xf]
    %v176 = vld [vmem:[#allocation2 + $0x258] sm:$0xff]
    %v177 = vld [vmem:[#allocation2 + $0x260] sm:$0xff]
    %v178 = vld [vmem:[#allocation2 + $0x268] sm:$0xf]
    %v179 = vld [vmem:[#allocation2 + $0x26c] sm:$0xff]
    %v180 = vld [vmem:[#allocation2 + $0x274] sm:$0xff]
    %v181 = vld [vmem:[#allocation2 + $0x27c] sm:$0xf]
    %v182 = vld [vmem:[#allocation2 + $0x280] sm:$0xff]
    %v183 = vld [vmem:[#allocation2 + $0x288] sm:$0xff]
    %v184 = vld [vmem:[#allocation2 + $0x290] sm:$0xf]
    %v185 = vld [vmem:[#allocation2 + $0x294] sm:$0xff]
    %v186 = vld [vmem:[#allocation2 + $0x29c] sm:$0xff]
    %v187 = vld [vmem:[#allocation2 + $0x2a4] sm:$0xf]
    %v188 = vld [vmem:[#allocation2 + $0x2a8] sm:$0xff]
    %v189 = vld [vmem:[#allocation2 + $0x2b0] sm:$0xff]
    %v190 = vld [vmem:[#allocation2 + $0x2b8] sm:$0xf]
    %v191 = vld [vmem:[#allocation2 + $0x2bc] sm:$0xff]
    %v192 = vld [vmem:[#allocation2 + $0x2c4] sm:$0xff]
    %v193 = vld [vmem:[#allocation2 + $0x2cc] sm:$0xf]
    %v194 = vld [vmem:[#allocation2 + $0x2d0] sm:$0xff]
    %v195 = vld [vmem:[#allocation2 + $0x2d8] sm:$0xff]
    %v196 = vld [vmem:[#allocation2 + $0x2e0] sm:$0xf]
    %v197 = vld [vmem:[#allocation2 + $0x2e4] sm:$0xff]
    %v198 = vld [vmem:[#allocation2 + $0x2ec] sm:$0xff]
    %v199 = vld [vmem:[#allocation2 + $0x2f4] sm:$0xf]
    %v200 = vld [vmem:[#allocation2 + $0x2f8] sm:$0xff]
    %v201 = vld [vmem:[#allocation2 + $0x300] sm:$0xff]
    %v202 = vld [vmem:[#allocation2 + $0x308] sm:$0xf]
    %v203 = vld [vmem:[#allocation2 + $0x30c] sm:$0xff]
    %v204 = vld [vmem:[#allocation2 + $0x314] sm:$0xff]
    %v205 = vld [vmem:[#allocation2 + $0x31c] sm:$0xf]
    %v206 = vld [vmem:[#allocation2 + $0x320] sm:$0xff]
    %v207 = vld [vmem:[#allocation2 + $0x328] sm:$0xff]
    %v208 = vld [vmem:[#allocation2 + $0x330] sm:$0xf]
    %v209 = vld [vmem:[#allocation2 + $0x334] sm:$0xff]
    %v210 = vld [vmem:[#allocation2 + $0x33c] sm:$0xff]
    %v211 = vld [vmem:[#allocation2 + $0x344] sm:$0xf]
    %v212 = vld [vmem:[#allocation2 + $0x348] sm:$0xff]
    %v213 = vld [vmem:[#allocation2 + $0x350] sm:$0xff]
    %v214 = vld [vmem:[#allocation2 + $0x358] sm:$0xf]
    %v215 = vld [vmem:[#allocation2 + $0x35c] sm:$0xff]
    %v216 = vld [vmem:[#allocation2 + $0x364] sm:$0xff]
    %v217 = vld [vmem:[#allocation2 + $0x36c] sm:$0xf]
    %v218 = vld [vmem:[#allocation2 + $0x370] sm:$0xff]
    %v219 = vld [vmem:[#allocation2 + $0x378] sm:$0xff]
    %v220 = vld [vmem:[#allocation2 + $0x380] sm:$0xf]
    %v221 = vld [vmem:[#allocation2 + $0x384] sm:$0xff]
    %v222 = vld [vmem:[#allocation2 + $0x38c] sm:$0xff]
    %v223 = vld [vmem:[#allocation2 + $0x394] sm:$0xf]
    %v224 = vld [vmem:[#allocation2 + $0x398] sm:$0xff]
    %v225 = vld [vmem:[#allocation2 + $0x3a0] sm:$0xff]
    %v226 = vld [vmem:[#allocation2 + $0x3a8] sm:$0xf]
    %v227 = vld [vmem:[#allocation2 + $0x3ac] sm:$0xff]
    %v228 = vld [vmem:[#allocation2 + $0x3b4] sm:$0xff]
    %v229 = vld [vmem:[#allocation2 + $0x3bc] sm:$0xf]
    %v230 = vld [vmem:[#allocation2 + $0x3c0] sm:$0xff]
    %v231 = vld [vmem:[#allocation2 + $0x3c8] sm:$0xff]
    %v232 = vld [vmem:[#allocation2 + $0x3d0] sm:$0xf]
    %v233 = vld [vmem:[#allocation2 + $0x3d4] sm:$0xff]
    %v234 = vld [vmem:[#allocation2 + $0x3dc] sm:$0xff]
    %v235 = vld [vmem:[#allocation2 + $0x3e4] sm:$0xf]
    %v236 = vld [vmem:[#allocation2 + $0x3e8] sm:$0xff]
    %v237 = vld [vmem:[#allocation2 + $0x3f0] sm:$0xff]
    %v238 = vld [vmem:[#allocation2 + $0x3f8] sm:$0xf]
    %v239 = vld [vmem:[#allocation2 + $0x3fc] sm:$0xff]
    %v240 = vld [vmem:[#allocation2 + $0x404] sm:$0xff]
    %v241 = vld [vmem:[#allocation2 + $0x40c] sm:$0xf]
    %v242 = vld [vmem:[#allocation2 + $0x410] sm:$0xff]
    %v243 = vld [vmem:[#allocation2 + $0x418] sm:$0xff]
    %v244 = vld [vmem:[#allocation2 + $0x420] sm:$0xf]
    %v245 = vld [vmem:[#allocation2 + $0x424] sm:$0xff]
    %v246 = vld [vmem:[#allocation2 + $0x42c] sm:$0xff]
    %v247 = vld [vmem:[#allocation2 + $0x434] sm:$0xf]
    %v248 = vld [vmem:[#allocation2 + $0x438] sm:$0xff]
    %v249 = vld [vmem:[#allocation2 + $0x440] sm:$0xff]
    %v250 = vld [vmem:[#allocation2 + $0x448] sm:$0xf]
    %v251 = vld [vmem:[#allocation2 + $0x44c] sm:$0xff]
    %v252 = vld [vmem:[#allocation2 + $0x454] sm:$0xff]
    %v253 = vld [vmem:[#allocation2 + $0x45c] sm:$0xf]
    %v254 = vld [vmem:[#allocation2 + $0x460] sm:$0xff]
    %v255 = vld [vmem:[#allocation2 + $0x468] sm:$0xff]
    %v256 = vld [vmem:[#allocation2 + $0x470] sm:$0xf]
    %v257 = vld [vmem:[#allocation2 + $0x474] sm:$0xff]
    %v258 = vld [vmem:[#allocation2 + $0x47c] sm:$0xff]
    %v259 = vld [vmem:[#allocation2 + $0x484] sm:$0xf]
    %v260 = vld [vmem:[#allocation2 + $0x488] sm:$0xff]
    %v261 = vld [vmem:[#allocation2 + $0x490] sm:$0xff]
    %v262 = vld [vmem:[#allocation2 + $0x498] sm:$0xf]
    %v263 = vld [vmem:[#allocation2 + $0x49c] sm:$0xff]
    %v264 = vld [vmem:[#allocation2 + $0x4a4] sm:$0xff]
    %v265 = vld [vmem:[#allocation2 + $0x4ac] sm:$0xf]
    %v266 = vld [vmem:[#allocation2 + $0x4b0] sm:$0xff]
    %v267 = vld [vmem:[#allocation2 + $0x4b8] sm:$0xff]
    %v268 = vld [vmem:[#allocation2 + $0x4c0] sm:$0xf]
    %v269 = vld [vmem:[#allocation2 + $0x4c4] sm:$0xff]
    %v270 = vld [vmem:[#allocation2 + $0x4cc] sm:$0xff]
    %v271 = vld [vmem:[#allocation2 + $0x4d4] sm:$0xf]
    %v272 = vld [vmem:[#allocation2 + $0x4d8] sm:$0xff]
    %v273 = vld [vmem:[#allocation2 + $0x4e0] sm:$0xff]
    %v274 = vld [vmem:[#allocation2 + $0x4e8] sm:$0xf]
    %v275 = vld [vmem:[#allocation2 + $0x4ec] sm:$0xff]
    %v276 = vld [vmem:[#allocation2 + $0x4f4] sm:$0xff]
    %v277 = vld [vmem:[#allocation2 + $0x4fc] sm:$0xf]
    %v278 = vld [vmem:[#allocation2 + $0x500] sm:$0xff]
    %v279 = vld [vmem:[#allocation2 + $0x508] sm:$0xff]
    %v280 = vld [vmem:[#allocation2 + $0x510] sm:$0xf]
    %v281 = vld [vmem:[#allocation2 + $0x514] sm:$0xff]
    %v282 = vld [vmem:[#allocation2 + $0x51c] sm:$0xff]
    %v283 = vld [vmem:[#allocation2 + $0x524] sm:$0xf]
    %v284 = vld [vmem:[#allocation2 + $0x528] sm:$0xff]
    %v285 = vld [vmem:[#allocation2 + $0x530] sm:$0xff]
    %v286 = vld [vmem:[#allocation2 + $0x538] sm:$0xf]
    %v287 = vld [vmem:[#allocation2 + $0x53c] sm:$0xff]
    %v288 = vld [vmem:[#allocation2 + $0x544] sm:$0xff]
    %v289 = vld [vmem:[#allocation2 + $0x54c] sm:$0xf]
    %v290 = vld [vmem:[#allocation2 + $0x550] sm:$0xff]
    %v291 = vld [vmem:[#allocation2 + $0x558] sm:$0xff]
    %v292 = vld [vmem:[#allocation2 + $0x560] sm:$0xf]
    %v293 = vld [vmem:[#allocation2 + $0x564] sm:$0xff]
    %v294 = vld [vmem:[#allocation2 + $0x56c] sm:$0xff]
    %v295 = vld [vmem:[#allocation2 + $0x574] sm:$0xf]
    %v296 = vld [vmem:[#allocation2 + $0x578] sm:$0xff]
    %v297 = vld [vmem:[#allocation2 + $0x580] sm:$0xff]
    %v298 = vld [vmem:[#allocation2 + $0x588] sm:$0xf]
    %v299 = vld [vmem:[#allocation2 + $0x58c] sm:$0xff]
    %v300 = vld [vmem:[#allocation2 + $0x594] sm:$0xff]
    %v301 = vld [vmem:[#allocation2 + $0x59c] sm:$0xf]
    %v302 = vld [vmem:[#allocation2 + $0x5a0] sm:$0xff]
    %v303 = vld [vmem:[#allocation2 + $0x5a8] sm:$0xff]
    %v304 = vld [vmem:[#allocation2 + $0x5b0] sm:$0xf]
    %v305 = vld [vmem:[#allocation2 + $0x5b4] sm:$0xff]
    %v306 = vld [vmem:[#allocation2 + $0x5bc] sm:$0xff]
    %v307 = vld [vmem:[#allocation2 + $0x5c4] sm:$0xf]
    %v308 = vld [vmem:[#allocation2 + $0x5c8] sm:$0xff]
    %v309 = vld [vmem:[#allocation2 + $0x5d0] sm:$0xff]
    %v310 = vld [vmem:[#allocation2 + $0x5d8] sm:$0xf]
    %v311 = vld [vmem:[#allocation2 + $0x5dc] sm:$0xff]
    %v312 = vld [vmem:[#allocation2 + $0x5e4] sm:$0xff]
    %v313 = vld [vmem:[#allocation2 + $0x5ec] sm:$0xf]
    %v314 = vld [vmem:[#allocation2 + $0x5f0] sm:$0xff]
    %v315 = vld [vmem:[#allocation2 + $0x5f8] sm:$0xff]
    %v316 = vld [vmem:[#allocation2 + $0x600] sm:$0xf]
    %v317 = vld [vmem:[#allocation2 + $0x604] sm:$0xff]
    %v318 = vld [vmem:[#allocation2 + $0x60c] sm:$0xff]
    %v319 = vld [vmem:[#allocation2 + $0x614] sm:$0xf]
    %v320 = vld [vmem:[#allocation2 + $0x618] sm:$0xff]
    %v321 = vld [vmem:[#allocation2 + $0x620] sm:$0xff]
    %v322 = vld [vmem:[#allocation2 + $0x628] sm:$0xf]
    %v323 = vld [vmem:[#allocation2 + $0x62c] sm:$0xff]
    %v324 = vld [vmem:[#allocation2 + $0x634] sm:$0xff]
    %v325 = vld [vmem:[#allocation2 + $0x63c] sm:$0xf]
    %v326 = vld [vmem:[#allocation5] sm:$0xf]
    %v327 = vld [vmem:[#allocation5 + $0x4] sm:$0xf]
    %v328 = vld [vmem:[#allocation5 + $0x8] sm:$0xf]
    %v329 = vld [vmem:[#allocation5 + $0xc] sm:$0xf]
    %v330 = vld [vmem:[#allocation5 + $0x10] sm:$0xf]
    %v331 = vld [vmem:[#allocation5 + $0x14] sm:$0xf]
    %v332 = vld [vmem:[#allocation5 + $0x18] sm:$0xf]
    %v333 = vld [vmem:[#allocation5 + $0x1c] sm:$0xf]
    %v334 = vld [vmem:[#allocation5 + $0x20] sm:$0xf]
    %v335 = vld [vmem:[#allocation5 + $0x24] sm:$0xf]
    %v336 = vld [vmem:[#allocation5 + $0x28] sm:$0xf]
    %v337 = vld [vmem:[#allocation5 + $0x2c] sm:$0xf]
    %v338 = vld [vmem:[#allocation5 + $0x30] sm:$0xf]
    %v339 = vld [vmem:[#allocation5 + $0x34] sm:$0xf]
    %v340 = vld [vmem:[#allocation5 + $0x38] sm:$0xf]
    %v341 = vld [vmem:[#allocation5 + $0x3c] sm:$0xf]
    %v342 = vld [vmem:[#allocation5 + $0x40] sm:$0xf]
    %v343 = vld [vmem:[#allocation5 + $0x44] sm:$0xf]
    %v344 = vld [vmem:[#allocation5 + $0x48] sm:$0xf]
    %v345 = vld [vmem:[#allocation5 + $0x4c] sm:$0xf]
    %v346 = vld [vmem:[#allocation5 + $0x50] sm:$0xf]
    %v347 = vld [vmem:[#allocation5 + $0x54] sm:$0xf]
    %v348 = vld [vmem:[#allocation5 + $0x58] sm:$0xf]
    %v349 = vld [vmem:[#allocation5 + $0x5c] sm:$0xf]
    %v350 = vld [vmem:[#allocation5 + $0x60] sm:$0xf]
    %v351 = vld [vmem:[#allocation5 + $0x64] sm:$0xf]
    %v352 = vld [vmem:[#allocation5 + $0x68] sm:$0xf]
    %v353 = vld [vmem:[#allocation5 + $0x6c] sm:$0xf]
    %v354 = vld [vmem:[#allocation5 + $0x70] sm:$0xf]
    %v355 = vld [vmem:[#allocation5 + $0x74] sm:$0xf]
    %v356 = vld [vmem:[#allocation5 + $0x78] sm:$0xf]
    %v357 = vld [vmem:[#allocation5 + $0x7c] sm:$0xf]
    %v358 = vld [vmem:[#allocation5 + $0x80] sm:$0xf]
    %v359 = vld [vmem:[#allocation5 + $0x84] sm:$0xf]
    %v360 = vld [vmem:[#allocation5 + $0x88] sm:$0xf]
    %v361 = vld [vmem:[#allocation5 + $0x8c] sm:$0xf]
    %v362 = vld [vmem:[#allocation5 + $0x90] sm:$0xf]
    %v363 = vld [vmem:[#allocation5 + $0x94] sm:$0xf]
    %v364 = vld [vmem:[#allocation5 + $0x98] sm:$0xf]
    %v365 = vld [vmem:[#allocation5 + $0x9c] sm:$0xf]
    %v366 = vld [vmem:[#allocation5 + $0xa0] sm:$0xf]
    %v367 = vld [vmem:[#allocation5 + $0xa4] sm:$0xf]
    %v368 = vld [vmem:[#allocation5 + $0xa8] sm:$0xf]
    %v369 = vld [vmem:[#allocation5 + $0xac] sm:$0xf]
    %v370 = vld [vmem:[#allocation5 + $0xb0] sm:$0xf]
    %v371 = vld [vmem:[#allocation5 + $0xb4] sm:$0xf]
    %v372 = vld [vmem:[#allocation5 + $0xb8] sm:$0xf]
    %v373 = vld [vmem:[#allocation5 + $0xbc] sm:$0xf]
    %v374 = vld [vmem:[#allocation5 + $0xc0] sm:$0xf]
    %v375 = vld [vmem:[#allocation5 + $0xc4] sm:$0xf]
    %v376 = vld [vmem:[#allocation5 + $0xc8] sm:$0xf]
    %v377 = vld [vmem:[#allocation5 + $0xcc] sm:$0xf]
    %v378 = vld [vmem:[#allocation5 + $0xd0] sm:$0xf]
    %v379 = vld [vmem:[#allocation5 + $0xd4] sm:$0xf]
    %v380 = vld [vmem:[#allocation5 + $0xd8] sm:$0xf]
    %v381 = vld [vmem:[#allocation5 + $0xdc] sm:$0xf]
    %v382 = vld [vmem:[#allocation5 + $0xe0] sm:$0xf]
    %v383 = vld [vmem:[#allocation5 + $0xe4] sm:$0xf]
    %v384 = vld [vmem:[#allocation5 + $0xe8] sm:$0xf]
    %v385 = vld [vmem:[#allocation5 + $0xec] sm:$0xf]
    %v386 = vld [vmem:[#allocation5 + $0xf0] sm:$0xf]
    %v387 = vld [vmem:[#allocation5 + $0xf4] sm:$0xf]
    %v388 = vld [vmem:[#allocation5 + $0xf8] sm:$0xf]
    %v389 = vld [vmem:[#allocation5 + $0xfc] sm:$0xf]
    %v390 = vld [vmem:[#allocation5 + $0x100] sm:$0xf]
    %v391 = vld [vmem:[#allocation5 + $0x104] sm:$0xf]
    %v392 = vld [vmem:[#allocation5 + $0x108] sm:$0xf]
    %v393 = vld [vmem:[#allocation5 + $0x10c] sm:$0xf]
    %v394 = vld [vmem:[#allocation5 + $0x110] sm:$0xf]
    %v395 = vld [vmem:[#allocation5 + $0x114] sm:$0xf]
    %v396 = vld [vmem:[#allocation5 + $0x118] sm:$0xf]
    %v397 = vld [vmem:[#allocation5 + $0x11c] sm:$0xf]
    %v398 = vld [vmem:[#allocation5 + $0x120] sm:$0xf]
    %v399 = vld [vmem:[#allocation5 + $0x124] sm:$0xf]
    %v400 = vld [vmem:[#allocation5 + $0x128] sm:$0xf]
    %v401 = vld [vmem:[#allocation5 + $0x12c] sm:$0xf]
    %v402 = vld [vmem:[#allocation5 + $0x130] sm:$0xf]
    %v403 = vld [vmem:[#allocation5 + $0x134] sm:$0xf]
    %v404 = vld [vmem:[#allocation5 + $0x138] sm:$0xf]
    %v405 = vld [vmem:[#allocation5 + $0x13c] sm:$0xf]
    %v406 = vld [vmem:[%s2] sm:$0x1]
    %v408 = vlaneseq
    %v409 = vshrl.u32 %v408, 7
    %v410 = vsub.s32 0, %v409
    %v411 = vrot.slane %v406, %v410
    %v653 = vunpack.c.l.b16 %v86
    %v654 = vunpack.c.h.b16 %v86
    %v655 = vunpack.c.l.b16 %v87
    %v656 = vunpack.c.h.b16 %v87
    %v657 = vunpack.c.l.b16 %v88
    %v658 = vunpack.c.l.b16 %v89
    %v659 = vunpack.c.h.b16 %v89
    %v660 = vunpack.c.l.b16 %v90
    %v661 = vunpack.c.h.b16 %v90
    %v662 = vunpack.c.l.b16 %v91
    %v663 = vunpack.c.l.b16 %v92
    %v664 = vunpack.c.h.b16 %v92
    %v665 = vunpack.c.l.b16 %v93
    %v666 = vunpack.c.h.b16 %v93
    %v667 = vunpack.c.l.b16 %v94
    %v668 = vunpack.c.l.b16 %v95
    %v669 = vunpack.c.h.b16 %v95
    %v670 = vunpack.c.l.b16 %v96
    %v671 = vunpack.c.h.b16 %v96
    %v672 = vunpack.c.l.b16 %v97
    %v673 = vunpack.c.l.b16 %v98
    %v674 = vunpack.c.h.b16 %v98
    %v675 = vunpack.c.l.b16 %v99
    %v676 = vunpack.c.h.b16 %v99
    %v677 = vunpack.c.l.b16 %v100
    %v678 = vunpack.c.l.b16 %v101
    %v679 = vunpack.c.h.b16 %v101
    %v680 = vunpack.c.l.b16 %v102
    %v681 = vunpack.c.h.b16 %v102
    %v682 = vunpack.c.l.b16 %v103
    %v683 = vunpack.c.l.b16 %v104
    %v684 = vunpack.c.h.b16 %v104
    %v685 = vunpack.c.l.b16 %v105
    %v686 = vunpack.c.h.b16 %v105
    %v687 = vunpack.c.l.b16 %v106
    %v688 = vunpack.c.l.b16 %v107
    %v689 = vunpack.c.h.b16 %v107
    %v690 = vunpack.c.l.b16 %v108
    %v691 = vunpack.c.h.b16 %v108
    %v692 = vunpack.c.l.b16 %v109
    %v693 = vunpack.c.l.b16 %v110
    %v694 = vunpack.c.h.b16 %v110
    %v695 = vunpack.c.l.b16 %v111
    %v696 = vunpack.c.h.b16 %v111
    %v697 = vunpack.c.l.b16 %v112
    %v698 = vunpack.c.l.b16 %v113
    %v699 = vunpack.c.h.b16 %v113
    %v700 = vunpack.c.l.b16 %v114
    %v701 = vunpack.c.h.b16 %v114
    %v702 = vunpack.c.l.b16 %v115
    %v703 = vunpack.c.l.b16 %v116
    %v704 = vunpack.c.h.b16 %v116
    %v705 = vunpack.c.l.b16 %v117
    %v706 = vunpack.c.h.b16 %v117
    %v707 = vunpack.c.l.b16 %v118
    %v708 = vunpack.c.l.b16 %v119
    %v709 = vunpack.c.h.b16 %v119
    %v710 = vunpack.c.l.b16 %v120
    %v711 = vunpack.c.h.b16 %v120
    %v712 = vunpack.c.l.b16 %v121
    %v713 = vunpack.c.l.b16 %v122
    %v714 = vunpack.c.h.b16 %v122
    %v715 = vunpack.c.l.b16 %v123
    %v716 = vunpack.c.h.b16 %v123
    %v717 = vunpack.c.l.b16 %v124
    %v718 = vunpack.c.l.b16 %v125
    %v719 = vunpack.c.h.b16 %v125
    %v720 = vunpack.c.l.b16 %v126
    %v721 = vunpack.c.h.b16 %v126
    %v722 = vunpack.c.l.b16 %v127
    %v723 = vunpack.c.l.b16 %v128
    %v724 = vunpack.c.h.b16 %v128
    %v725 = vunpack.c.l.b16 %v129
    %v726 = vunpack.c.h.b16 %v129
    %v727 = vunpack.c.l.b16 %v130
    %v728 = vunpack.c.l.b16 %v131
    %v729 = vunpack.c.h.b16 %v131
    %v730 = vunpack.c.l.b16 %v132
    %v731 = vunpack.c.h.b16 %v132
    %v732 = vunpack.c.l.b16 %v133
    %v733 = vunpack.c.l.b16 %v134
    %v734 = vunpack.c.h.b16 %v134
    %v735 = vunpack.c.l.b16 %v135
    %v736 = vunpack.c.h.b16 %v135
    %v737 = vunpack.c.l.b16 %v136
    %v738 = vunpack.c.l.b16 %v137
    %v739 = vunpack.c.h.b16 %v137
    %v740 = vunpack.c.l.b16 %v138
    %v741 = vunpack.c.h.b16 %v138
    %v742 = vunpack.c.l.b16 %v139
    %v743 = vunpack.c.l.b16 %v140
    %v744 = vunpack.c.h.b16 %v140
    %v745 = vunpack.c.l.b16 %v141
    %v746 = vunpack.c.h.b16 %v141
    %v747 = vunpack.c.l.b16 %v142
    %v748 = vunpack.c.l.b16 %v143
    %v749 = vunpack.c.h.b16 %v143
    %v750 = vunpack.c.l.b16 %v144
    %v751 = vunpack.c.h.b16 %v144
    %v752 = vunpack.c.l.b16 %v145
    %v753 = vunpack.c.l.b16 %v146
    %v754 = vunpack.c.h.b16 %v146
    %v755 = vunpack.c.l.b16 %v147
    %v756 = vunpack.c.h.b16 %v147
    %v757 = vunpack.c.l.b16 %v148
    %v758 = vunpack.c.l.b16 %v149
    %v759 = vunpack.c.h.b16 %v149
    %v760 = vunpack.c.l.b16 %v150
    %v761 = vunpack.c.h.b16 %v150
    %v762 = vunpack.c.l.b16 %v151
    %v763 = vunpack.c.l.b16 %v152
    %v764 = vunpack.c.h.b16 %v152
    %v765 = vunpack.c.l.b16 %v153
    %v766 = vunpack.c.h.b16 %v153
    %v767 = vunpack.c.l.b16 %v154
    %v768 = vunpack.c.l.b16 %v155
    %v769 = vunpack.c.h.b16 %v155
    %v770 = vunpack.c.l.b16 %v156
    %v771 = vunpack.c.h.b16 %v156
    %v772 = vunpack.c.l.b16 %v157
    %v773 = vunpack.c.l.b16 %v158
    %v774 = vunpack.c.h.b16 %v158
    %v775 = vunpack.c.l.b16 %v159
    %v776 = vunpack.c.h.b16 %v159
    %v777 = vunpack.c.l.b16 %v160
    %v778 = vunpack.c.l.b16 %v161
    %v779 = vunpack.c.h.b16 %v161
    %v780 = vunpack.c.l.b16 %v162
    %v781 = vunpack.c.h.b16 %v162
    %v782 = vunpack.c.l.b16 %v163
    %v783 = vunpack.c.l.b16 %v164
    %v784 = vunpack.c.h.b16 %v164
    %v785 = vunpack.c.l.b16 %v165
    %v786 = vunpack.c.h.b16 %v165
    %v787 = vunpack.c.l.b16 %v166
    %v788 = vunpack.c.l.b16 %v167
    %v789 = vunpack.c.h.b16 %v167
    %v790 = vunpack.c.l.b16 %v168
    %v791 = vunpack.c.h.b16 %v168
    %v792 = vunpack.c.l.b16 %v169
    %v793 = vunpack.c.l.b16 %v170
    %v794 = vunpack.c.h.b16 %v170
    %v795 = vunpack.c.l.b16 %v171
    %v796 = vunpack.c.h.b16 %v171
    %v797 = vunpack.c.l.b16 %v172
    %v798 = vunpack.c.l.b16 %v173
    %v799 = vunpack.c.h.b16 %v173
    %v800 = vunpack.c.l.b16 %v174
    %v801 = vunpack.c.h.b16 %v174
    %v802 = vunpack.c.l.b16 %v175
    %v803 = vunpack.c.l.b16 %v176
    %v804 = vunpack.c.h.b16 %v176
    %v805 = vunpack.c.l.b16 %v177
    %v806 = vunpack.c.h.b16 %v177
    %v807 = vunpack.c.l.b16 %v178
    %v808 = vunpack.c.l.b16 %v179
    %v809 = vunpack.c.h.b16 %v179
    %v810 = vunpack.c.l.b16 %v180
    %v811 = vunpack.c.h.b16 %v180
    %v812 = vunpack.c.l.b16 %v181
    %v813 = vunpack.c.l.b16 %v182
    %v814 = vunpack.c.h.b16 %v182
    %v815 = vunpack.c.l.b16 %v183
    %v816 = vunpack.c.h.b16 %v183
    %v817 = vunpack.c.l.b16 %v184
    %v818 = vunpack.c.l.b16 %v185
    %v819 = vunpack.c.h.b16 %v185
    %v820 = vunpack.c.l.b16 %v186
    %v821 = vunpack.c.h.b16 %v186
    %v822 = vunpack.c.l.b16 %v187
    %v823 = vunpack.c.l.b16 %v188
    %v824 = vunpack.c.h.b16 %v188
    %v825 = vunpack.c.l.b16 %v189
    %v826 = vunpack.c.h.b16 %v189
    %v827 = vunpack.c.l.b16 %v190
    %v828 = vunpack.c.l.b16 %v191
    %v829 = vunpack.c.h.b16 %v191
    %v830 = vunpack.c.l.b16 %v192
    %v831 = vunpack.c.h.b16 %v192
    %v832 = vunpack.c.l.b16 %v193
    %v833 = vunpack.c.l.b16 %v194
    %v834 = vunpack.c.h.b16 %v194
    %v835 = vunpack.c.l.b16 %v195
    %v836 = vunpack.c.h.b16 %v195
    %v837 = vunpack.c.l.b16 %v196
    %v838 = vunpack.c.l.b16 %v197
    %v839 = vunpack.c.h.b16 %v197
    %v840 = vunpack.c.l.b16 %v198
    %v841 = vunpack.c.h.b16 %v198
    %v842 = vunpack.c.l.b16 %v199
    %v843 = vunpack.c.l.b16 %v200
    %v844 = vunpack.c.h.b16 %v200
    %v845 = vunpack.c.l.b16 %v201
    %v846 = vunpack.c.h.b16 %v201
    %v847 = vunpack.c.l.b16 %v202
    %v848 = vunpack.c.l.b16 %v203
    %v849 = vunpack.c.h.b16 %v203
    %v850 = vunpack.c.l.b16 %v204
    %v851 = vunpack.c.h.b16 %v204
    %v852 = vunpack.c.l.b16 %v205
    %v853 = vunpack.c.l.b16 %v206
    %v854 = vunpack.c.h.b16 %v206
    %v855 = vunpack.c.l.b16 %v207
    %v856 = vunpack.c.h.b16 %v207
    %v857 = vunpack.c.l.b16 %v208
    %v858 = vunpack.c.l.b16 %v209
    %v859 = vunpack.c.h.b16 %v209
    %v860 = vunpack.c.l.b16 %v210
    %v861 = vunpack.c.h.b16 %v210
    %v862 = vunpack.c.l.b16 %v211
    %v863 = vunpack.c.l.b16 %v212
    %v864 = vunpack.c.h.b16 %v212
    %v865 = vunpack.c.l.b16 %v213
    %v866 = vunpack.c.h.b16 %v213
    %v867 = vunpack.c.l.b16 %v214
    %v868 = vunpack.c.l.b16 %v215
    %v869 = vunpack.c.h.b16 %v215
    %v870 = vunpack.c.l.b16 %v216
    %v871 = vunpack.c.h.b16 %v216
    %v872 = vunpack.c.l.b16 %v217
    %v873 = vunpack.c.l.b16 %v218
    %v874 = vunpack.c.h.b16 %v218
    %v875 = vunpack.c.l.b16 %v219
    %v876 = vunpack.c.h.b16 %v219
    %v877 = vunpack.c.l.b16 %v220
    %v878 = vunpack.c.l.b16 %v221
    %v879 = vunpack.c.h.b16 %v221
    %v880 = vunpack.c.l.b16 %v222
    %v881 = vunpack.c.h.b16 %v222
    %v882 = vunpack.c.l.b16 %v223
    %v883 = vunpack.c.l.b16 %v224
    %v884 = vunpack.c.h.b16 %v224
    %v885 = vunpack.c.l.b16 %v225
    %v886 = vunpack.c.h.b16 %v225
    %v887 = vunpack.c.l.b16 %v226
    %v888 = vunpack.c.l.b16 %v227
    %v889 = vunpack.c.h.b16 %v227
    %v890 = vunpack.c.l.b16 %v228
    %v891 = vunpack.c.h.b16 %v228
    %v892 = vunpack.c.l.b16 %v229
    %v893 = vunpack.c.l.b16 %v230
    %v894 = vunpack.c.h.b16 %v230
    %v895 = vunpack.c.l.b16 %v231
    %v896 = vunpack.c.h.b16 %v231
    %v897 = vunpack.c.l.b16 %v232
    %v898 = vunpack.c.l.b16 %v233
    %v899 = vunpack.c.h.b16 %v233
    %v900 = vunpack.c.l.b16 %v234
    %v901 = vunpack.c.h.b16 %v234
    %v902 = vunpack.c.l.b16 %v235
    %v903 = vunpack.c.l.b16 %v236
    %v904 = vunpack.c.h.b16 %v236
    %v905 = vunpack.c.l.b16 %v237
    %v906 = vunpack.c.h.b16 %v237
    %v907 = vunpack.c.l.b16 %v238
    %v908 = vunpack.c.l.b16 %v239
    %v909 = vunpack.c.h.b16 %v239
    %v910 = vunpack.c.l.b16 %v240
    %v911 = vunpack.c.h.b16 %v240
    %v912 = vunpack.c.l.b16 %v241
    %v913 = vunpack.c.l.b16 %v242
    %v914 = vunpack.c.h.b16 %v242
    %v915 = vunpack.c.l.b16 %v243
    %v916 = vunpack.c.h.b16 %v243
    %v917 = vunpack.c.l.b16 %v244
    %v918 = vunpack.c.l.b16 %v245
    %v919 = vunpack.c.h.b16 %v245
    %v920 = vunpack.c.l.b16 %v246
    %v921 = vunpack.c.h.b16 %v246
    %v922 = vunpack.c.l.b16 %v247
    %v923 = vunpack.c.l.b16 %v248
    %v924 = vunpack.c.h.b16 %v248
    %v925 = vunpack.c.l.b16 %v249
    %v926 = vunpack.c.h.b16 %v249
    %v927 = vunpack.c.l.b16 %v250
    %v928 = vunpack.c.l.b16 %v251
    %v929 = vunpack.c.h.b16 %v251
    %v930 = vunpack.c.l.b16 %v252
    %v931 = vunpack.c.h.b16 %v252
    %v932 = vunpack.c.l.b16 %v253
    %v933 = vunpack.c.l.b16 %v254
    %v934 = vunpack.c.h.b16 %v254
    %v935 = vunpack.c.l.b16 %v255
    %v936 = vunpack.c.h.b16 %v255
    %v937 = vunpack.c.l.b16 %v256
    %v938 = vunpack.c.l.b16 %v257
    %v939 = vunpack.c.h.b16 %v257
    %v940 = vunpack.c.l.b16 %v258
    %v941 = vunpack.c.h.b16 %v258
    %v942 = vunpack.c.l.b16 %v259
    %v943 = vunpack.c.l.b16 %v260
    %v944 = vunpack.c.h.b16 %v260
    %v945 = vunpack.c.l.b16 %v261
    %v946 = vunpack.c.h.b16 %v261
    %v947 = vunpack.c.l.b16 %v262
    %v948 = vunpack.c.l.b16 %v263
    %v949 = vunpack.c.h.b16 %v263
    %v950 = vunpack.c.l.b16 %v264
    %v951 = vunpack.c.h.b16 %v264
    %v952 = vunpack.c.l.b16 %v265
    %v953 = vunpack.c.l.b16 %v266
    %v954 = vunpack.c.h.b16 %v266
    %v955 = vunpack.c.l.b16 %v267
    %v956 = vunpack.c.h.b16 %v267
    %v957 = vunpack.c.l.b16 %v268
    %v958 = vunpack.c.l.b16 %v269
    %v959 = vunpack.c.h.b16 %v269
    %v960 = vunpack.c.l.b16 %v270
    %v961 = vunpack.c.h.b16 %v270
    %v962 = vunpack.c.l.b16 %v271
    %v963 = vunpack.c.l.b16 %v272
    %v964 = vunpack.c.h.b16 %v272
    %v965 = vunpack.c.l.b16 %v273
    %v966 = vunpack.c.h.b16 %v273
    %v967 = vunpack.c.l.b16 %v274
    %v968 = vunpack.c.l.b16 %v275
    %v969 = vunpack.c.h.b16 %v275
    %v970 = vunpack.c.l.b16 %v276
    %v971 = vunpack.c.h.b16 %v276
    %v972 = vunpack.c.l.b16 %v277
    %v973 = vunpack.c.l.b16 %v278
    %v974 = vunpack.c.h.b16 %v278
    %v975 = vunpack.c.l.b16 %v279
    %v976 = vunpack.c.h.b16 %v279
    %v977 = vunpack.c.l.b16 %v280
    %v978 = vunpack.c.l.b16 %v281
    %v979 = vunpack.c.h.b16 %v281
    %v980 = vunpack.c.l.b16 %v282
    %v981 = vunpack.c.h.b16 %v282
    %v982 = vunpack.c.l.b16 %v283
    %v983 = vunpack.c.l.b16 %v284
    %v984 = vunpack.c.h.b16 %v284
    %v985 = vunpack.c.l.b16 %v285
    %v986 = vunpack.c.h.b16 %v285
    %v987 = vunpack.c.l.b16 %v286
    %v988 = vunpack.c.l.b16 %v287
    %v989 = vunpack.c.h.b16 %v287
    %v990 = vunpack.c.l.b16 %v288
    %v991 = vunpack.c.h.b16 %v288
    %v992 = vunpack.c.l.b16 %v289
    %v993 = vunpack.c.l.b16 %v290
    %v994 = vunpack.c.h.b16 %v290
    %v995 = vunpack.c.l.b16 %v291
    %v996 = vunpack.c.h.b16 %v291
    %v997 = vunpack.c.l.b16 %v292
    %v998 = vunpack.c.l.b16 %v293
    %v999 = vunpack.c.h.b16 %v293
    %v1000 = vunpack.c.l.b16 %v294
    %v1001 = vunpack.c.h.b16 %v294
    %v1002 = vunpack.c.l.b16 %v295
    %v1003 = vunpack.c.l.b16 %v296
    %v1004 = vunpack.c.h.b16 %v296
    %v1005 = vunpack.c.l.b16 %v297
    %v1006 = vunpack.c.h.b16 %v297
    %v1007 = vunpack.c.l.b16 %v298
    %v1008 = vunpack.c.l.b16 %v299
    %v1009 = vunpack.c.h.b16 %v299
    %v1010 = vunpack.c.l.b16 %v300
    %v1011 = vunpack.c.h.b16 %v300
    %v1012 = vunpack.c.l.b16 %v301
    %v1013 = vunpack.c.l.b16 %v302
    %v1014 = vunpack.c.h.b16 %v302
    %v1015 = vunpack.c.l.b16 %v303
    %v1016 = vunpack.c.h.b16 %v303
    %v1017 = vunpack.c.l.b16 %v304
    %v1018 = vunpack.c.l.b16 %v305
    %v1019 = vunpack.c.h.b16 %v305
    %v1020 = vunpack.c.l.b16 %v306
    %v1021 = vunpack.c.h.b16 %v306
    %v1022 = vunpack.c.l.b16 %v307
    %v1023 = vunpack.c.l.b16 %v308
    %v1024 = vunpack.c.h.b16 %v308
    %v1025 = vunpack.c.l.b16 %v309
    %v1026 = vunpack.c.h.b16 %v309
    %v1027 = vunpack.c.l.b16 %v310
    %v1028 = vunpack.c.l.b16 %v311
    %v1029 = vunpack.c.h.b16 %v311
    %v1030 = vunpack.c.l.b16 %v312
    %v1031 = vunpack.c.h.b16 %v312
    %v1032 = vunpack.c.l.b16 %v313
    %v1033 = vunpack.c.l.b16 %v314
    %v1034 = vunpack.c.h.b16 %v314
    %v1035 = vunpack.c.l.b16 %v315
    %v1036 = vunpack.c.h.b16 %v315
    %v1037 = vunpack.c.l.b16 %v316
    %v1038 = vunpack.c.l.b16 %v317
    %v1039 = vunpack.c.h.b16 %v317
    %v1040 = vunpack.c.l.b16 %v318
    %v1041 = vunpack.c.h.b16 %v318
    %v1042 = vunpack.c.l.b16 %v319
    %v1043 = vunpack.c.l.b16 %v320
    %v1044 = vunpack.c.h.b16 %v320
    %v1045 = vunpack.c.l.b16 %v321
    %v1046 = vunpack.c.h.b16 %v321
    %v1047 = vunpack.c.l.b16 %v322
    %v1048 = vunpack.c.l.b16 %v323
    %v1049 = vunpack.c.h.b16 %v323
    %v1050 = vunpack.c.l.b16 %v324
    %v1051 = vunpack.c.h.b16 %v324
    %v1052 = vunpack.c.l.b16 %v325
    %v1053 = vpack.c.b16 %v658, %v653
    %v1054 = vpack.c.b16 %v659, %v654
    %v1055 = vpack.c.b16 %v660, %v655
    %v1056 = vpack.c.b16 %v661, %v656
    %v1057 = vpack.c.b16 %v662, %v657
    %v1058 = vpack.c.b16 %v668, %v663
    %v1059 = vpack.c.b16 %v669, %v664
    %v1060 = vpack.c.b16 %v670, %v665
    %v1061 = vpack.c.b16 %v671, %v666
    %v1062 = vpack.c.b16 %v672, %v667
    %v1063 = vpack.c.b16 %v678, %v673
    %v1064 = vpack.c.b16 %v679, %v674
    %v1065 = vpack.c.b16 %v680, %v675
    %v1066 = vpack.c.b16 %v681, %v676
    %v1067 = vpack.c.b16 %v682, %v677
    %v1068 = vpack.c.b16 %v688, %v683
    %v1069 = vpack.c.b16 %v689, %v684
    %v1070 = vpack.c.b16 %v690, %v685
    %v1071 = vpack.c.b16 %v691, %v686
    %v1072 = vpack.c.b16 %v692, %v687
    %v1073 = vpack.c.b16 %v698, %v693
    %v1074 = vpack.c.b16 %v699, %v694
    %v1075 = vpack.c.b16 %v700, %v695
    %v1076 = vpack.c.b16 %v701, %v696
    %v1077 = vpack.c.b16 %v702, %v697
    %v1078 = vpack.c.b16 %v708, %v703
    %v1079 = vpack.c.b16 %v709, %v704
    %v1080 = vpack.c.b16 %v710, %v705
    %v1081 = vpack.c.b16 %v711, %v706
    %v1082 = vpack.c.b16 %v712, %v707
    %v1083 = vpack.c.b16 %v718, %v713
    %v1084 = vpack.c.b16 %v719, %v714
    %v1085 = vpack.c.b16 %v720, %v715
    %v1086 = vpack.c.b16 %v721, %v716
    %v1087 = vpack.c.b16 %v722, %v717
    %v1088 = vpack.c.b16 %v728, %v723
    %v1089 = vpack.c.b16 %v729, %v724
    %v1090 = vpack.c.b16 %v730, %v725
    %v1091 = vpack.c.b16 %v731, %v726
    %v1092 = vpack.c.b16 %v732, %v727
    %v1093 = vpack.c.b16 %v738, %v733
    %v1094 = vpack.c.b16 %v739, %v734
    %v1095 = vpack.c.b16 %v740, %v735
    %v1096 = vpack.c.b16 %v741, %v736
    %v1097 = vpack.c.b16 %v742, %v737
    %v1098 = vpack.c.b16 %v748, %v743
    %v1099 = vpack.c.b16 %v749, %v744
    %v1100 = vpack.c.b16 %v750, %v745
    %v1101 = vpack.c.b16 %v751, %v746
    %v1102 = vpack.c.b16 %v752, %v747
    %v1103 = vpack.c.b16 %v758, %v753
    %v1104 = vpack.c.b16 %v759, %v754
    %v1105 = vpack.c.b16 %v760, %v755
    %v1106 = vpack.c.b16 %v761, %v756
    %v1107 = vpack.c.b16 %v762, %v757
    %v1108 = vpack.c.b16 %v768, %v763
    %v1109 = vpack.c.b16 %v769, %v764
    %v1110 = vpack.c.b16 %v770, %v765
    %v1111 = vpack.c.b16 %v771, %v766
    %v1112 = vpack.c.b16 %v772, %v767
    %v1113 = vpack.c.b16 %v778, %v773
    %v1114 = vpack.c.b16 %v779, %v774
    %v1115 = vpack.c.b16 %v780, %v775
    %v1116 = vpack.c.b16 %v781, %v776
    %v1117 = vpack.c.b16 %v782, %v777
    %v1118 = vpack.c.b16 %v788, %v783
    %v1119 = vpack.c.b16 %v789, %v784
    %v1120 = vpack.c.b16 %v790, %v785
    %v1121 = vpack.c.b16 %v791, %v786
    %v1122 = vpack.c.b16 %v792, %v787
    %v1123 = vpack.c.b16 %v798, %v793
    %v1124 = vpack.c.b16 %v799, %v794
    %v1125 = vpack.c.b16 %v800, %v795
    %v1126 = vpack.c.b16 %v801, %v796
    %v1127 = vpack.c.b16 %v802, %v797
    %v1128 = vpack.c.b16 %v808, %v803
    %v1129 = vpack.c.b16 %v809, %v804
    %v1130 = vpack.c.b16 %v810, %v805
    %v1131 = vpack.c.b16 %v811, %v806
    %v1132 = vpack.c.b16 %v812, %v807
    %v1133 = vpack.c.b16 %v818, %v813
    %v1134 = vpack.c.b16 %v819, %v814
    %v1135 = vpack.c.b16 %v820, %v815
    %v1136 = vpack.c.b16 %v821, %v816
    %v1137 = vpack.c.b16 %v822, %v817
    %v1138 = vpack.c.b16 %v828, %v823
    %v1139 = vpack.c.b16 %v829, %v824
    %v1140 = vpack.c.b16 %v830, %v825
    %v1141 = vpack.c.b16 %v831, %v826
    %v1142 = vpack.c.b16 %v832, %v827
    %v1143 = vpack.c.b16 %v838, %v833
    %v1144 = vpack.c.b16 %v839, %v834
    %v1145 = vpack.c.b16 %v840, %v835
    %v1146 = vpack.c.b16 %v841, %v836
    %v1147 = vpack.c.b16 %v842, %v837
    %v1148 = vpack.c.b16 %v848, %v843
    %v1149 = vpack.c.b16 %v849, %v844
    %v1150 = vpack.c.b16 %v850, %v845
    %v1151 = vpack.c.b16 %v851, %v846
    %v1152 = vpack.c.b16 %v852, %v847
    %v1153 = vpack.c.b16 %v858, %v853
    %v1154 = vpack.c.b16 %v859, %v854
    %v1155 = vpack.c.b16 %v860, %v855
    %v1156 = vpack.c.b16 %v861, %v856
    %v1157 = vpack.c.b16 %v862, %v857
    %v1158 = vpack.c.b16 %v868, %v863
    %v1159 = vpack.c.b16 %v869, %v864
    %v1160 = vpack.c.b16 %v870, %v865
    %v1161 = vpack.c.b16 %v871, %v866
    %v1162 = vpack.c.b16 %v872, %v867
    %v1163 = vpack.c.b16 %v878, %v873
    %v1164 = vpack.c.b16 %v879, %v874
    %v1165 = vpack.c.b16 %v880, %v875
    %v1166 = vpack.c.b16 %v881, %v876
    %v1167 = vpack.c.b16 %v882, %v877
    %v1168 = vpack.c.b16 %v888, %v883
    %v1169 = vpack.c.b16 %v889, %v884
    %v1170 = vpack.c.b16 %v890, %v885
    %v1171 = vpack.c.b16 %v891, %v886
    %v1172 = vpack.c.b16 %v892, %v887
    %v1173 = vpack.c.b16 %v898, %v893
    %v1174 = vpack.c.b16 %v899, %v894
    %v1175 = vpack.c.b16 %v900, %v895
    %v1176 = vpack.c.b16 %v901, %v896
    %v1177 = vpack.c.b16 %v902, %v897
    %v1178 = vpack.c.b16 %v908, %v903
    %v1179 = vpack.c.b16 %v909, %v904
    %v1180 = vpack.c.b16 %v910, %v905
    %v1181 = vpack.c.b16 %v911, %v906
    %v1182 = vpack.c.b16 %v912, %v907
    %v1183 = vpack.c.b16 %v918, %v913
    %v1184 = vpack.c.b16 %v919, %v914
    %v1185 = vpack.c.b16 %v920, %v915
    %v1186 = vpack.c.b16 %v921, %v916
    %v1187 = vpack.c.b16 %v922, %v917
    %v1188 = vpack.c.b16 %v928, %v923
    %v1189 = vpack.c.b16 %v929, %v924
    %v1190 = vpack.c.b16 %v930, %v925
    %v1191 = vpack.c.b16 %v931, %v926
    %v1192 = vpack.c.b16 %v932, %v927
    %v1193 = vpack.c.b16 %v938, %v933
    %v1194 = vpack.c.b16 %v939, %v934
    %v1195 = vpack.c.b16 %v940, %v935
    %v1196 = vpack.c.b16 %v941, %v936
    %v1197 = vpack.c.b16 %v942, %v937
    %v1198 = vpack.c.b16 %v948, %v943
    %v1199 = vpack.c.b16 %v949, %v944
    %v1200 = vpack.c.b16 %v950, %v945
    %v1201 = vpack.c.b16 %v951, %v946
    %v1202 = vpack.c.b16 %v952, %v947
    %v1203 = vpack.c.b16 %v958, %v953
    %v1204 = vpack.c.b16 %v959, %v954
    %v1205 = vpack.c.b16 %v960, %v955
    %v1206 = vpack.c.b16 %v961, %v956
    %v1207 = vpack.c.b16 %v962, %v957
    %v1208 = vpack.c.b16 %v968, %v963
    %v1209 = vpack.c.b16 %v969, %v964
    %v1210 = vpack.c.b16 %v970, %v965
    %v1211 = vpack.c.b16 %v971, %v966
    %v1212 = vpack.c.b16 %v972, %v967
    %v1213 = vpack.c.b16 %v978, %v973
    %v1214 = vpack.c.b16 %v979, %v974
    %v1215 = vpack.c.b16 %v980, %v975
    %v1216 = vpack.c.b16 %v981, %v976
    %v1217 = vpack.c.b16 %v982, %v977
    %v1218 = vpack.c.b16 %v988, %v983
    %v1219 = vpack.c.b16 %v989, %v984
    %v1220 = vpack.c.b16 %v990, %v985
    %v1221 = vpack.c.b16 %v991, %v986
    %v1222 = vpack.c.b16 %v992, %v987
    %v1223 = vpack.c.b16 %v998, %v993
    %v1224 = vpack.c.b16 %v999, %v994
    %v1225 = vpack.c.b16 %v1000, %v995
    %v1226 = vpack.c.b16 %v1001, %v996
    %v1227 = vpack.c.b16 %v1002, %v997
    %v1228 = vpack.c.b16 %v1008, %v1003
    %v1229 = vpack.c.b16 %v1009, %v1004
    %v1230 = vpack.c.b16 %v1010, %v1005
    %v1231 = vpack.c.b16 %v1011, %v1006
    %v1232 = vpack.c.b16 %v1012, %v1007
    %v1233 = vpack.c.b16 %v1018, %v1013
    %v1234 = vpack.c.b16 %v1019, %v1014
    %v1235 = vpack.c.b16 %v1020, %v1015
    %v1236 = vpack.c.b16 %v1021, %v1016
    %v1237 = vpack.c.b16 %v1022, %v1017
    %v1238 = vpack.c.b16 %v1028, %v1023
    %v1239 = vpack.c.b16 %v1029, %v1024
    %v1240 = vpack.c.b16 %v1030, %v1025
    %v1241 = vpack.c.b16 %v1031, %v1026
    %v1242 = vpack.c.b16 %v1032, %v1027
    %v1243 = vpack.c.b16 %v1038, %v1033
    %v1244 = vpack.c.b16 %v1039, %v1034
    %v1245 = vpack.c.b16 %v1040, %v1035
    %v1246 = vpack.c.b16 %v1041, %v1036
    %v1247 = vpack.c.b16 %v1042, %v1037
    %v1248 = vpack.c.b16 %v1048, %v1043
    %v1249 = vpack.c.b16 %v1049, %v1044
    %v1250 = vpack.c.b16 %v1050, %v1045
    %v1251 = vpack.c.b16 %v1051, %v1046
    %v1252 = vpack.c.b16 %v1052, %v1047
    %v1533 = vunpack.c.l.b16 %v326
    %v1534 = vunpack.c.l.b16 %v327
    %v1535 = vunpack.c.l.b16 %v328
    %v1536 = vunpack.c.l.b16 %v329
    %v1537 = vunpack.c.l.b16 %v330
    %v1538 = vunpack.c.l.b16 %v331
    %v1539 = vunpack.c.l.b16 %v332
    %v1540 = vunpack.c.l.b16 %v333
    %v1541 = vunpack.c.l.b16 %v334
    %v1542 = vunpack.c.l.b16 %v335
    %v1543 = vunpack.c.l.b16 %v336
    %v1544 = vunpack.c.l.b16 %v337
    %v1545 = vunpack.c.l.b16 %v338
    %v1546 = vunpack.c.l.b16 %v339
    %v1547 = vunpack.c.l.b16 %v340
    %v1548 = vunpack.c.l.b16 %v341
    %v1549 = vunpack.c.l.b16 %v342
    %v1550 = vunpack.c.l.b16 %v343
    %v1551 = vunpack.c.l.b16 %v344
    %v1552 = vunpack.c.l.b16 %v345
    %v1553 = vunpack.c.l.b16 %v346
    %v1554 = vunpack.c.l.b16 %v347
    %v1555 = vunpack.c.l.b16 %v348
    %v1556 = vunpack.c.l.b16 %v349
    %v1557 = vunpack.c.l.b16 %v350
    %v1558 = vunpack.c.l.b16 %v351
    %v1559 = vunpack.c.l.b16 %v352
    %v1560 = vunpack.c.l.b16 %v353
    %v1561 = vunpack.c.l.b16 %v354
    %v1562 = vunpack.c.l.b16 %v355
    %v1563 = vunpack.c.l.b16 %v356
    %v1564 = vunpack.c.l.b16 %v357
    %v1565 = vunpack.c.l.b16 %v358
    %v1566 = vunpack.c.l.b16 %v359
    %v1567 = vunpack.c.l.b16 %v360
    %v1568 = vunpack.c.l.b16 %v361
    %v1569 = vunpack.c.l.b16 %v362
    %v1570 = vunpack.c.l.b16 %v363
    %v1571 = vunpack.c.l.b16 %v364
    %v1572 = vunpack.c.l.b16 %v365
    %v1573 = vunpack.c.l.b16 %v366
    %v1574 = vunpack.c.l.b16 %v367
    %v1575 = vunpack.c.l.b16 %v368
    %v1576 = vunpack.c.l.b16 %v369
    %v1577 = vunpack.c.l.b16 %v370
    %v1578 = vunpack.c.l.b16 %v371
    %v1579 = vunpack.c.l.b16 %v372
    %v1580 = vunpack.c.l.b16 %v373
    %v1581 = vunpack.c.l.b16 %v374
    %v1582 = vunpack.c.l.b16 %v375
    %v1583 = vunpack.c.l.b16 %v376
    %v1584 = vunpack.c.l.b16 %v377
    %v1585 = vunpack.c.l.b16 %v378
    %v1586 = vunpack.c.l.b16 %v379
    %v1587 = vunpack.c.l.b16 %v380
    %v1588 = vunpack.c.l.b16 %v381
    %v1589 = vunpack.c.l.b16 %v382
    %v1590 = vunpack.c.l.b16 %v383
    %v1591 = vunpack.c.l.b16 %v384
    %v1592 = vunpack.c.l.b16 %v385
    %v1593 = vunpack.c.l.b16 %v386
    %v1594 = vunpack.c.l.b16 %v387
    %v1595 = vunpack.c.l.b16 %v388
    %v1596 = vunpack.c.l.b16 %v389
    %v1597 = vunpack.c.l.b16 %v390
    %v1598 = vunpack.c.l.b16 %v391
    %v1599 = vunpack.c.l.b16 %v392
    %v1600 = vunpack.c.l.b16 %v393
    %v1601 = vunpack.c.l.b16 %v394
    %v1602 = vunpack.c.l.b16 %v395
    %v1603 = vunpack.c.l.b16 %v396
    %v1604 = vunpack.c.l.b16 %v397
    %v1605 = vunpack.c.l.b16 %v398
    %v1606 = vunpack.c.l.b16 %v399
    %v1607 = vunpack.c.l.b16 %v400
    %v1608 = vunpack.c.l.b16 %v401
    %v1609 = vunpack.c.l.b16 %v402
    %v1610 = vunpack.c.l.b16 %v403
    %v1611 = vunpack.c.l.b16 %v404
    %v1612 = vunpack.c.l.b16 %v405
    %v1613 = vpack.c.b16 %v1534, %v1533
    %v1614 = vpack.c.b16 %v1536, %v1535
    %v1615 = vpack.c.b16 %v1538, %v1537
    %v1616 = vpack.c.b16 %v1540, %v1539
    %v1617 = vpack.c.b16 %v1542, %v1541
    %v1618 = vpack.c.b16 %v1544, %v1543
    %v1619 = vpack.c.b16 %v1546, %v1545
    %v1620 = vpack.c.b16 %v1548, %v1547
    %v1621 = vpack.c.b16 %v1550, %v1549
    %v1622 = vpack.c.b16 %v1552, %v1551
    %v1623 = vpack.c.b16 %v1554, %v1553
    %v1624 = vpack.c.b16 %v1556, %v1555
    %v1625 = vpack.c.b16 %v1558, %v1557
    %v1626 = vpack.c.b16 %v1560, %v1559
    %v1627 = vpack.c.b16 %v1562, %v1561
    %v1628 = vpack.c.b16 %v1564, %v1563
    %v1629 = vpack.c.b16 %v1566, %v1565
    %v1630 = vpack.c.b16 %v1568, %v1567
    %v1631 = vpack.c.b16 %v1570, %v1569
    %v1632 = vpack.c.b16 %v1572, %v1571
    %v1633 = vpack.c.b16 %v1574, %v1573
    %v1634 = vpack.c.b16 %v1576, %v1575
    %v1635 = vpack.c.b16 %v1578, %v1577
    %v1636 = vpack.c.b16 %v1580, %v1579
    %v1637 = vpack.c.b16 %v1582, %v1581
    %v1638 = vpack.c.b16 %v1584, %v1583
    %v1639 = vpack.c.b16 %v1586, %v1585
    %v1640 = vpack.c.b16 %v1588, %v1587
    %v1641 = vpack.c.b16 %v1590, %v1589
    %v1642 = vpack.c.b16 %v1592, %v1591
    %v1643 = vpack.c.b16 %v1594, %v1593
    %v1644 = vpack.c.b16 %v1596, %v1595
    %v1645 = vpack.c.b16 %v1598, %v1597
    %v1646 = vpack.c.b16 %v1600, %v1599
    %v1647 = vpack.c.b16 %v1602, %v1601
    %v1648 = vpack.c.b16 %v1604, %v1603
    %v1649 = vpack.c.b16 %v1606, %v1605
    %v1650 = vpack.c.b16 %v1608, %v1607
    %v1651 = vpack.c.b16 %v1610, %v1609
    %v1652 = vpack.c.b16 %v1612, %v1611
    %1693 = vmatprep.subr.bf16.mxu0 0
    %1694 = vmatpush1.bf16.msra.mxu0 %v1620
    %1695 = vmatprep.subr.bf16.mxu0 0
    %1696 = vmatpush1.bf16.msra.mxu0 %v1619
    %1697 = vmatprep.subr.bf16.mxu0 0
    %1698 = vmatpush1.bf16.msra.mxu0 %v1618
    %1699 = vmatprep.subr.bf16.mxu0 0
    %1700 = vmatpush1.bf16.msra.mxu0 %v1617
    %1701 = vmatprep.subr.bf16.mxu0 0
    %1702 = vmatpush1.bf16.msra.mxu0 %v1616
    %1703 = vmatprep.subr.bf16.mxu0 0
    %1704 = vmatpush1.bf16.msra.mxu0 %v1615
    %1705 = vmatprep.subr.bf16.mxu0 0
    %1706 = vmatpush1.bf16.msra.mxu0 %v1614
    %1707 = vmatprep.subr.bf16.mxu0 0
    %1708 = vmatpush1.bf16.msra.mxu0 %v1613
    %1709 = vmatprep.subr.bf16.mxu0 0
    %1710 = vmatpush2.bf16.msra.mxu0 %v1628
    %1711 = vmatprep.subr.bf16.mxu0 0
    %1712 = vmatpush2.bf16.msra.mxu0 %v1627
    %1713 = vmatprep.subr.bf16.mxu0 0
    %1714 = vmatpush2.bf16.msra.mxu0 %v1626
    %1715 = vmatprep.subr.bf16.mxu0 0
    %1716 = vmatpush2.bf16.msra.mxu0 %v1625
    %1717 = vmatprep.subr.bf16.mxu0 0
    %1718 = vmatpush2.bf16.msra.mxu0 %v1624
    %1719 = vmatprep.subr.bf16.mxu0 0
    %1720 = vmatpush2.bf16.msra.mxu0 %v1623
    %1721 = vmatprep.subr.bf16.mxu0 0
    %1722 = vmatpush2.bf16.msra.mxu0 %v1622
    %1723 = vmatprep.subr.bf16.mxu0 0
    %1724 = vmatpush2.bf16.msra.mxu0 %v1621
    %1725 = vmatprep.mubr.bf16.mxu0 %v1054
    %1726 = vmatmul.mubr.bf16.gmra.mxu0 %v1053
    %v1727 = vpop.f32.mrf.mxu0
    %v1728 = vadd.f32 %v411, %v1727
    %v1729 = vpop.f32.mrf.mxu0
    %v1730 = vpop.f32.mrf.mxu0
    %v1731 = vadd.f32 %v411, %v1730
    %v1732 = vpop.f32.mrf.mxu0
    %1733 = vmatprep.mubr.bf16.mxu0 %v1059
    %1734 = vmatmul.mubr.bf16.gmra.mxu0 %v1058
    %v1735 = vpop.f32.mrf.mxu0
    %v1736 = vadd.f32 %v411, %v1735
    %v1737 = vpop.f32.mrf.mxu0
    %v1738 = vpop.f32.mrf.mxu0
    %v1739 = vadd.f32 %v411, %v1738
    %v1740 = vpop.f32.mrf.mxu0
    %1741 = vmatprep.mubr.bf16.mxu0 %v1064
    %1742 = vmatmul.mubr.bf16.gmra.mxu0 %v1063
    %v1743 = vpop.f32.mrf.mxu0
    %v1744 = vadd.f32 %v411, %v1743
    %v1745 = vpop.f32.mrf.mxu0
    %v1746 = vpop.f32.mrf.mxu0
    %v1747 = vadd.f32 %v411, %v1746
    %v1748 = vpop.f32.mrf.mxu0
    %1749 = vmatprep.mubr.bf16.mxu0 %v1069
    %1750 = vmatmul.mubr.bf16.gmra.mxu0 %v1068
    %v1751 = vpop.f32.mrf.mxu0
    %v1752 = vadd.f32 %v411, %v1751
    %v1753 = vpop.f32.mrf.mxu0
    %v1754 = vpop.f32.mrf.mxu0
    %v1755 = vadd.f32 %v411, %v1754
    %v1756 = vpop.f32.mrf.mxu0
    %1757 = vmatprep.mubr.bf16.mxu0 %v1074
    %1758 = vmatmul.mubr.bf16.gmra.mxu0 %v1073
    %v1759 = vpop.f32.mrf.mxu0
    %v1760 = vadd.f32 %v411, %v1759
    %v1761 = vpop.f32.mrf.mxu0
    %v1762 = vpop.f32.mrf.mxu0
    %v1763 = vadd.f32 %v411, %v1762
    %v1764 = vpop.f32.mrf.mxu0
    %1765 = vmatprep.mubr.bf16.mxu0 %v1079
    %1766 = vmatmul.mubr.bf16.gmra.mxu0 %v1078
    %v1767 = vpop.f32.mrf.mxu0
    %v1768 = vadd.f32 %v411, %v1767
    %v1769 = vpop.f32.mrf.mxu0
    %v1770 = vpop.f32.mrf.mxu0
    %v1771 = vadd.f32 %v411, %v1770
    %v1772 = vpop.f32.mrf.mxu0
    %1773 = vmatprep.mubr.bf16.mxu0 %v1084
    %1774 = vmatmul.mubr.bf16.gmra.mxu0 %v1083
    %v1775 = vpop.f32.mrf.mxu0
    %v1776 = vadd.f32 %v411, %v1775
    %v1777 = vpop.f32.mrf.mxu0
    %v1778 = vpop.f32.mrf.mxu0
    %v1779 = vadd.f32 %v411, %v1778
    %v1780 = vpop.f32.mrf.mxu0
    %1781 = vmatprep.mubr.bf16.mxu0 %v1089
    %1782 = vmatmul.mubr.bf16.gmra.mxu0 %v1088
    %v1783 = vpop.f32.mrf.mxu0
    %v1784 = vadd.f32 %v411, %v1783
    %v1785 = vpop.f32.mrf.mxu0
    %v1786 = vpop.f32.mrf.mxu0
    %v1787 = vadd.f32 %v411, %v1786
    %v1788 = vpop.f32.mrf.mxu0
    %1789 = vmatprep.mubr.bf16.mxu0 %v1094
    %1790 = vmatmul.mubr.bf16.gmra.mxu0 %v1093
    %v1791 = vpop.f32.mrf.mxu0
    %v1792 = vadd.f32 %v411, %v1791
    %v1793 = vpop.f32.mrf.mxu0
    %v1794 = vpop.f32.mrf.mxu0
    %v1795 = vadd.f32 %v411, %v1794
    %v1796 = vpop.f32.mrf.mxu0
    %1797 = vmatprep.mubr.bf16.mxu0 %v1099
    %1798 = vmatmul.mubr.bf16.gmra.mxu0 %v1098
    %v1799 = vpop.f32.mrf.mxu0
    %v1800 = vadd.f32 %v411, %v1799
    %v1801 = vpop.f32.mrf.mxu0
    %v1802 = vpop.f32.mrf.mxu0
    %v1803 = vadd.f32 %v411, %v1802
    %v1804 = vpop.f32.mrf.mxu0
    %1805 = vmatprep.mubr.bf16.mxu0 %v1104
    %1806 = vmatmul.mubr.bf16.gmra.mxu0 %v1103
    %v1807 = vpop.f32.mrf.mxu0
    %v1808 = vadd.f32 %v411, %v1807
    %v1809 = vpop.f32.mrf.mxu0
    %v1810 = vpop.f32.mrf.mxu0
    %v1811 = vadd.f32 %v411, %v1810
    %v1812 = vpop.f32.mrf.mxu0
    %1813 = vmatprep.mubr.bf16.mxu0 %v1109
    %1814 = vmatmul.mubr.bf16.gmra.mxu0 %v1108
    %v1815 = vpop.f32.mrf.mxu0
    %v1816 = vadd.f32 %v411, %v1815
    %v1817 = vpop.f32.mrf.mxu0
    %v1818 = vpop.f32.mrf.mxu0
    %v1819 = vadd.f32 %v411, %v1818
    %v1820 = vpop.f32.mrf.mxu0
    %1821 = vmatprep.mubr.bf16.mxu0 %v1114
    %1822 = vmatmul.mubr.bf16.gmra.mxu0 %v1113
    %v1823 = vpop.f32.mrf.mxu0
    %v1824 = vadd.f32 %v411, %v1823
    %v1825 = vpop.f32.mrf.mxu0
    %v1826 = vpop.f32.mrf.mxu0
    %v1827 = vadd.f32 %v411, %v1826
    %v1828 = vpop.f32.mrf.mxu0
    %1829 = vmatprep.mubr.bf16.mxu0 %v1119
    %1830 = vmatmul.mubr.bf16.gmra.mxu0 %v1118
    %v1831 = vpop.f32.mrf.mxu0
    %v1832 = vadd.f32 %v411, %v1831
    %v1833 = vpop.f32.mrf.mxu0
    %v1834 = vpop.f32.mrf.mxu0
    %v1835 = vadd.f32 %v411, %v1834
    %v1836 = vpop.f32.mrf.mxu0
    %1837 = vmatprep.mubr.bf16.mxu0 %v1124
    %1838 = vmatmul.mubr.bf16.gmra.mxu0 %v1123
    %v1839 = vpop.f32.mrf.mxu0
    %v1840 = vadd.f32 %v411, %v1839
    %v1841 = vpop.f32.mrf.mxu0
    %v1842 = vpop.f32.mrf.mxu0
    %v1843 = vadd.f32 %v411, %v1842
    %v1844 = vpop.f32.mrf.mxu0
    %1845 = vmatprep.mubr.bf16.mxu0 %v1129
    %1846 = vmatmul.mubr.bf16.gmra.mxu0 %v1128
    %v1847 = vpop.f32.mrf.mxu0
    %v1848 = vadd.f32 %v411, %v1847
    %v1849 = vpop.f32.mrf.mxu0
    %v1850 = vpop.f32.mrf.mxu0
    %v1851 = vadd.f32 %v411, %v1850
    %v1852 = vpop.f32.mrf.mxu0
    %1853 = vmatprep.mubr.bf16.mxu0 %v1134
    %1854 = vmatmul.mubr.bf16.gmra.mxu0 %v1133
    %v1855 = vpop.f32.mrf.mxu0
    %v1856 = vadd.f32 %v411, %v1855
    %v1857 = vpop.f32.mrf.mxu0
    %v1858 = vpop.f32.mrf.mxu0
    %v1859 = vadd.f32 %v411, %v1858
    %v1860 = vpop.f32.mrf.mxu0
    %1861 = vmatprep.mubr.bf16.mxu0 %v1139
    %1862 = vmatmul.mubr.bf16.gmra.mxu0 %v1138
    %v1863 = vpop.f32.mrf.mxu0
    %v1864 = vadd.f32 %v411, %v1863
    %v1865 = vpop.f32.mrf.mxu0
    %v1866 = vpop.f32.mrf.mxu0
    %v1867 = vadd.f32 %v411, %v1866
    %v1868 = vpop.f32.mrf.mxu0
    %1869 = vmatprep.mubr.bf16.mxu0 %v1144
    %1870 = vmatmul.mubr.bf16.gmra.mxu0 %v1143
    %v1871 = vpop.f32.mrf.mxu0
    %v1872 = vadd.f32 %v411, %v1871
    %v1873 = vpop.f32.mrf.mxu0
    %v1874 = vpop.f32.mrf.mxu0
    %v1875 = vadd.f32 %v411, %v1874
    %v1876 = vpop.f32.mrf.mxu0
    %1877 = vmatprep.mubr.bf16.mxu0 %v1149
    %1878 = vmatmul.mubr.bf16.gmra.mxu0 %v1148
    %v1879 = vpop.f32.mrf.mxu0
    %v1880 = vadd.f32 %v411, %v1879
    %v1881 = vpop.f32.mrf.mxu0
    %v1882 = vpop.f32.mrf.mxu0
    %v1883 = vadd.f32 %v411, %v1882
    %v1884 = vpop.f32.mrf.mxu0
    %1885 = vmatprep.mubr.bf16.mxu0 %v1154
    %1886 = vmatmul.mubr.bf16.gmra.mxu0 %v1153
    %v1887 = vpop.f32.mrf.mxu0
    %v1888 = vadd.f32 %v411, %v1887
    %v1889 = vpop.f32.mrf.mxu0
    %v1890 = vpop.f32.mrf.mxu0
    %v1891 = vadd.f32 %v411, %v1890
    %v1892 = vpop.f32.mrf.mxu0
    %1893 = vmatprep.mubr.bf16.mxu0 %v1159
    %1894 = vmatmul.mubr.bf16.gmra.mxu0 %v1158
    %v1895 = vpop.f32.mrf.mxu0
    %v1896 = vadd.f32 %v411, %v1895
    %v1897 = vpop.f32.mrf.mxu0
    %v1898 = vpop.f32.mrf.mxu0
    %v1899 = vadd.f32 %v411, %v1898
    %v1900 = vpop.f32.mrf.mxu0
    %1901 = vmatprep.mubr.bf16.mxu0 %v1164
    %1902 = vmatmul.mubr.bf16.gmra.mxu0 %v1163
    %v1903 = vpop.f32.mrf.mxu0
    %v1904 = vadd.f32 %v411, %v1903
    %v1905 = vpop.f32.mrf.mxu0
    %v1906 = vpop.f32.mrf.mxu0
    %v1907 = vadd.f32 %v411, %v1906
    %v1908 = vpop.f32.mrf.mxu0
    %1909 = vmatprep.mubr.bf16.mxu0 %v1169
    %1910 = vmatmul.mubr.bf16.gmra.mxu0 %v1168
    %v1911 = vpop.f32.mrf.mxu0
    %v1912 = vadd.f32 %v411, %v1911
    %v1913 = vpop.f32.mrf.mxu0
    %v1914 = vpop.f32.mrf.mxu0
    %v1915 = vadd.f32 %v411, %v1914
    %v1916 = vpop.f32.mrf.mxu0
    %1917 = vmatprep.mubr.bf16.mxu0 %v1174
    %1918 = vmatmul.mubr.bf16.gmra.mxu0 %v1173
    %v1919 = vpop.f32.mrf.mxu0
    %v1920 = vadd.f32 %v411, %v1919
    %v1921 = vpop.f32.mrf.mxu0
    %v1922 = vpop.f32.mrf.mxu0
    %v1923 = vadd.f32 %v411, %v1922
    %v1924 = vpop.f32.mrf.mxu0
    %1925 = vmatprep.mubr.bf16.mxu0 %v1179
    %1926 = vmatmul.mubr.bf16.gmra.mxu0 %v1178
    %v1927 = vpop.f32.mrf.mxu0
    %v1928 = vadd.f32 %v411, %v1927
    %v1929 = vpop.f32.mrf.mxu0
    %v1930 = vpop.f32.mrf.mxu0
    %v1931 = vadd.f32 %v411, %v1930
    %v1932 = vpop.f32.mrf.mxu0
    %1933 = vmatprep.mubr.bf16.mxu0 %v1184
    %1934 = vmatmul.mubr.bf16.gmra.mxu0 %v1183
    %v1935 = vpop.f32.mrf.mxu0
    %v1936 = vadd.f32 %v411, %v1935
    %v1937 = vpop.f32.mrf.mxu0
    %v1938 = vpop.f32.mrf.mxu0
    %v1939 = vadd.f32 %v411, %v1938
    %v1940 = vpop.f32.mrf.mxu0
    %1941 = vmatprep.mubr.bf16.mxu0 %v1189
    %1942 = vmatmul.mubr.bf16.gmra.mxu0 %v1188
    %v1943 = vpop.f32.mrf.mxu0
    %v1944 = vadd.f32 %v411, %v1943
    %v1945 = vpop.f32.mrf.mxu0
    %v1946 = vpop.f32.mrf.mxu0
    %v1947 = vadd.f32 %v411, %v1946
    %v1948 = vpop.f32.mrf.mxu0
    %1949 = vmatprep.mubr.bf16.mxu0 %v1194
    %1950 = vmatmul.mubr.bf16.gmra.mxu0 %v1193
    %v1951 = vpop.f32.mrf.mxu0
    %v1952 = vadd.f32 %v411, %v1951
    %v1953 = vpop.f32.mrf.mxu0
    %v1954 = vpop.f32.mrf.mxu0
    %v1955 = vadd.f32 %v411, %v1954
    %v1956 = vpop.f32.mrf.mxu0
    %1957 = vmatprep.mubr.bf16.mxu0 %v1199
    %1958 = vmatmul.mubr.bf16.gmra.mxu0 %v1198
    %v1959 = vpop.f32.mrf.mxu0
    %v1960 = vadd.f32 %v411, %v1959
    %v1961 = vpop.f32.mrf.mxu0
    %v1962 = vpop.f32.mrf.mxu0
    %v1963 = vadd.f32 %v411, %v1962
    %v1964 = vpop.f32.mrf.mxu0
    %1965 = vmatprep.mubr.bf16.mxu0 %v1204
    %1966 = vmatmul.mubr.bf16.gmra.mxu0 %v1203
    %v1967 = vpop.f32.mrf.mxu0
    %v1968 = vadd.f32 %v411, %v1967
    %v1969 = vpop.f32.mrf.mxu0
    %v1970 = vpop.f32.mrf.mxu0
    %v1971 = vadd.f32 %v411, %v1970
    %v1972 = vpop.f32.mrf.mxu0
    %1973 = vmatprep.mubr.bf16.mxu0 %v1209
    %1974 = vmatmul.mubr.bf16.gmra.mxu0 %v1208
    %v1975 = vpop.f32.mrf.mxu0
    %v1976 = vadd.f32 %v411, %v1975
    %v1977 = vpop.f32.mrf.mxu0
    %v1978 = vpop.f32.mrf.mxu0
    %v1979 = vadd.f32 %v411, %v1978
    %v1980 = vpop.f32.mrf.mxu0
    %1981 = vmatprep.mubr.bf16.mxu0 %v1214
    %1982 = vmatmul.mubr.bf16.gmra.mxu0 %v1213
    %v1983 = vpop.f32.mrf.mxu0
    %v1984 = vadd.f32 %v411, %v1983
    %v1985 = vpop.f32.mrf.mxu0
    %v1986 = vpop.f32.mrf.mxu0
    %v1987 = vadd.f32 %v411, %v1986
    %v1988 = vpop.f32.mrf.mxu0
    %1989 = vmatprep.mubr.bf16.mxu0 %v1219
    %1990 = vmatmul.mubr.bf16.gmra.mxu0 %v1218
    %v1991 = vpop.f32.mrf.mxu0
    %v1992 = vadd.f32 %v411, %v1991
    %v1993 = vpop.f32.mrf.mxu0
    %v1994 = vpop.f32.mrf.mxu0
    %v1995 = vadd.f32 %v411, %v1994
    %v1996 = vpop.f32.mrf.mxu0
    %1997 = vmatprep.mubr.bf16.mxu0 %v1224
    %1998 = vmatmul.mubr.bf16.gmra.mxu0 %v1223
    %v1999 = vpop.f32.mrf.mxu0
    %v2000 = vadd.f32 %v411, %v1999
    %v2001 = vpop.f32.mrf.mxu0
    %v2002 = vpop.f32.mrf.mxu0
    %v2003 = vadd.f32 %v411, %v2002
    %v2004 = vpop.f32.mrf.mxu0
    %2005 = vmatprep.mubr.bf16.mxu0 %v1229
    %2006 = vmatmul.mubr.bf16.gmra.mxu0 %v1228
    %v2007 = vpop.f32.mrf.mxu0
    %v2008 = vadd.f32 %v411, %v2007
    %v2009 = vpop.f32.mrf.mxu0
    %v2010 = vpop.f32.mrf.mxu0
    %v2011 = vadd.f32 %v411, %v2010
    %v2012 = vpop.f32.mrf.mxu0
    %2013 = vmatprep.mubr.bf16.mxu0 %v1234
    %2014 = vmatmul.mubr.bf16.gmra.mxu0 %v1233
    %v2015 = vpop.f32.mrf.mxu0
    %v2016 = vadd.f32 %v411, %v2015
    %v2017 = vpop.f32.mrf.mxu0
    %v2018 = vpop.f32.mrf.mxu0
    %v2019 = vadd.f32 %v411, %v2018
    %v2020 = vpop.f32.mrf.mxu0
    %2021 = vmatprep.mubr.bf16.mxu0 %v1239
    %2022 = vmatmul.mubr.bf16.gmra.mxu0 %v1238
    %v2023 = vpop.f32.mrf.mxu0
    %v2024 = vadd.f32 %v411, %v2023
    %v2025 = vpop.f32.mrf.mxu0
    %v2026 = vpop.f32.mrf.mxu0
    %v2027 = vadd.f32 %v411, %v2026
    %v2028 = vpop.f32.mrf.mxu0
    %2029 = vmatprep.mubr.bf16.mxu0 %v1244
    %2030 = vmatmul.mubr.bf16.gmra.mxu0 %v1243
    %v2031 = vpop.f32.mrf.mxu0
    %v2032 = vadd.f32 %v411, %v2031
    %v2033 = vpop.f32.mrf.mxu0
    %v2034 = vpop.f32.mrf.mxu0
    %v2035 = vadd.f32 %v411, %v2034
    %v2036 = vpop.f32.mrf.mxu0
    %2037 = vmatprep.mubr.bf16.mxu0 %v1249
    %2038 = vmatmul.mubr.bf16.gmra.mxu0 %v1248
    %v2039 = vpop.f32.mrf.mxu0
    %v2040 = vadd.f32 %v411, %v2039
    %v2041 = vpop.f32.mrf.mxu0
    %v2042 = vpop.f32.mrf.mxu0
    %v2043 = vadd.f32 %v411, %v2042
    %v2044 = vpop.f32.mrf.mxu0
    %2045 = vdwg.mxu0
    %2046 = vmatprep.subr.bf16.mxu0 0
    %2047 = vmatpush1.bf16.msra.mxu0 %v1636
    %2048 = vmatprep.subr.bf16.mxu0 0
    %2049 = vmatpush1.bf16.msra.mxu0 %v1635
    %2050 = vmatprep.subr.bf16.mxu0 0
    %2051 = vmatpush1.bf16.msra.mxu0 %v1634
    %2052 = vmatprep.subr.bf16.mxu0 0
    %2053 = vmatpush1.bf16.msra.mxu0 %v1633
    %2054 = vmatprep.subr.bf16.mxu0 0
    %2055 = vmatpush1.bf16.msra.mxu0 %v1632
    %2056 = vmatprep.subr.bf16.mxu0 0
    %2057 = vmatpush1.bf16.msra.mxu0 %v1631
    %2058 = vmatprep.subr.bf16.mxu0 0
    %2059 = vmatpush1.bf16.msra.mxu0 %v1630
    %2060 = vmatprep.subr.bf16.mxu0 0
    %2061 = vmatpush1.bf16.msra.mxu0 %v1629
    %2062 = vmatprep.subr.bf16.mxu0 0
    %2063 = vmatpush2.bf16.msra.mxu0 %v1644
    %2064 = vmatprep.subr.bf16.mxu0 0
    %2065 = vmatpush2.bf16.msra.mxu0 %v1643
    %2066 = vmatprep.subr.bf16.mxu0 0
    %2067 = vmatpush2.bf16.msra.mxu0 %v1642
    %2068 = vmatprep.subr.bf16.mxu0 0
    %2069 = vmatpush2.bf16.msra.mxu0 %v1641
    %2070 = vmatprep.subr.bf16.mxu0 0
    %2071 = vmatpush2.bf16.msra.mxu0 %v1640
    %2072 = vmatprep.subr.bf16.mxu0 0
    %2073 = vmatpush2.bf16.msra.mxu0 %v1639
    %2074 = vmatprep.subr.bf16.mxu0 0
    %2075 = vmatpush2.bf16.msra.mxu0 %v1638
    %2076 = vmatprep.subr.bf16.mxu0 0
    %2077 = vmatpush2.bf16.msra.mxu0 %v1637
    %2078 = vmatprep.mubr.bf16.mxu0 %v1056
    %2079 = vmatmul.mubr.bf16.gmra.mxu0 %v1055
    %v2080 = vpop.f32.mrf.mxu0
    %v2081 = vadd.f32 %v1728, %v2080
    %v2082 = vpop.f32.mrf.mxu0
    %v2083 = vpop.f32.mrf.mxu0
    %v2084 = vadd.f32 %v1731, %v2083
    %v2085 = vpop.f32.mrf.mxu0
    %2086 = vmatprep.mubr.bf16.mxu0 %v1061
    %2087 = vmatmul.mubr.bf16.gmra.mxu0 %v1060
    %v2088 = vpop.f32.mrf.mxu0
    %v2089 = vadd.f32 %v1736, %v2088
    %v2090 = vpop.f32.mrf.mxu0
    %v2091 = vpop.f32.mrf.mxu0
    %v2092 = vadd.f32 %v1739, %v2091
    %v2093 = vpop.f32.mrf.mxu0
    %2094 = vmatprep.mubr.bf16.mxu0 %v1066
    %2095 = vmatmul.mubr.bf16.gmra.mxu0 %v1065
    %v2096 = vpop.f32.mrf.mxu0
    %v2097 = vadd.f32 %v1744, %v2096
    %v2098 = vpop.f32.mrf.mxu0
    %v2099 = vpop.f32.mrf.mxu0
    %v2100 = vadd.f32 %v1747, %v2099
    %v2101 = vpop.f32.mrf.mxu0
    %2102 = vmatprep.mubr.bf16.mxu0 %v1071
    %2103 = vmatmul.mubr.bf16.gmra.mxu0 %v1070
    %v2104 = vpop.f32.mrf.mxu0
    %v2105 = vadd.f32 %v1752, %v2104
    %v2106 = vpop.f32.mrf.mxu0
    %v2107 = vpop.f32.mrf.mxu0
    %v2108 = vadd.f32 %v1755, %v2107
    %v2109 = vpop.f32.mrf.mxu0
    %2110 = vmatprep.mubr.bf16.mxu0 %v1076
    %2111 = vmatmul.mubr.bf16.gmra.mxu0 %v1075
    %v2112 = vpop.f32.mrf.mxu0
    %v2113 = vadd.f32 %v1760, %v2112
    %v2114 = vpop.f32.mrf.mxu0
    %v2115 = vpop.f32.mrf.mxu0
    %v2116 = vadd.f32 %v1763, %v2115
    %v2117 = vpop.f32.mrf.mxu0
    %2118 = vmatprep.mubr.bf16.mxu0 %v1081
    %2119 = vmatmul.mubr.bf16.gmra.mxu0 %v1080
    %v2120 = vpop.f32.mrf.mxu0
    %v2121 = vadd.f32 %v1768, %v2120
    %v2122 = vpop.f32.mrf.mxu0
    %v2123 = vpop.f32.mrf.mxu0
    %v2124 = vadd.f32 %v1771, %v2123
    %v2125 = vpop.f32.mrf.mxu0
    %2126 = vmatprep.mubr.bf16.mxu0 %v1086
    %2127 = vmatmul.mubr.bf16.gmra.mxu0 %v1085
    %v2128 = vpop.f32.mrf.mxu0
    %v2129 = vadd.f32 %v1776, %v2128
    %v2130 = vpop.f32.mrf.mxu0
    %v2131 = vpop.f32.mrf.mxu0
    %v2132 = vadd.f32 %v1779, %v2131
    %v2133 = vpop.f32.mrf.mxu0
    %2134 = vmatprep.mubr.bf16.mxu0 %v1091
    %2135 = vmatmul.mubr.bf16.gmra.mxu0 %v1090
    %v2136 = vpop.f32.mrf.mxu0
    %v2137 = vadd.f32 %v1784, %v2136
    %v2138 = vpop.f32.mrf.mxu0
    %v2139 = vpop.f32.mrf.mxu0
    %v2140 = vadd.f32 %v1787, %v2139
    %v2141 = vpop.f32.mrf.mxu0
    %2142 = vmatprep.mubr.bf16.mxu0 %v1096
    %2143 = vmatmul.mubr.bf16.gmra.mxu0 %v1095
    %v2144 = vpop.f32.mrf.mxu0
    %v2145 = vadd.f32 %v1792, %v2144
    %v2146 = vpop.f32.mrf.mxu0
    %v2147 = vpop.f32.mrf.mxu0
    %v2148 = vadd.f32 %v1795, %v2147
    %v2149 = vpop.f32.mrf.mxu0
    %2150 = vmatprep.mubr.bf16.mxu0 %v1101
    %2151 = vmatmul.mubr.bf16.gmra.mxu0 %v1100
    %v2152 = vpop.f32.mrf.mxu0
    %v2153 = vadd.f32 %v1800, %v2152
    %v2154 = vpop.f32.mrf.mxu0
    %v2155 = vpop.f32.mrf.mxu0
    %v2156 = vadd.f32 %v1803, %v2155
    %v2157 = vpop.f32.mrf.mxu0
    %2158 = vmatprep.mubr.bf16.mxu0 %v1106
    %2159 = vmatmul.mubr.bf16.gmra.mxu0 %v1105
    %v2160 = vpop.f32.mrf.mxu0
    %v2161 = vadd.f32 %v1808, %v2160
    %v2162 = vpop.f32.mrf.mxu0
    %v2163 = vpop.f32.mrf.mxu0
    %v2164 = vadd.f32 %v1811, %v2163
    %v2165 = vpop.f32.mrf.mxu0
    %2166 = vmatprep.mubr.bf16.mxu0 %v1111
    %2167 = vmatmul.mubr.bf16.gmra.mxu0 %v1110
    %v2168 = vpop.f32.mrf.mxu0
    %v2169 = vadd.f32 %v1816, %v2168
    %v2170 = vpop.f32.mrf.mxu0
    %v2171 = vpop.f32.mrf.mxu0
    %v2172 = vadd.f32 %v1819, %v2171
    %v2173 = vpop.f32.mrf.mxu0
    %2174 = vmatprep.mubr.bf16.mxu0 %v1116
    %2175 = vmatmul.mubr.bf16.gmra.mxu0 %v1115
    %v2176 = vpop.f32.mrf.mxu0
    %v2177 = vadd.f32 %v1824, %v2176
    %v2178 = vpop.f32.mrf.mxu0
    %v2179 = vpop.f32.mrf.mxu0
    %v2180 = vadd.f32 %v1827, %v2179
    %v2181 = vpop.f32.mrf.mxu0
    %2182 = vmatprep.mubr.bf16.mxu0 %v1121
    %2183 = vmatmul.mubr.bf16.gmra.mxu0 %v1120
    %v2184 = vpop.f32.mrf.mxu0
    %v2185 = vadd.f32 %v1832, %v2184
    %v2186 = vpop.f32.mrf.mxu0
    %v2187 = vpop.f32.mrf.mxu0
    %v2188 = vadd.f32 %v1835, %v2187
    %v2189 = vpop.f32.mrf.mxu0
    %2190 = vmatprep.mubr.bf16.mxu0 %v1126
    %2191 = vmatmul.mubr.bf16.gmra.mxu0 %v1125
    %v2192 = vpop.f32.mrf.mxu0
    %v2193 = vadd.f32 %v1840, %v2192
    %v2194 = vpop.f32.mrf.mxu0
    %v2195 = vpop.f32.mrf.mxu0
    %v2196 = vadd.f32 %v1843, %v2195
    %v2197 = vpop.f32.mrf.mxu0
    %2198 = vmatprep.mubr.bf16.mxu0 %v1131
    %2199 = vmatmul.mubr.bf16.gmra.mxu0 %v1130
    %v2200 = vpop.f32.mrf.mxu0
    %v2201 = vadd.f32 %v1848, %v2200
    %v2202 = vpop.f32.mrf.mxu0
    %v2203 = vpop.f32.mrf.mxu0
    %v2204 = vadd.f32 %v1851, %v2203
    %v2205 = vpop.f32.mrf.mxu0
    %2206 = vmatprep.mubr.bf16.mxu0 %v1136
    %2207 = vmatmul.mubr.bf16.gmra.mxu0 %v1135
    %v2208 = vpop.f32.mrf.mxu0
    %v2209 = vadd.f32 %v1856, %v2208
    %v2210 = vpop.f32.mrf.mxu0
    %v2211 = vpop.f32.mrf.mxu0
    %v2212 = vadd.f32 %v1859, %v2211
    %v2213 = vpop.f32.mrf.mxu0
    %2214 = vmatprep.mubr.bf16.mxu0 %v1141
    %2215 = vmatmul.mubr.bf16.gmra.mxu0 %v1140
    %v2216 = vpop.f32.mrf.mxu0
    %v2217 = vadd.f32 %v1864, %v2216
    %v2218 = vpop.f32.mrf.mxu0
    %v2219 = vpop.f32.mrf.mxu0
    %v2220 = vadd.f32 %v1867, %v2219
    %v2221 = vpop.f32.mrf.mxu0
    %2222 = vmatprep.mubr.bf16.mxu0 %v1146
    %2223 = vmatmul.mubr.bf16.gmra.mxu0 %v1145
    %v2224 = vpop.f32.mrf.mxu0
    %v2225 = vadd.f32 %v1872, %v2224
    %v2226 = vpop.f32.mrf.mxu0
    %v2227 = vpop.f32.mrf.mxu0
    %v2228 = vadd.f32 %v1875, %v2227
    %v2229 = vpop.f32.mrf.mxu0
    %2230 = vmatprep.mubr.bf16.mxu0 %v1151
    %2231 = vmatmul.mubr.bf16.gmra.mxu0 %v1150
    %v2232 = vpop.f32.mrf.mxu0
    %v2233 = vadd.f32 %v1880, %v2232
    %v2234 = vpop.f32.mrf.mxu0
    %v2235 = vpop.f32.mrf.mxu0
    %v2236 = vadd.f32 %v1883, %v2235
    %v2237 = vpop.f32.mrf.mxu0
    %2238 = vmatprep.mubr.bf16.mxu0 %v1156
    %2239 = vmatmul.mubr.bf16.gmra.mxu0 %v1155
    %v2240 = vpop.f32.mrf.mxu0
    %v2241 = vadd.f32 %v1888, %v2240
    %v2242 = vpop.f32.mrf.mxu0
    %v2243 = vpop.f32.mrf.mxu0
    %v2244 = vadd.f32 %v1891, %v2243
    %v2245 = vpop.f32.mrf.mxu0
    %2246 = vmatprep.mubr.bf16.mxu0 %v1161
    %2247 = vmatmul.mubr.bf16.gmra.mxu0 %v1160
    %v2248 = vpop.f32.mrf.mxu0
    %v2249 = vadd.f32 %v1896, %v2248
    %v2250 = vpop.f32.mrf.mxu0
    %v2251 = vpop.f32.mrf.mxu0
    %v2252 = vadd.f32 %v1899, %v2251
    %v2253 = vpop.f32.mrf.mxu0
    %2254 = vmatprep.mubr.bf16.mxu0 %v1166
    %2255 = vmatmul.mubr.bf16.gmra.mxu0 %v1165
    %v2256 = vpop.f32.mrf.mxu0
    %v2257 = vadd.f32 %v1904, %v2256
    %v2258 = vpop.f32.mrf.mxu0
    %v2259 = vpop.f32.mrf.mxu0
    %v2260 = vadd.f32 %v1907, %v2259
    %v2261 = vpop.f32.mrf.mxu0
    %2262 = vmatprep.mubr.bf16.mxu0 %v1171
    %2263 = vmatmul.mubr.bf16.gmra.mxu0 %v1170
    %v2264 = vpop.f32.mrf.mxu0
    %v2265 = vadd.f32 %v1912, %v2264
    %v2266 = vpop.f32.mrf.mxu0
    %v2267 = vpop.f32.mrf.mxu0
    %v2268 = vadd.f32 %v1915, %v2267
    %v2269 = vpop.f32.mrf.mxu0
    %2270 = vmatprep.mubr.bf16.mxu0 %v1176
    %2271 = vmatmul.mubr.bf16.gmra.mxu0 %v1175
    %v2272 = vpop.f32.mrf.mxu0
    %v2273 = vadd.f32 %v1920, %v2272
    %v2274 = vpop.f32.mrf.mxu0
    %v2275 = vpop.f32.mrf.mxu0
    %v2276 = vadd.f32 %v1923, %v2275
    %v2277 = vpop.f32.mrf.mxu0
    %2278 = vmatprep.mubr.bf16.mxu0 %v1181
    %2279 = vmatmul.mubr.bf16.gmra.mxu0 %v1180
    %v2280 = vpop.f32.mrf.mxu0
    %v2281 = vadd.f32 %v1928, %v2280
    %v2282 = vpop.f32.mrf.mxu0
    %v2283 = vpop.f32.mrf.mxu0
    %v2284 = vadd.f32 %v1931, %v2283
    %v2285 = vpop.f32.mrf.mxu0
    %2286 = vmatprep.mubr.bf16.mxu0 %v1186
    %2287 = vmatmul.mubr.bf16.gmra.mxu0 %v1185
    %v2288 = vpop.f32.mrf.mxu0
    %v2289 = vadd.f32 %v1936, %v2288
    %v2290 = vpop.f32.mrf.mxu0
    %v2291 = vpop.f32.mrf.mxu0
    %v2292 = vadd.f32 %v1939, %v2291
    %v2293 = vpop.f32.mrf.mxu0
    %2294 = vmatprep.mubr.bf16.mxu0 %v1191
    %2295 = vmatmul.mubr.bf16.gmra.mxu0 %v1190
    %v2296 = vpop.f32.mrf.mxu0
    %v2297 = vadd.f32 %v1944, %v2296
    %v2298 = vpop.f32.mrf.mxu0
    %v2299 = vpop.f32.mrf.mxu0
    %v2300 = vadd.f32 %v1947, %v2299
    %v2301 = vpop.f32.mrf.mxu0
    %2302 = vmatprep.mubr.bf16.mxu0 %v1196
    %2303 = vmatmul.mubr.bf16.gmra.mxu0 %v1195
    %v2304 = vpop.f32.mrf.mxu0
    %v2305 = vadd.f32 %v1952, %v2304
    %v2306 = vpop.f32.mrf.mxu0
    %v2307 = vpop.f32.mrf.mxu0
    %v2308 = vadd.f32 %v1955, %v2307
    %v2309 = vpop.f32.mrf.mxu0
    %2310 = vmatprep.mubr.bf16.mxu0 %v1201
    %2311 = vmatmul.mubr.bf16.gmra.mxu0 %v1200
    %v2312 = vpop.f32.mrf.mxu0
    %v2313 = vadd.f32 %v1960, %v2312
    %v2314 = vpop.f32.mrf.mxu0
    %v2315 = vpop.f32.mrf.mxu0
    %v2316 = vadd.f32 %v1963, %v2315
    %v2317 = vpop.f32.mrf.mxu0
    %2318 = vmatprep.mubr.bf16.mxu0 %v1206
    %2319 = vmatmul.mubr.bf16.gmra.mxu0 %v1205
    %v2320 = vpop.f32.mrf.mxu0
    %v2321 = vadd.f32 %v1968, %v2320
    %v2322 = vpop.f32.mrf.mxu0
    %v2323 = vpop.f32.mrf.mxu0
    %v2324 = vadd.f32 %v1971, %v2323
    %v2325 = vpop.f32.mrf.mxu0
    %2326 = vmatprep.mubr.bf16.mxu0 %v1211
    %2327 = vmatmul.mubr.bf16.gmra.mxu0 %v1210
    %v2328 = vpop.f32.mrf.mxu0
    %v2329 = vadd.f32 %v1976, %v2328
    %v2330 = vpop.f32.mrf.mxu0
    %v2331 = vpop.f32.mrf.mxu0
    %v2332 = vadd.f32 %v1979, %v2331
    %v2333 = vpop.f32.mrf.mxu0
    %2334 = vmatprep.mubr.bf16.mxu0 %v1216
    %2335 = vmatmul.mubr.bf16.gmra.mxu0 %v1215
    %v2336 = vpop.f32.mrf.mxu0
    %v2337 = vadd.f32 %v1984, %v2336
    %v2338 = vpop.f32.mrf.mxu0
    %v2339 = vpop.f32.mrf.mxu0
    %v2340 = vadd.f32 %v1987, %v2339
    %v2341 = vpop.f32.mrf.mxu0
    %2342 = vmatprep.mubr.bf16.mxu0 %v1221
    %2343 = vmatmul.mubr.bf16.gmra.mxu0 %v1220
    %v2344 = vpop.f32.mrf.mxu0
    %v2345 = vadd.f32 %v1992, %v2344
    %v2346 = vpop.f32.mrf.mxu0
    %v2347 = vpop.f32.mrf.mxu0
    %v2348 = vadd.f32 %v1995, %v2347
    %v2349 = vpop.f32.mrf.mxu0
    %2350 = vmatprep.mubr.bf16.mxu0 %v1226
    %2351 = vmatmul.mubr.bf16.gmra.mxu0 %v1225
    %v2352 = vpop.f32.mrf.mxu0
    %v2353 = vadd.f32 %v2000, %v2352
    %v2354 = vpop.f32.mrf.mxu0
    %v2355 = vpop.f32.mrf.mxu0
    %v2356 = vadd.f32 %v2003, %v2355
    %v2357 = vpop.f32.mrf.mxu0
    %2358 = vmatprep.mubr.bf16.mxu0 %v1231
    %2359 = vmatmul.mubr.bf16.gmra.mxu0 %v1230
    %v2360 = vpop.f32.mrf.mxu0
    %v2361 = vadd.f32 %v2008, %v2360
    %v2362 = vpop.f32.mrf.mxu0
    %v2363 = vpop.f32.mrf.mxu0
    %v2364 = vadd.f32 %v2011, %v2363
    %v2365 = vpop.f32.mrf.mxu0
    %2366 = vmatprep.mubr.bf16.mxu0 %v1236
    %2367 = vmatmul.mubr.bf16.gmra.mxu0 %v1235
    %v2368 = vpop.f32.mrf.mxu0
    %v2369 = vadd.f32 %v2016, %v2368
    %v2370 = vpop.f32.mrf.mxu0
    %v2371 = vpop.f32.mrf.mxu0
    %v2372 = vadd.f32 %v2019, %v2371
    %v2373 = vpop.f32.mrf.mxu0
    %2374 = vmatprep.mubr.bf16.mxu0 %v1241
    %2375 = vmatmul.mubr.bf16.gmra.mxu0 %v1240
    %v2376 = vpop.f32.mrf.mxu0
    %v2377 = vadd.f32 %v2024, %v2376
    %v2378 = vpop.f32.mrf.mxu0
    %v2379 = vpop.f32.mrf.mxu0
    %v2380 = vadd.f32 %v2027, %v2379
    %v2381 = vpop.f32.mrf.mxu0
    %2382 = vmatprep.mubr.bf16.mxu0 %v1246
    %2383 = vmatmul.mubr.bf16.gmra.mxu0 %v1245
    %v2384 = vpop.f32.mrf.mxu0
    %v2385 = vadd.f32 %v2032, %v2384
    %v2386 = vpop.f32.mrf.mxu0
    %v2387 = vpop.f32.mrf.mxu0
    %v2388 = vadd.f32 %v2035, %v2387
    %v2389 = vpop.f32.mrf.mxu0
    %2390 = vmatprep.mubr.bf16.mxu0 %v1251
    %2391 = vmatmul.mubr.bf16.gmra.mxu0 %v1250
    %v2392 = vpop.f32.mrf.mxu0
    %v2393 = vadd.f32 %v2040, %v2392
    %v2394 = vpop.f32.mrf.mxu0
    %v2395 = vpop.f32.mrf.mxu0
    %v2396 = vadd.f32 %v2043, %v2395
    %v2397 = vpop.f32.mrf.mxu0
    %2398 = vdwg.mxu0
    %2399 = vmatprep.subr.bf16.mxu0 0
    %2400 = vmatpush1.bf16.msra.mxu0 %v1652
    %2401 = vmatprep.subr.bf16.mxu0 0
    %2402 = vmatpush1.bf16.msra.mxu0 %v1651
    %2403 = vmatprep.subr.bf16.mxu0 0
    %2404 = vmatpush1.bf16.msra.mxu0 %v1650
    %2405 = vmatprep.subr.bf16.mxu0 0
    %2406 = vmatpush1.bf16.msra.mxu0 %v1649
    %2407 = vmatprep.subr.bf16.mxu0 0
    %2408 = vmatpush1.bf16.msra.mxu0 %v1648
    %2409 = vmatprep.subr.bf16.mxu0 0
    %2410 = vmatpush1.bf16.msra.mxu0 %v1647
    %2411 = vmatprep.subr.bf16.mxu0 0
    %2412 = vmatpush1.bf16.msra.mxu0 %v1646
    %2413 = vmatprep.subr.bf16.mxu0 0
    %2414 = vmatpush1.bf16.msra.mxu0 %v1645
    %2415 = vmatprep.subr.bf16.mxu0 0
    %2416 = vmatpush2.bf16.msra.mxu0 0
    %2417 = vmatprep.subr.bf16.mxu0 0
    %2418 = vmatpush2.bf16.msra.mxu0 0
    %2419 = vmatprep.subr.bf16.mxu0 0
    %2420 = vmatpush2.bf16.msra.mxu0 0
    %2421 = vmatprep.subr.bf16.mxu0 0
    %2422 = vmatpush2.bf16.msra.mxu0 0
    %2423 = vmatprep.subr.bf16.mxu0 0
    %2424 = vmatpush2.bf16.msra.mxu0 0
    %2425 = vmatprep.subr.bf16.mxu0 0
    %2426 = vmatpush2.bf16.msra.mxu0 0
    %2427 = vmatprep.subr.bf16.mxu0 0
    %2428 = vmatpush2.bf16.msra.mxu0 0
    %2429 = vmatprep.subr.bf16.mxu0 0
    %2430 = vmatpush2.bf16.msra.mxu0 0
    %2431 = vmatprep.mubr.bf16.mxu0 0
    %2432 = vmatmul.mubr.bf16.gmra.mxu0 %v1057
    %v2433 = vpop.f32.mrf.mxu0
    %v2434 = vadd.f32 %v2081, %v2433
    %v2435 = vpop.f32.mrf.mxu0
    %v2436 = vpop.f32.mrf.mxu0
    %v2437 = vadd.f32 %v2084, %v2436
    %v2438 = vpop.f32.mrf.mxu0
    %2439 = vmatprep.mubr.bf16.mxu0 0
    %2440 = vmatmul.mubr.bf16.gmra.mxu0 %v1062
    %v2441 = vpop.f32.mrf.mxu0
    %v2442 = vadd.f32 %v2089, %v2441
    %v2443 = vpop.f32.mrf.mxu0
    %v2444 = vpop.f32.mrf.mxu0
    %v2445 = vadd.f32 %v2092, %v2444
    %v2446 = vpop.f32.mrf.mxu0
    %2447 = vmatprep.mubr.bf16.mxu0 0
    %2448 = vmatmul.mubr.bf16.gmra.mxu0 %v1067
    %v2449 = vpop.f32.mrf.mxu0
    %v2450 = vadd.f32 %v2097, %v2449
    %v2451 = vpop.f32.mrf.mxu0
    %v2452 = vpop.f32.mrf.mxu0
    %v2453 = vadd.f32 %v2100, %v2452
    %v2454 = vpop.f32.mrf.mxu0
    %2455 = vmatprep.mubr.bf16.mxu0 0
    %2456 = vmatmul.mubr.bf16.gmra.mxu0 %v1072
    %v2457 = vpop.f32.mrf.mxu0
    %v2458 = vadd.f32 %v2105, %v2457
    %v2459 = vpop.f32.mrf.mxu0
    %v2460 = vpop.f32.mrf.mxu0
    %v2461 = vadd.f32 %v2108, %v2460
    %v2462 = vpop.f32.mrf.mxu0
    %2463 = vmatprep.mubr.bf16.mxu0 0
    %2464 = vmatmul.mubr.bf16.gmra.mxu0 %v1077
    %v2465 = vpop.f32.mrf.mxu0
    %v2466 = vadd.f32 %v2113, %v2465
    %v2467 = vpop.f32.mrf.mxu0
    %v2468 = vpop.f32.mrf.mxu0
    %v2469 = vadd.f32 %v2116, %v2468
    %v2470 = vpop.f32.mrf.mxu0
    %2471 = vmatprep.mubr.bf16.mxu0 0
    %2472 = vmatmul.mubr.bf16.gmra.mxu0 %v1082
    %v2473 = vpop.f32.mrf.mxu0
    %v2474 = vadd.f32 %v2121, %v2473
    %v2475 = vpop.f32.mrf.mxu0
    %v2476 = vpop.f32.mrf.mxu0
    %v2477 = vadd.f32 %v2124, %v2476
    %v2478 = vpop.f32.mrf.mxu0
    %2479 = vmatprep.mubr.bf16.mxu0 0
    %2480 = vmatmul.mubr.bf16.gmra.mxu0 %v1087
    %v2481 = vpop.f32.mrf.mxu0
    %v2482 = vadd.f32 %v2129, %v2481
    %v2483 = vpop.f32.mrf.mxu0
    %v2484 = vpop.f32.mrf.mxu0
    %v2485 = vadd.f32 %v2132, %v2484
    %v2486 = vpop.f32.mrf.mxu0
    %2487 = vmatprep.mubr.bf16.mxu0 0
    %2488 = vmatmul.mubr.bf16.gmra.mxu0 %v1092
    %v2489 = vpop.f32.mrf.mxu0
    %v2490 = vadd.f32 %v2137, %v2489
    %v2491 = vpop.f32.mrf.mxu0
    %v2492 = vpop.f32.mrf.mxu0
    %v2493 = vadd.f32 %v2140, %v2492
    %v2494 = vpop.f32.mrf.mxu0
    %2495 = vmatprep.mubr.bf16.mxu0 0
    %2496 = vmatmul.mubr.bf16.gmra.mxu0 %v1097
    %v2497 = vpop.f32.mrf.mxu0
    %v2498 = vadd.f32 %v2145, %v2497
    %v2499 = vpop.f32.mrf.mxu0
    %v2500 = vpop.f32.mrf.mxu0
    %v2501 = vadd.f32 %v2148, %v2500
    %v2502 = vpop.f32.mrf.mxu0
    %2503 = vmatprep.mubr.bf16.mxu0 0
    %2504 = vmatmul.mubr.bf16.gmra.mxu0 %v1102
    %v2505 = vpop.f32.mrf.mxu0
    %v2506 = vadd.f32 %v2153, %v2505
    %v2507 = vpop.f32.mrf.mxu0
    %v2508 = vpop.f32.mrf.mxu0
    %v2509 = vadd.f32 %v2156, %v2508
    %v2510 = vpop.f32.mrf.mxu0
    %2511 = vmatprep.mubr.bf16.mxu0 0
    %2512 = vmatmul.mubr.bf16.gmra.mxu0 %v1107
    %v2513 = vpop.f32.mrf.mxu0
    %v2514 = vadd.f32 %v2161, %v2513
    %v2515 = vpop.f32.mrf.mxu0
    %v2516 = vpop.f32.mrf.mxu0
    %v2517 = vadd.f32 %v2164, %v2516
    %v2518 = vpop.f32.mrf.mxu0
    %2519 = vmatprep.mubr.bf16.mxu0 0
    %2520 = vmatmul.mubr.bf16.gmra.mxu0 %v1112
    %v2521 = vpop.f32.mrf.mxu0
    %v2522 = vadd.f32 %v2169, %v2521
    %v2523 = vpop.f32.mrf.mxu0
    %v2524 = vpop.f32.mrf.mxu0
    %v2525 = vadd.f32 %v2172, %v2524
    %v2526 = vpop.f32.mrf.mxu0
    %2527 = vmatprep.mubr.bf16.mxu0 0
    %2528 = vmatmul.mubr.bf16.gmra.mxu0 %v1117
    %v2529 = vpop.f32.mrf.mxu0
    %v2530 = vadd.f32 %v2177, %v2529
    %v2531 = vpop.f32.mrf.mxu0
    %v2532 = vpop.f32.mrf.mxu0
    %v2533 = vadd.f32 %v2180, %v2532
    %v2534 = vpop.f32.mrf.mxu0
    %2535 = vmatprep.mubr.bf16.mxu0 0
    %2536 = vmatmul.mubr.bf16.gmra.mxu0 %v1122
    %v2537 = vpop.f32.mrf.mxu0
    %v2538 = vadd.f32 %v2185, %v2537
    %v2539 = vpop.f32.mrf.mxu0
    %v2540 = vpop.f32.mrf.mxu0
    %v2541 = vadd.f32 %v2188, %v2540
    %v2542 = vpop.f32.mrf.mxu0
    %2543 = vmatprep.mubr.bf16.mxu0 0
    %2544 = vmatmul.mubr.bf16.gmra.mxu0 %v1127
    %v2545 = vpop.f32.mrf.mxu0
    %v2546 = vadd.f32 %v2193, %v2545
    %v2547 = vpop.f32.mrf.mxu0
    %v2548 = vpop.f32.mrf.mxu0
    %v2549 = vadd.f32 %v2196, %v2548
    %v2550 = vpop.f32.mrf.mxu0
    %2551 = vmatprep.mubr.bf16.mxu0 0
    %2552 = vmatmul.mubr.bf16.gmra.mxu0 %v1132
    %v2553 = vpop.f32.mrf.mxu0
    %v2554 = vadd.f32 %v2201, %v2553
    %v2555 = vpop.f32.mrf.mxu0
    %v2556 = vpop.f32.mrf.mxu0
    %v2557 = vadd.f32 %v2204, %v2556
    %v2558 = vpop.f32.mrf.mxu0
    %2559 = vmatprep.mubr.bf16.mxu0 0
    %2560 = vmatmul.mubr.bf16.gmra.mxu0 %v1137
    %v2561 = vpop.f32.mrf.mxu0
    %v2562 = vadd.f32 %v2209, %v2561
    %v2563 = vpop.f32.mrf.mxu0
    %v2564 = vpop.f32.mrf.mxu0
    %v2565 = vadd.f32 %v2212, %v2564
    %v2566 = vpop.f32.mrf.mxu0
    %2567 = vmatprep.mubr.bf16.mxu0 0
    %2568 = vmatmul.mubr.bf16.gmra.mxu0 %v1142
    %v2569 = vpop.f32.mrf.mxu0
    %v2570 = vadd.f32 %v2217, %v2569
    %v2571 = vpop.f32.mrf.mxu0
    %v2572 = vpop.f32.mrf.mxu0
    %v2573 = vadd.f32 %v2220, %v2572
    %v2574 = vpop.f32.mrf.mxu0
    %2575 = vmatprep.mubr.bf16.mxu0 0
    %2576 = vmatmul.mubr.bf16.gmra.mxu0 %v1147
    %v2577 = vpop.f32.mrf.mxu0
    %v2578 = vadd.f32 %v2225, %v2577
    %v2579 = vpop.f32.mrf.mxu0
    %v2580 = vpop.f32.mrf.mxu0
    %v2581 = vadd.f32 %v2228, %v2580
    %v2582 = vpop.f32.mrf.mxu0
    %2583 = vmatprep.mubr.bf16.mxu0 0
    %2584 = vmatmul.mubr.bf16.gmra.mxu0 %v1152
    %v2585 = vpop.f32.mrf.mxu0
    %v2586 = vadd.f32 %v2233, %v2585
    %v2587 = vpop.f32.mrf.mxu0
    %v2588 = vpop.f32.mrf.mxu0
    %v2589 = vadd.f32 %v2236, %v2588
    %v2590 = vpop.f32.mrf.mxu0
    %2591 = vmatprep.mubr.bf16.mxu0 0
    %2592 = vmatmul.mubr.bf16.gmra.mxu0 %v1157
    %v2593 = vpop.f32.mrf.mxu0
    %v2594 = vadd.f32 %v2241, %v2593
    %v2595 = vpop.f32.mrf.mxu0
    %v2596 = vpop.f32.mrf.mxu0
    %v2597 = vadd.f32 %v2244, %v2596
    %v2598 = vpop.f32.mrf.mxu0
    %2599 = vmatprep.mubr.bf16.mxu0 0
    %2600 = vmatmul.mubr.bf16.gmra.mxu0 %v1162
    %v2601 = vpop.f32.mrf.mxu0
    %v2602 = vadd.f32 %v2249, %v2601
    %v2603 = vpop.f32.mrf.mxu0
    %v2604 = vpop.f32.mrf.mxu0
    %v2605 = vadd.f32 %v2252, %v2604
    %v2606 = vpop.f32.mrf.mxu0
    %2607 = vmatprep.mubr.bf16.mxu0 0
    %2608 = vmatmul.mubr.bf16.gmra.mxu0 %v1167
    %v2609 = vpop.f32.mrf.mxu0
    %v2610 = vadd.f32 %v2257, %v2609
    %v2611 = vpop.f32.mrf.mxu0
    %v2612 = vpop.f32.mrf.mxu0
    %v2613 = vadd.f32 %v2260, %v2612
    %v2614 = vpop.f32.mrf.mxu0
    %2615 = vmatprep.mubr.bf16.mxu0 0
    %2616 = vmatmul.mubr.bf16.gmra.mxu0 %v1172
    %v2617 = vpop.f32.mrf.mxu0
    %v2618 = vadd.f32 %v2265, %v2617
    %v2619 = vpop.f32.mrf.mxu0
    %v2620 = vpop.f32.mrf.mxu0
    %v2621 = vadd.f32 %v2268, %v2620
    %v2622 = vpop.f32.mrf.mxu0
    %2623 = vmatprep.mubr.bf16.mxu0 0
    %2624 = vmatmul.mubr.bf16.gmra.mxu0 %v1177
    %v2625 = vpop.f32.mrf.mxu0
    %v2626 = vadd.f32 %v2273, %v2625
    %v2627 = vpop.f32.mrf.mxu0
    %v2628 = vpop.f32.mrf.mxu0
    %v2629 = vadd.f32 %v2276, %v2628
    %v2630 = vpop.f32.mrf.mxu0
    %2631 = vmatprep.mubr.bf16.mxu0 0
    %2632 = vmatmul.mubr.bf16.gmra.mxu0 %v1182
    %v2633 = vpop.f32.mrf.mxu0
    %v2634 = vadd.f32 %v2281, %v2633
    %v2635 = vpop.f32.mrf.mxu0
    %v2636 = vpop.f32.mrf.mxu0
    %v2637 = vadd.f32 %v2284, %v2636
    %v2638 = vpop.f32.mrf.mxu0
    %2639 = vmatprep.mubr.bf16.mxu0 0
    %2640 = vmatmul.mubr.bf16.gmra.mxu0 %v1187
    %v2641 = vpop.f32.mrf.mxu0
    %v2642 = vadd.f32 %v2289, %v2641
    %v2643 = vpop.f32.mrf.mxu0
    %v2644 = vpop.f32.mrf.mxu0
    %v2645 = vadd.f32 %v2292, %v2644
    %v2646 = vpop.f32.mrf.mxu0
    %2647 = vmatprep.mubr.bf16.mxu0 0
    %2648 = vmatmul.mubr.bf16.gmra.mxu0 %v1192
    %v2649 = vpop.f32.mrf.mxu0
    %v2650 = vadd.f32 %v2297, %v2649
    %v2651 = vpop.f32.mrf.mxu0
    %v2652 = vpop.f32.mrf.mxu0
    %v2653 = vadd.f32 %v2300, %v2652
    %v2654 = vpop.f32.mrf.mxu0
    %2655 = vmatprep.mubr.bf16.mxu0 0
    %2656 = vmatmul.mubr.bf16.gmra.mxu0 %v1197
    %v2657 = vpop.f32.mrf.mxu0
    %v2658 = vadd.f32 %v2305, %v2657
    %v2659 = vpop.f32.mrf.mxu0
    %v2660 = vpop.f32.mrf.mxu0
    %v2661 = vadd.f32 %v2308, %v2660
    %v2662 = vpop.f32.mrf.mxu0
    %2663 = vmatprep.mubr.bf16.mxu0 0
    %2664 = vmatmul.mubr.bf16.gmra.mxu0 %v1202
    %v2665 = vpop.f32.mrf.mxu0
    %v2666 = vadd.f32 %v2313, %v2665
    %v2667 = vpop.f32.mrf.mxu0
    %v2668 = vpop.f32.mrf.mxu0
    %v2669 = vadd.f32 %v2316, %v2668
    %v2670 = vpop.f32.mrf.mxu0
    %2671 = vmatprep.mubr.bf16.mxu0 0
    %2672 = vmatmul.mubr.bf16.gmra.mxu0 %v1207
    %v2673 = vpop.f32.mrf.mxu0
    %v2674 = vadd.f32 %v2321, %v2673
    %v2675 = vpop.f32.mrf.mxu0
    %v2676 = vpop.f32.mrf.mxu0
    %v2677 = vadd.f32 %v2324, %v2676
    %v2678 = vpop.f32.mrf.mxu0
    %2679 = vmatprep.mubr.bf16.mxu0 0
    %2680 = vmatmul.mubr.bf16.gmra.mxu0 %v1212
    %v2681 = vpop.f32.mrf.mxu0
    %v2682 = vadd.f32 %v2329, %v2681
    %v2683 = vpop.f32.mrf.mxu0
    %v2684 = vpop.f32.mrf.mxu0
    %v2685 = vadd.f32 %v2332, %v2684
    %v2686 = vpop.f32.mrf.mxu0
    %2687 = vmatprep.mubr.bf16.mxu0 0
    %2688 = vmatmul.mubr.bf16.gmra.mxu0 %v1217
    %v2689 = vpop.f32.mrf.mxu0
    %v2690 = vadd.f32 %v2337, %v2689
    %v2691 = vpop.f32.mrf.mxu0
    %v2692 = vpop.f32.mrf.mxu0
    %v2693 = vadd.f32 %v2340, %v2692
    %v2694 = vpop.f32.mrf.mxu0
    %2695 = vmatprep.mubr.bf16.mxu0 0
    %2696 = vmatmul.mubr.bf16.gmra.mxu0 %v1222
    %v2697 = vpop.f32.mrf.mxu0
    %v2698 = vadd.f32 %v2345, %v2697
    %v2699 = vpop.f32.mrf.mxu0
    %v2700 = vpop.f32.mrf.mxu0
    %v2701 = vadd.f32 %v2348, %v2700
    %v2702 = vpop.f32.mrf.mxu0
    %2703 = vmatprep.mubr.bf16.mxu0 0
    %2704 = vmatmul.mubr.bf16.gmra.mxu0 %v1227
    %v2705 = vpop.f32.mrf.mxu0
    %v2706 = vadd.f32 %v2353, %v2705
    %v2707 = vpop.f32.mrf.mxu0
    %v2708 = vpop.f32.mrf.mxu0
    %v2709 = vadd.f32 %v2356, %v2708
    %v2710 = vpop.f32.mrf.mxu0
    %2711 = vmatprep.mubr.bf16.mxu0 0
    %2712 = vmatmul.mubr.bf16.gmra.mxu0 %v1232
    %v2713 = vpop.f32.mrf.mxu0
    %v2714 = vadd.f32 %v2361, %v2713
    %v2715 = vpop.f32.mrf.mxu0
    %v2716 = vpop.f32.mrf.mxu0
    %v2717 = vadd.f32 %v2364, %v2716
    %v2718 = vpop.f32.mrf.mxu0
    %2719 = vmatprep.mubr.bf16.mxu0 0
    %2720 = vmatmul.mubr.bf16.gmra.mxu0 %v1237
    %v2721 = vpop.f32.mrf.mxu0
    %v2722 = vadd.f32 %v2369, %v2721
    %v2723 = vpop.f32.mrf.mxu0
    %v2724 = vpop.f32.mrf.mxu0
    %v2725 = vadd.f32 %v2372, %v2724
    %v2726 = vpop.f32.mrf.mxu0
    %2727 = vmatprep.mubr.bf16.mxu0 0
    %2728 = vmatmul.mubr.bf16.gmra.mxu0 %v1242
    %v2729 = vpop.f32.mrf.mxu0
    %v2730 = vadd.f32 %v2377, %v2729
    %v2731 = vpop.f32.mrf.mxu0
    %v2732 = vpop.f32.mrf.mxu0
    %v2733 = vadd.f32 %v2380, %v2732
    %v2734 = vpop.f32.mrf.mxu0
    %2735 = vmatprep.mubr.bf16.mxu0 0
    %2736 = vmatmul.mubr.bf16.gmra.mxu0 %v1247
    %v2737 = vpop.f32.mrf.mxu0
    %v2738 = vadd.f32 %v2385, %v2737
    %v2739 = vpop.f32.mrf.mxu0
    %v2740 = vpop.f32.mrf.mxu0
    %v2741 = vadd.f32 %v2388, %v2740
    %v2742 = vpop.f32.mrf.mxu0
    %2743 = vmatprep.mubr.bf16.mxu0 0
    %2744 = vmatmul.mubr.bf16.gmra.mxu0 %v1252
    %v2745 = vpop.f32.mrf.mxu0
    %v2746 = vadd.f32 %v2393, %v2745
    %v2747 = vpop.f32.mrf.mxu0
    %v2748 = vpop.f32.mrf.mxu0
    %v2749 = vadd.f32 %v2396, %v2748
    %v2750 = vpop.f32.mrf.mxu0
    %2751 = vdwg.mxu0
    %v2752 = vmax.f32 %v2434, 0.0
    %v2753 = vmax.f32 %v2437, 0.0
    %v2754 = vmax.f32 %v2442, 0.0
    %v2755 = vmax.f32 %v2445, 0.0
    %v2756 = vmax.f32 %v2450, 0.0
    %v2757 = vmax.f32 %v2453, 0.0
    %v2758 = vmax.f32 %v2458, 0.0
    %v2759 = vmax.f32 %v2461, 0.0
    %v2760 = vmax.f32 %v2466, 0.0
    %v2761 = vmax.f32 %v2469, 0.0
    %v2762 = vmax.f32 %v2474, 0.0
    %v2763 = vmax.f32 %v2477, 0.0
    %v2764 = vmax.f32 %v2482, 0.0
    %v2765 = vmax.f32 %v2485, 0.0
    %v2766 = vmax.f32 %v2490, 0.0
    %v2767 = vmax.f32 %v2493, 0.0
    %v2768 = vmax.f32 %v2498, 0.0
    %v2769 = vmax.f32 %v2501, 0.0
    %v2770 = vmax.f32 %v2506, 0.0
    %v2771 = vmax.f32 %v2509, 0.0
    %v2772 = vmax.f32 %v2514, 0.0
    %v2773 = vmax.f32 %v2517, 0.0
    %v2774 = vmax.f32 %v2522, 0.0
    %v2775 = vmax.f32 %v2525, 0.0
    %v2776 = vmax.f32 %v2530, 0.0
    %v2777 = vmax.f32 %v2533, 0.0
    %v2778 = vmax.f32 %v2538, 0.0
    %v2779 = vmax.f32 %v2541, 0.0
    %v2780 = vmax.f32 %v2546, 0.0
    %v2781 = vmax.f32 %v2549, 0.0
    %v2782 = vmax.f32 %v2554, 0.0
    %v2783 = vmax.f32 %v2557, 0.0
    %v2784 = vmax.f32 %v2562, 0.0
    %v2785 = vmax.f32 %v2565, 0.0
    %v2786 = vmax.f32 %v2570, 0.0
    %v2787 = vmax.f32 %v2573, 0.0
    %v2788 = vmax.f32 %v2578, 0.0
    %v2789 = vmax.f32 %v2581, 0.0
    %v2790 = vmax.f32 %v2586, 0.0
    %v2791 = vmax.f32 %v2589, 0.0
    %v2792 = vmax.f32 %v2594, 0.0
    %v2793 = vmax.f32 %v2597, 0.0
    %v2794 = vmax.f32 %v2602, 0.0
    %v2795 = vmax.f32 %v2605, 0.0
    %v2796 = vmax.f32 %v2610, 0.0
    %v2797 = vmax.f32 %v2613, 0.0
    %v2798 = vmax.f32 %v2618, 0.0
    %v2799 = vmax.f32 %v2621, 0.0
    %v2800 = vmax.f32 %v2626, 0.0
    %v2801 = vmax.f32 %v2629, 0.0
    %v2802 = vmax.f32 %v2634, 0.0
    %v2803 = vmax.f32 %v2637, 0.0
    %v2804 = vmax.f32 %v2642, 0.0
    %v2805 = vmax.f32 %v2645, 0.0
    %v2806 = vmax.f32 %v2650, 0.0
    %v2807 = vmax.f32 %v2653, 0.0
    %v2808 = vmax.f32 %v2658, 0.0
    %v2809 = vmax.f32 %v2661, 0.0
    %v2810 = vmax.f32 %v2666, 0.0
    %v2811 = vmax.f32 %v2669, 0.0
    %v2812 = vmax.f32 %v2674, 0.0
    %v2813 = vmax.f32 %v2677, 0.0
    %v2814 = vmax.f32 %v2682, 0.0
    %v2815 = vmax.f32 %v2685, 0.0
    %v2816 = vmax.f32 %v2690, 0.0
    %v2817 = vmax.f32 %v2693, 0.0
    %v2818 = vmax.f32 %v2698, 0.0
    %v2819 = vmax.f32 %v2701, 0.0
    %v2820 = vmax.f32 %v2706, 0.0
    %v2821 = vmax.f32 %v2709, 0.0
    %v2822 = vmax.f32 %v2714, 0.0
    %v2823 = vmax.f32 %v2717, 0.0
    %v2824 = vmax.f32 %v2722, 0.0
    %v2825 = vmax.f32 %v2725, 0.0
    %v2826 = vmax.f32 %v2730, 0.0
    %v2827 = vmax.f32 %v2733, 0.0
    %v2828 = vmax.f32 %v2738, 0.0
    %v2829 = vmax.f32 %v2741, 0.0
    %v2830 = vmax.f32 %v2746, 0.0
    %v2831 = vmax.f32 %v2749, 0.0
    %v2832 = vpack.c.bf16 %v2753, %v2752
    %v2833 = vpack.c.bf16 %v2755, %v2754
    %v2834 = vpack.c.bf16 %v2757, %v2756
    %v2835 = vpack.c.bf16 %v2759, %v2758
    %v2836 = vpack.c.bf16 %v2761, %v2760
    %v2837 = vpack.c.bf16 %v2763, %v2762
    %v2838 = vpack.c.bf16 %v2765, %v2764
    %v2839 = vpack.c.bf16 %v2767, %v2766
    %v2840 = vpack.c.bf16 %v2769, %v2768
    %v2841 = vpack.c.bf16 %v2771, %v2770
    %v2842 = vpack.c.bf16 %v2773, %v2772
    %v2843 = vpack.c.bf16 %v2775, %v2774
    %v2844 = vpack.c.bf16 %v2777, %v2776
    %v2845 = vpack.c.bf16 %v2779, %v2778
    %v2846 = vpack.c.bf16 %v2781, %v2780
    %v2847 = vpack.c.bf16 %v2783, %v2782
    %v2848 = vpack.c.bf16 %v2785, %v2784
    %v2849 = vpack.c.bf16 %v2787, %v2786
    %v2850 = vpack.c.bf16 %v2789, %v2788
    %v2851 = vpack.c.bf16 %v2791, %v2790
    %v2852 = vpack.c.bf16 %v2793, %v2792
    %v2853 = vpack.c.bf16 %v2795, %v2794
    %v2854 = vpack.c.bf16 %v2797, %v2796
    %v2855 = vpack.c.bf16 %v2799, %v2798
    %v2856 = vpack.c.bf16 %v2801, %v2800
    %v2857 = vpack.c.bf16 %v2803, %v2802
    %v2858 = vpack.c.bf16 %v2805, %v2804
    %v2859 = vpack.c.bf16 %v2807, %v2806
    %v2860 = vpack.c.bf16 %v2809, %v2808
    %v2861 = vpack.c.bf16 %v2811, %v2810
    %v2862 = vpack.c.bf16 %v2813, %v2812
    %v2863 = vpack.c.bf16 %v2815, %v2814
    %v2864 = vpack.c.bf16 %v2817, %v2816
    %v2865 = vpack.c.bf16 %v2819, %v2818
    %v2866 = vpack.c.bf16 %v2821, %v2820
    %v2867 = vpack.c.bf16 %v2823, %v2822
    %v2868 = vpack.c.bf16 %v2825, %v2824
    %v2869 = vpack.c.bf16 %v2827, %v2826
    %v2870 = vpack.c.bf16 %v2829, %v2828
    %v2871 = vpack.c.bf16 %v2831, %v2830
    %2872 = vmatprep.subr.bf16.mxu0 0
    %2873 = vmatpush1.bf16.msra.mxu0 %v2839
    %2874 = vmatprep.subr.bf16.mxu0 0
    %2875 = vmatpush1.bf16.msra.mxu0 %v2838
    %2876 = vmatprep.subr.bf16.mxu0 0
    %2877 = vmatpush1.bf16.msra.mxu0 %v2837
    %2878 = vmatprep.subr.bf16.mxu0 0
    %2879 = vmatpush1.bf16.msra.mxu0 %v2836
    %2880 = vmatprep.subr.bf16.mxu0 0
    %2881 = vmatpush1.bf16.msra.mxu0 %v2835
    %2882 = vmatprep.subr.bf16.mxu0 0
    %2883 = vmatpush1.bf16.msra.mxu0 %v2834
    %2884 = vmatprep.subr.bf16.mxu0 0
    %2885 = vmatpush1.bf16.msra.mxu0 %v2833
    %2886 = vmatprep.subr.bf16.mxu0 0
    %2887 = vmatpush1.bf16.msra.mxu0 %v2832
    %2888 = vmatprep.subr.bf16.mxu0 0
    %2889 = vmatpush2.bf16.msra.mxu0 %v2847
    %2890 = vmatprep.subr.bf16.mxu0 0
    %2891 = vmatpush2.bf16.msra.mxu0 %v2846
    %2892 = vmatprep.subr.bf16.mxu0 0
    %2893 = vmatpush2.bf16.msra.mxu0 %v2845
    %2894 = vmatprep.subr.bf16.mxu0 0
    %2895 = vmatpush2.bf16.msra.mxu0 %v2844
    %2896 = vmatprep.subr.bf16.mxu0 0
    %2897 = vmatpush2.bf16.msra.mxu0 %v2843
    %2898 = vmatprep.subr.bf16.mxu0 0
    %2899 = vmatpush2.bf16.msra.mxu0 %v2842
    %2900 = vmatprep.subr.bf16.mxu0 0
    %2901 = vmatpush2.bf16.msra.mxu0 %v2841
    %2902 = vmatprep.subr.bf16.mxu0 0
    %2903 = vmatpush2.bf16.msra.mxu0 %v2840
    %2904 = vmatprep.mubr.bf16.mxu0 %v1054
    %2905 = vmatmul.mubr.bf16.gmra.mxu0 %v1053
    %v2906 = vpop.f32.mrf.mxu0
    %v2907 = vadd.f32 0.0, %v2906
    %v2908 = vpop.f32.mrf.mxu0
    %v2909 = vpop.f32.mrf.mxu0
    %v2910 = vadd.f32 0.0, %v2909
    %v2911 = vpop.f32.mrf.mxu0
    %2912 = vmatprep.mubr.bf16.mxu0 %v1059
    %2913 = vmatmul.mubr.bf16.gmra.mxu0 %v1058
    %v2914 = vpop.f32.mrf.mxu0
    %v2915 = vadd.f32 0.0, %v2914
    %v2916 = vpop.f32.mrf.mxu0
    %v2917 = vpop.f32.mrf.mxu0
    %v2918 = vadd.f32 0.0, %v2917
    %v2919 = vpop.f32.mrf.mxu0
    %2920 = vmatprep.mubr.bf16.mxu0 %v1064
    %2921 = vmatmul.mubr.bf16.gmra.mxu0 %v1063
    %v2922 = vpop.f32.mrf.mxu0
    %v2923 = vadd.f32 0.0, %v2922
    %v2924 = vpop.f32.mrf.mxu0
    %v2925 = vpop.f32.mrf.mxu0
    %v2926 = vadd.f32 0.0, %v2925
    %v2927 = vpop.f32.mrf.mxu0
    %2928 = vmatprep.mubr.bf16.mxu0 %v1069
    %2929 = vmatmul.mubr.bf16.gmra.mxu0 %v1068
    %v2930 = vpop.f32.mrf.mxu0
    %v2931 = vadd.f32 0.0, %v2930
    %v2932 = vpop.f32.mrf.mxu0
    %v2933 = vpop.f32.mrf.mxu0
    %v2934 = vadd.f32 0.0, %v2933
    %v2935 = vpop.f32.mrf.mxu0
    %2936 = vmatprep.mubr.bf16.mxu0 %v1074
    %2937 = vmatmul.mubr.bf16.gmra.mxu0 %v1073
    %v2938 = vpop.f32.mrf.mxu0
    %v2939 = vadd.f32 0.0, %v2938
    %v2940 = vpop.f32.mrf.mxu0
    %v2941 = vpop.f32.mrf.mxu0
    %v2942 = vadd.f32 0.0, %v2941
    %v2943 = vpop.f32.mrf.mxu0
    %2944 = vmatprep.mubr.bf16.mxu0 %v1079
    %2945 = vmatmul.mubr.bf16.gmra.mxu0 %v1078
    %v2946 = vpop.f32.mrf.mxu0
    %v2947 = vadd.f32 0.0, %v2946
    %v2948 = vpop.f32.mrf.mxu0
    %v2949 = vpop.f32.mrf.mxu0
    %v2950 = vadd.f32 0.0, %v2949
    %v2951 = vpop.f32.mrf.mxu0
    %2952 = vmatprep.mubr.bf16.mxu0 %v1084
    %2953 = vmatmul.mubr.bf16.gmra.mxu0 %v1083
    %v2954 = vpop.f32.mrf.mxu0
    %v2955 = vadd.f32 0.0, %v2954
    %v2956 = vpop.f32.mrf.mxu0
    %v2957 = vpop.f32.mrf.mxu0
    %v2958 = vadd.f32 0.0, %v2957
    %v2959 = vpop.f32.mrf.mxu0
    %2960 = vmatprep.mubr.bf16.mxu0 %v1089
    %2961 = vmatmul.mubr.bf16.gmra.mxu0 %v1088
    %v2962 = vpop.f32.mrf.mxu0
    %v2963 = vadd.f32 0.0, %v2962
    %v2964 = vpop.f32.mrf.mxu0
    %v2965 = vpop.f32.mrf.mxu0
    %v2966 = vadd.f32 0.0, %v2965
    %v2967 = vpop.f32.mrf.mxu0
    %2968 = vmatprep.mubr.bf16.mxu0 %v1094
    %2969 = vmatmul.mubr.bf16.gmra.mxu0 %v1093
    %v2970 = vpop.f32.mrf.mxu0
    %v2971 = vadd.f32 0.0, %v2970
    %v2972 = vpop.f32.mrf.mxu0
    %v2973 = vpop.f32.mrf.mxu0
    %v2974 = vadd.f32 0.0, %v2973
    %v2975 = vpop.f32.mrf.mxu0
    %2976 = vmatprep.mubr.bf16.mxu0 %v1099
    %2977 = vmatmul.mubr.bf16.gmra.mxu0 %v1098
    %v2978 = vpop.f32.mrf.mxu0
    %v2979 = vadd.f32 0.0, %v2978
    %v2980 = vpop.f32.mrf.mxu0
    %v2981 = vpop.f32.mrf.mxu0
    %v2982 = vadd.f32 0.0, %v2981
    %v2983 = vpop.f32.mrf.mxu0
    %2984 = vmatprep.mubr.bf16.mxu0 %v1104
    %2985 = vmatmul.mubr.bf16.gmra.mxu0 %v1103
    %v2986 = vpop.f32.mrf.mxu0
    %v2987 = vadd.f32 0.0, %v2986
    %v2988 = vpop.f32.mrf.mxu0
    %v2989 = vpop.f32.mrf.mxu0
    %v2990 = vadd.f32 0.0, %v2989
    %v2991 = vpop.f32.mrf.mxu0
    %2992 = vmatprep.mubr.bf16.mxu0 %v1109
    %2993 = vmatmul.mubr.bf16.gmra.mxu0 %v1108
    %v2994 = vpop.f32.mrf.mxu0
    %v2995 = vadd.f32 0.0, %v2994
    %v2996 = vpop.f32.mrf.mxu0
    %v2997 = vpop.f32.mrf.mxu0
    %v2998 = vadd.f32 0.0, %v2997
    %v2999 = vpop.f32.mrf.mxu0
    %3000 = vmatprep.mubr.bf16.mxu0 %v1114
    %3001 = vmatmul.mubr.bf16.gmra.mxu0 %v1113
    %v3002 = vpop.f32.mrf.mxu0
    %v3003 = vadd.f32 0.0, %v3002
    %v3004 = vpop.f32.mrf.mxu0
    %v3005 = vpop.f32.mrf.mxu0
    %v3006 = vadd.f32 0.0, %v3005
    %v3007 = vpop.f32.mrf.mxu0
    %3008 = vmatprep.mubr.bf16.mxu0 %v1119
    %3009 = vmatmul.mubr.bf16.gmra.mxu0 %v1118
    %v3010 = vpop.f32.mrf.mxu0
    %v3011 = vadd.f32 0.0, %v3010
    %v3012 = vpop.f32.mrf.mxu0
    %v3013 = vpop.f32.mrf.mxu0
    %v3014 = vadd.f32 0.0, %v3013
    %v3015 = vpop.f32.mrf.mxu0
    %3016 = vmatprep.mubr.bf16.mxu0 %v1124
    %3017 = vmatmul.mubr.bf16.gmra.mxu0 %v1123
    %v3018 = vpop.f32.mrf.mxu0
    %v3019 = vadd.f32 0.0, %v3018
    %v3020 = vpop.f32.mrf.mxu0
    %v3021 = vpop.f32.mrf.mxu0
    %v3022 = vadd.f32 0.0, %v3021
    %v3023 = vpop.f32.mrf.mxu0
    %3024 = vmatprep.mubr.bf16.mxu0 %v1129
    %3025 = vmatmul.mubr.bf16.gmra.mxu0 %v1128
    %v3026 = vpop.f32.mrf.mxu0
    %v3027 = vadd.f32 0.0, %v3026
    %v3028 = vpop.f32.mrf.mxu0
    %v3029 = vpop.f32.mrf.mxu0
    %v3030 = vadd.f32 0.0, %v3029
    %v3031 = vpop.f32.mrf.mxu0
    %3032 = vmatprep.mubr.bf16.mxu0 %v1134
    %3033 = vmatmul.mubr.bf16.gmra.mxu0 %v1133
    %v3034 = vpop.f32.mrf.mxu0
    %v3035 = vadd.f32 0.0, %v3034
    %v3036 = vpop.f32.mrf.mxu0
    %v3037 = vpop.f32.mrf.mxu0
    %v3038 = vadd.f32 0.0, %v3037
    %v3039 = vpop.f32.mrf.mxu0
    %3040 = vmatprep.mubr.bf16.mxu0 %v1139
    %3041 = vmatmul.mubr.bf16.gmra.mxu0 %v1138
    %v3042 = vpop.f32.mrf.mxu0
    %v3043 = vadd.f32 0.0, %v3042
    %v3044 = vpop.f32.mrf.mxu0
    %v3045 = vpop.f32.mrf.mxu0
    %v3046 = vadd.f32 0.0, %v3045
    %v3047 = vpop.f32.mrf.mxu0
    %3048 = vmatprep.mubr.bf16.mxu0 %v1144
    %3049 = vmatmul.mubr.bf16.gmra.mxu0 %v1143
    %v3050 = vpop.f32.mrf.mxu0
    %v3051 = vadd.f32 0.0, %v3050
    %v3052 = vpop.f32.mrf.mxu0
    %v3053 = vpop.f32.mrf.mxu0
    %v3054 = vadd.f32 0.0, %v3053
    %v3055 = vpop.f32.mrf.mxu0
    %3056 = vmatprep.mubr.bf16.mxu0 %v1149
    %3057 = vmatmul.mubr.bf16.gmra.mxu0 %v1148
    %v3058 = vpop.f32.mrf.mxu0
    %v3059 = vadd.f32 0.0, %v3058
    %v3060 = vpop.f32.mrf.mxu0
    %v3061 = vpop.f32.mrf.mxu0
    %v3062 = vadd.f32 0.0, %v3061
    %v3063 = vpop.f32.mrf.mxu0
    %3064 = vmatprep.mubr.bf16.mxu0 %v1154
    %3065 = vmatmul.mubr.bf16.gmra.mxu0 %v1153
    %v3066 = vpop.f32.mrf.mxu0
    %v3067 = vadd.f32 0.0, %v3066
    %v3068 = vpop.f32.mrf.mxu0
    %v3069 = vpop.f32.mrf.mxu0
    %v3070 = vadd.f32 0.0, %v3069
    %v3071 = vpop.f32.mrf.mxu0
    %3072 = vmatprep.mubr.bf16.mxu0 %v1159
    %3073 = vmatmul.mubr.bf16.gmra.mxu0 %v1158
    %v3074 = vpop.f32.mrf.mxu0
    %v3075 = vadd.f32 0.0, %v3074
    %v3076 = vpop.f32.mrf.mxu0
    %v3077 = vpop.f32.mrf.mxu0
    %v3078 = vadd.f32 0.0, %v3077
    %v3079 = vpop.f32.mrf.mxu0
    %3080 = vmatprep.mubr.bf16.mxu0 %v1164
    %3081 = vmatmul.mubr.bf16.gmra.mxu0 %v1163
    %v3082 = vpop.f32.mrf.mxu0
    %v3083 = vadd.f32 0.0, %v3082
    %v3084 = vpop.f32.mrf.mxu0
    %v3085 = vpop.f32.mrf.mxu0
    %v3086 = vadd.f32 0.0, %v3085
    %v3087 = vpop.f32.mrf.mxu0
    %3088 = vmatprep.mubr.bf16.mxu0 %v1169
    %3089 = vmatmul.mubr.bf16.gmra.mxu0 %v1168
    %v3090 = vpop.f32.mrf.mxu0
    %v3091 = vadd.f32 0.0, %v3090
    %v3092 = vpop.f32.mrf.mxu0
    %v3093 = vpop.f32.mrf.mxu0
    %v3094 = vadd.f32 0.0, %v3093
    %v3095 = vpop.f32.mrf.mxu0
    %3096 = vmatprep.mubr.bf16.mxu0 %v1174
    %3097 = vmatmul.mubr.bf16.gmra.mxu0 %v1173
    %v3098 = vpop.f32.mrf.mxu0
    %v3099 = vadd.f32 0.0, %v3098
    %v3100 = vpop.f32.mrf.mxu0
    %v3101 = vpop.f32.mrf.mxu0
    %v3102 = vadd.f32 0.0, %v3101
    %v3103 = vpop.f32.mrf.mxu0
    %3104 = vmatprep.mubr.bf16.mxu0 %v1179
    %3105 = vmatmul.mubr.bf16.gmra.mxu0 %v1178
    %v3106 = vpop.f32.mrf.mxu0
    %v3107 = vadd.f32 0.0, %v3106
    %v3108 = vpop.f32.mrf.mxu0
    %v3109 = vpop.f32.mrf.mxu0
    %v3110 = vadd.f32 0.0, %v3109
    %v3111 = vpop.f32.mrf.mxu0
    %3112 = vmatprep.mubr.bf16.mxu0 %v1184
    %3113 = vmatmul.mubr.bf16.gmra.mxu0 %v1183
    %v3114 = vpop.f32.mrf.mxu0
    %v3115 = vadd.f32 0.0, %v3114
    %v3116 = vpop.f32.mrf.mxu0
    %v3117 = vpop.f32.mrf.mxu0
    %v3118 = vadd.f32 0.0, %v3117
    %v3119 = vpop.f32.mrf.mxu0
    %3120 = vmatprep.mubr.bf16.mxu0 %v1189
    %3121 = vmatmul.mubr.bf16.gmra.mxu0 %v1188
    %v3122 = vpop.f32.mrf.mxu0
    %v3123 = vadd.f32 0.0, %v3122
    %v3124 = vpop.f32.mrf.mxu0
    %v3125 = vpop.f32.mrf.mxu0
    %v3126 = vadd.f32 0.0, %v3125
    %v3127 = vpop.f32.mrf.mxu0
    %3128 = vmatprep.mubr.bf16.mxu0 %v1194
    %3129 = vmatmul.mubr.bf16.gmra.mxu0 %v1193
    %v3130 = vpop.f32.mrf.mxu0
    %v3131 = vadd.f32 0.0, %v3130
    %v3132 = vpop.f32.mrf.mxu0
    %v3133 = vpop.f32.mrf.mxu0
    %v3134 = vadd.f32 0.0, %v3133
    %v3135 = vpop.f32.mrf.mxu0
    %3136 = vmatprep.mubr.bf16.mxu0 %v1199
    %3137 = vmatmul.mubr.bf16.gmra.mxu0 %v1198
    %v3138 = vpop.f32.mrf.mxu0
    %v3139 = vadd.f32 0.0, %v3138
    %v3140 = vpop.f32.mrf.mxu0
    %v3141 = vpop.f32.mrf.mxu0
    %v3142 = vadd.f32 0.0, %v3141
    %v3143 = vpop.f32.mrf.mxu0
    %3144 = vmatprep.mubr.bf16.mxu0 %v1204
    %3145 = vmatmul.mubr.bf16.gmra.mxu0 %v1203
    %v3146 = vpop.f32.mrf.mxu0
    %v3147 = vadd.f32 0.0, %v3146
    %v3148 = vpop.f32.mrf.mxu0
    %v3149 = vpop.f32.mrf.mxu0
    %v3150 = vadd.f32 0.0, %v3149
    %v3151 = vpop.f32.mrf.mxu0
    %3152 = vmatprep.mubr.bf16.mxu0 %v1209
    %3153 = vmatmul.mubr.bf16.gmra.mxu0 %v1208
    %v3154 = vpop.f32.mrf.mxu0
    %v3155 = vadd.f32 0.0, %v3154
    %v3156 = vpop.f32.mrf.mxu0
    %v3157 = vpop.f32.mrf.mxu0
    %v3158 = vadd.f32 0.0, %v3157
    %v3159 = vpop.f32.mrf.mxu0
    %3160 = vmatprep.mubr.bf16.mxu0 %v1214
    %3161 = vmatmul.mubr.bf16.gmra.mxu0 %v1213
    %v3162 = vpop.f32.mrf.mxu0
    %v3163 = vadd.f32 0.0, %v3162
    %v3164 = vpop.f32.mrf.mxu0
    %v3165 = vpop.f32.mrf.mxu0
    %v3166 = vadd.f32 0.0, %v3165
    %v3167 = vpop.f32.mrf.mxu0
    %3168 = vmatprep.mubr.bf16.mxu0 %v1219
    %3169 = vmatmul.mubr.bf16.gmra.mxu0 %v1218
    %v3170 = vpop.f32.mrf.mxu0
    %v3171 = vadd.f32 0.0, %v3170
    %v3172 = vpop.f32.mrf.mxu0
    %v3173 = vpop.f32.mrf.mxu0
    %v3174 = vadd.f32 0.0, %v3173
    %v3175 = vpop.f32.mrf.mxu0
    %3176 = vmatprep.mubr.bf16.mxu0 %v1224
    %3177 = vmatmul.mubr.bf16.gmra.mxu0 %v1223
    %v3178 = vpop.f32.mrf.mxu0
    %v3179 = vadd.f32 0.0, %v3178
    %v3180 = vpop.f32.mrf.mxu0
    %v3181 = vpop.f32.mrf.mxu0
    %v3182 = vadd.f32 0.0, %v3181
    %v3183 = vpop.f32.mrf.mxu0
    %3184 = vmatprep.mubr.bf16.mxu0 %v1229
    %3185 = vmatmul.mubr.bf16.gmra.mxu0 %v1228
    %v3186 = vpop.f32.mrf.mxu0
    %v3187 = vadd.f32 0.0, %v3186
    %v3188 = vpop.f32.mrf.mxu0
    %v3189 = vpop.f32.mrf.mxu0
    %v3190 = vadd.f32 0.0, %v3189
    %v3191 = vpop.f32.mrf.mxu0
    %3192 = vmatprep.mubr.bf16.mxu0 %v1234
    %3193 = vmatmul.mubr.bf16.gmra.mxu0 %v1233
    %v3194 = vpop.f32.mrf.mxu0
    %v3195 = vadd.f32 0.0, %v3194
    %v3196 = vpop.f32.mrf.mxu0
    %v3197 = vpop.f32.mrf.mxu0
    %v3198 = vadd.f32 0.0, %v3197
    %v3199 = vpop.f32.mrf.mxu0
    %3200 = vmatprep.mubr.bf16.mxu0 %v1239
    %3201 = vmatmul.mubr.bf16.gmra.mxu0 %v1238
    %v3202 = vpop.f32.mrf.mxu0
    %v3203 = vadd.f32 0.0, %v3202
    %v3204 = vpop.f32.mrf.mxu0
    %v3205 = vpop.f32.mrf.mxu0
    %v3206 = vadd.f32 0.0, %v3205
    %v3207 = vpop.f32.mrf.mxu0
    %3208 = vmatprep.mubr.bf16.mxu0 %v1244
    %3209 = vmatmul.mubr.bf16.gmra.mxu0 %v1243
    %v3210 = vpop.f32.mrf.mxu0
    %v3211 = vadd.f32 0.0, %v3210
    %v3212 = vpop.f32.mrf.mxu0
    %v3213 = vpop.f32.mrf.mxu0
    %v3214 = vadd.f32 0.0, %v3213
    %v3215 = vpop.f32.mrf.mxu0
    %3216 = vmatprep.mubr.bf16.mxu0 %v1249
    %3217 = vmatmul.mubr.bf16.gmra.mxu0 %v1248
    %v3218 = vpop.f32.mrf.mxu0
    %v3219 = vadd.f32 0.0, %v3218
    %v3220 = vpop.f32.mrf.mxu0
    %v3221 = vpop.f32.mrf.mxu0
    %v3222 = vadd.f32 0.0, %v3221
    %v3223 = vpop.f32.mrf.mxu0
    %3224 = vdwg.mxu0
    %3225 = vmatprep.subr.bf16.mxu0 0
    %3226 = vmatpush1.bf16.msra.mxu0 %v2855
    %3227 = vmatprep.subr.bf16.mxu0 0
    %3228 = vmatpush1.bf16.msra.mxu0 %v2854
    %3229 = vmatprep.subr.bf16.mxu0 0
    %3230 = vmatpush1.bf16.msra.mxu0 %v2853
    %3231 = vmatprep.subr.bf16.mxu0 0
    %3232 = vmatpush1.bf16.msra.mxu0 %v2852
    %3233 = vmatprep.subr.bf16.mxu0 0
    %3234 = vmatpush1.bf16.msra.mxu0 %v2851
    %3235 = vmatprep.subr.bf16.mxu0 0
    %3236 = vmatpush1.bf16.msra.mxu0 %v2850
    %3237 = vmatprep.subr.bf16.mxu0 0
    %3238 = vmatpush1.bf16.msra.mxu0 %v2849
    %3239 = vmatprep.subr.bf16.mxu0 0
    %3240 = vmatpush1.bf16.msra.mxu0 %v2848
    %3241 = vmatprep.subr.bf16.mxu0 0
    %3242 = vmatpush2.bf16.msra.mxu0 %v2863
    %3243 = vmatprep.subr.bf16.mxu0 0
    %3244 = vmatpush2.bf16.msra.mxu0 %v2862
    %3245 = vmatprep.subr.bf16.mxu0 0
    %3246 = vmatpush2.bf16.msra.mxu0 %v2861
    %3247 = vmatprep.subr.bf16.mxu0 0
    %3248 = vmatpush2.bf16.msra.mxu0 %v2860
    %3249 = vmatprep.subr.bf16.mxu0 0
    %3250 = vmatpush2.bf16.msra.mxu0 %v2859
    %3251 = vmatprep.subr.bf16.mxu0 0
    %3252 = vmatpush2.bf16.msra.mxu0 %v2858
    %3253 = vmatprep.subr.bf16.mxu0 0
    %3254 = vmatpush2.bf16.msra.mxu0 %v2857
    %3255 = vmatprep.subr.bf16.mxu0 0
    %3256 = vmatpush2.bf16.msra.mxu0 %v2856
    %3257 = vmatprep.mubr.bf16.mxu0 %v1056
    %3258 = vmatmul.mubr.bf16.gmra.mxu0 %v1055
    %v3259 = vpop.f32.mrf.mxu0
    %v3260 = vadd.f32 %v2907, %v3259
    %v3261 = vpop.f32.mrf.mxu0
    %v3262 = vpop.f32.mrf.mxu0
    %v3263 = vadd.f32 %v2910, %v3262
    %v3264 = vpop.f32.mrf.mxu0
    %3265 = vmatprep.mubr.bf16.mxu0 %v1061
    %3266 = vmatmul.mubr.bf16.gmra.mxu0 %v1060
    %v3267 = vpop.f32.mrf.mxu0
    %v3268 = vadd.f32 %v2915, %v3267
    %v3269 = vpop.f32.mrf.mxu0
    %v3270 = vpop.f32.mrf.mxu0
    %v3271 = vadd.f32 %v2918, %v3270
    %v3272 = vpop.f32.mrf.mxu0
    %3273 = vmatprep.mubr.bf16.mxu0 %v1066
    %3274 = vmatmul.mubr.bf16.gmra.mxu0 %v1065
    %v3275 = vpop.f32.mrf.mxu0
    %v3276 = vadd.f32 %v2923, %v3275
    %v3277 = vpop.f32.mrf.mxu0
    %v3278 = vpop.f32.mrf.mxu0
    %v3279 = vadd.f32 %v2926, %v3278
    %v3280 = vpop.f32.mrf.mxu0
    %3281 = vmatprep.mubr.bf16.mxu0 %v1071
    %3282 = vmatmul.mubr.bf16.gmra.mxu0 %v1070
    %v3283 = vpop.f32.mrf.mxu0
    %v3284 = vadd.f32 %v2931, %v3283
    %v3285 = vpop.f32.mrf.mxu0
    %v3286 = vpop.f32.mrf.mxu0
    %v3287 = vadd.f32 %v2934, %v3286
    %v3288 = vpop.f32.mrf.mxu0
    %3289 = vmatprep.mubr.bf16.mxu0 %v1076
    %3290 = vmatmul.mubr.bf16.gmra.mxu0 %v1075
    %v3291 = vpop.f32.mrf.mxu0
    %v3292 = vadd.f32 %v2939, %v3291
    %v3293 = vpop.f32.mrf.mxu0
    %v3294 = vpop.f32.mrf.mxu0
    %v3295 = vadd.f32 %v2942, %v3294
    %v3296 = vpop.f32.mrf.mxu0
    %3297 = vmatprep.mubr.bf16.mxu0 %v1081
    %3298 = vmatmul.mubr.bf16.gmra.mxu0 %v1080
    %v3299 = vpop.f32.mrf.mxu0
    %v3300 = vadd.f32 %v2947, %v3299
    %v3301 = vpop.f32.mrf.mxu0
    %v3302 = vpop.f32.mrf.mxu0
    %v3303 = vadd.f32 %v2950, %v3302
    %v3304 = vpop.f32.mrf.mxu0
    %3305 = vmatprep.mubr.bf16.mxu0 %v1086
    %3306 = vmatmul.mubr.bf16.gmra.mxu0 %v1085
    %v3307 = vpop.f32.mrf.mxu0
    %v3308 = vadd.f32 %v2955, %v3307
    %v3309 = vpop.f32.mrf.mxu0
    %v3310 = vpop.f32.mrf.mxu0
    %v3311 = vadd.f32 %v2958, %v3310
    %v3312 = vpop.f32.mrf.mxu0
    %3313 = vmatprep.mubr.bf16.mxu0 %v1091
    %3314 = vmatmul.mubr.bf16.gmra.mxu0 %v1090
    %v3315 = vpop.f32.mrf.mxu0
    %v3316 = vadd.f32 %v2963, %v3315
    %v3317 = vpop.f32.mrf.mxu0
    %v3318 = vpop.f32.mrf.mxu0
    %v3319 = vadd.f32 %v2966, %v3318
    %v3320 = vpop.f32.mrf.mxu0
    %3321 = vmatprep.mubr.bf16.mxu0 %v1096
    %3322 = vmatmul.mubr.bf16.gmra.mxu0 %v1095
    %v3323 = vpop.f32.mrf.mxu0
    %v3324 = vadd.f32 %v2971, %v3323
    %v3325 = vpop.f32.mrf.mxu0
    %v3326 = vpop.f32.mrf.mxu0
    %v3327 = vadd.f32 %v2974, %v3326
    %v3328 = vpop.f32.mrf.mxu0
    %3329 = vmatprep.mubr.bf16.mxu0 %v1101
    %3330 = vmatmul.mubr.bf16.gmra.mxu0 %v1100
    %v3331 = vpop.f32.mrf.mxu0
    %v3332 = vadd.f32 %v2979, %v3331
    %v3333 = vpop.f32.mrf.mxu0
    %v3334 = vpop.f32.mrf.mxu0
    %v3335 = vadd.f32 %v2982, %v3334
    %v3336 = vpop.f32.mrf.mxu0
    %3337 = vmatprep.mubr.bf16.mxu0 %v1106
    %3338 = vmatmul.mubr.bf16.gmra.mxu0 %v1105
    %v3339 = vpop.f32.mrf.mxu0
    %v3340 = vadd.f32 %v2987, %v3339
    %v3341 = vpop.f32.mrf.mxu0
    %v3342 = vpop.f32.mrf.mxu0
    %v3343 = vadd.f32 %v2990, %v3342
    %v3344 = vpop.f32.mrf.mxu0
    %3345 = vmatprep.mubr.bf16.mxu0 %v1111
    %3346 = vmatmul.mubr.bf16.gmra.mxu0 %v1110
    %v3347 = vpop.f32.mrf.mxu0
    %v3348 = vadd.f32 %v2995, %v3347
    %v3349 = vpop.f32.mrf.mxu0
    %v3350 = vpop.f32.mrf.mxu0
    %v3351 = vadd.f32 %v2998, %v3350
    %v3352 = vpop.f32.mrf.mxu0
    %3353 = vmatprep.mubr.bf16.mxu0 %v1116
    %3354 = vmatmul.mubr.bf16.gmra.mxu0 %v1115
    %v3355 = vpop.f32.mrf.mxu0
    %v3356 = vadd.f32 %v3003, %v3355
    %v3357 = vpop.f32.mrf.mxu0
    %v3358 = vpop.f32.mrf.mxu0
    %v3359 = vadd.f32 %v3006, %v3358
    %v3360 = vpop.f32.mrf.mxu0
    %3361 = vmatprep.mubr.bf16.mxu0 %v1121
    %3362 = vmatmul.mubr.bf16.gmra.mxu0 %v1120
    %v3363 = vpop.f32.mrf.mxu0
    %v3364 = vadd.f32 %v3011, %v3363
    %v3365 = vpop.f32.mrf.mxu0
    %v3366 = vpop.f32.mrf.mxu0
    %v3367 = vadd.f32 %v3014, %v3366
    %v3368 = vpop.f32.mrf.mxu0
    %3369 = vmatprep.mubr.bf16.mxu0 %v1126
    %3370 = vmatmul.mubr.bf16.gmra.mxu0 %v1125
    %v3371 = vpop.f32.mrf.mxu0
    %v3372 = vadd.f32 %v3019, %v3371
    %v3373 = vpop.f32.mrf.mxu0
    %v3374 = vpop.f32.mrf.mxu0
    %v3375 = vadd.f32 %v3022, %v3374
    %v3376 = vpop.f32.mrf.mxu0
    %3377 = vmatprep.mubr.bf16.mxu0 %v1131
    %3378 = vmatmul.mubr.bf16.gmra.mxu0 %v1130
    %v3379 = vpop.f32.mrf.mxu0
    %v3380 = vadd.f32 %v3027, %v3379
    %v3381 = vpop.f32.mrf.mxu0
    %v3382 = vpop.f32.mrf.mxu0
    %v3383 = vadd.f32 %v3030, %v3382
    %v3384 = vpop.f32.mrf.mxu0
    %3385 = vmatprep.mubr.bf16.mxu0 %v1136
    %3386 = vmatmul.mubr.bf16.gmra.mxu0 %v1135
    %v3387 = vpop.f32.mrf.mxu0
    %v3388 = vadd.f32 %v3035, %v3387
    %v3389 = vpop.f32.mrf.mxu0
    %v3390 = vpop.f32.mrf.mxu0
    %v3391 = vadd.f32 %v3038, %v3390
    %v3392 = vpop.f32.mrf.mxu0
    %3393 = vmatprep.mubr.bf16.mxu0 %v1141
    %3394 = vmatmul.mubr.bf16.gmra.mxu0 %v1140
    %v3395 = vpop.f32.mrf.mxu0
    %v3396 = vadd.f32 %v3043, %v3395
    %v3397 = vpop.f32.mrf.mxu0
    %v3398 = vpop.f32.mrf.mxu0
    %v3399 = vadd.f32 %v3046, %v3398
    %v3400 = vpop.f32.mrf.mxu0
    %3401 = vmatprep.mubr.bf16.mxu0 %v1146
    %3402 = vmatmul.mubr.bf16.gmra.mxu0 %v1145
    %v3403 = vpop.f32.mrf.mxu0
    %v3404 = vadd.f32 %v3051, %v3403
    %v3405 = vpop.f32.mrf.mxu0
    %v3406 = vpop.f32.mrf.mxu0
    %v3407 = vadd.f32 %v3054, %v3406
    %v3408 = vpop.f32.mrf.mxu0
    %3409 = vmatprep.mubr.bf16.mxu0 %v1151
    %3410 = vmatmul.mubr.bf16.gmra.mxu0 %v1150
    %v3411 = vpop.f32.mrf.mxu0
    %v3412 = vadd.f32 %v3059, %v3411
    %v3413 = vpop.f32.mrf.mxu0
    %v3414 = vpop.f32.mrf.mxu0
    %v3415 = vadd.f32 %v3062, %v3414
    %v3416 = vpop.f32.mrf.mxu0
    %3417 = vmatprep.mubr.bf16.mxu0 %v1156
    %3418 = vmatmul.mubr.bf16.gmra.mxu0 %v1155
    %v3419 = vpop.f32.mrf.mxu0
    %v3420 = vadd.f32 %v3067, %v3419
    %v3421 = vpop.f32.mrf.mxu0
    %v3422 = vpop.f32.mrf.mxu0
    %v3423 = vadd.f32 %v3070, %v3422
    %v3424 = vpop.f32.mrf.mxu0
    %3425 = vmatprep.mubr.bf16.mxu0 %v1161
    %3426 = vmatmul.mubr.bf16.gmra.mxu0 %v1160
    %v3427 = vpop.f32.mrf.mxu0
    %v3428 = vadd.f32 %v3075, %v3427
    %v3429 = vpop.f32.mrf.mxu0
    %v3430 = vpop.f32.mrf.mxu0
    %v3431 = vadd.f32 %v3078, %v3430
    %v3432 = vpop.f32.mrf.mxu0
    %3433 = vmatprep.mubr.bf16.mxu0 %v1166
    %3434 = vmatmul.mubr.bf16.gmra.mxu0 %v1165
    %v3435 = vpop.f32.mrf.mxu0
    %v3436 = vadd.f32 %v3083, %v3435
    %v3437 = vpop.f32.mrf.mxu0
    %v3438 = vpop.f32.mrf.mxu0
    %v3439 = vadd.f32 %v3086, %v3438
    %v3440 = vpop.f32.mrf.mxu0
    %3441 = vmatprep.mubr.bf16.mxu0 %v1171
    %3442 = vmatmul.mubr.bf16.gmra.mxu0 %v1170
    %v3443 = vpop.f32.mrf.mxu0
    %v3444 = vadd.f32 %v3091, %v3443
    %v3445 = vpop.f32.mrf.mxu0
    %v3446 = vpop.f32.mrf.mxu0
    %v3447 = vadd.f32 %v3094, %v3446
    %v3448 = vpop.f32.mrf.mxu0
    %3449 = vmatprep.mubr.bf16.mxu0 %v1176
    %3450 = vmatmul.mubr.bf16.gmra.mxu0 %v1175
    %v3451 = vpop.f32.mrf.mxu0
    %v3452 = vadd.f32 %v3099, %v3451
    %v3453 = vpop.f32.mrf.mxu0
    %v3454 = vpop.f32.mrf.mxu0
    %v3455 = vadd.f32 %v3102, %v3454
    %v3456 = vpop.f32.mrf.mxu0
    %3457 = vmatprep.mubr.bf16.mxu0 %v1181
    %3458 = vmatmul.mubr.bf16.gmra.mxu0 %v1180
    %v3459 = vpop.f32.mrf.mxu0
    %v3460 = vadd.f32 %v3107, %v3459
    %v3461 = vpop.f32.mrf.mxu0
    %v3462 = vpop.f32.mrf.mxu0
    %v3463 = vadd.f32 %v3110, %v3462
    %v3464 = vpop.f32.mrf.mxu0
    %3465 = vmatprep.mubr.bf16.mxu0 %v1186
    %3466 = vmatmul.mubr.bf16.gmra.mxu0 %v1185
    %v3467 = vpop.f32.mrf.mxu0
    %v3468 = vadd.f32 %v3115, %v3467
    %v3469 = vpop.f32.mrf.mxu0
    %v3470 = vpop.f32.mrf.mxu0
    %v3471 = vadd.f32 %v3118, %v3470
    %v3472 = vpop.f32.mrf.mxu0
    %3473 = vmatprep.mubr.bf16.mxu0 %v1191
    %3474 = vmatmul.mubr.bf16.gmra.mxu0 %v1190
    %v3475 = vpop.f32.mrf.mxu0
    %v3476 = vadd.f32 %v3123, %v3475
    %v3477 = vpop.f32.mrf.mxu0
    %v3478 = vpop.f32.mrf.mxu0
    %v3479 = vadd.f32 %v3126, %v3478
    %v3480 = vpop.f32.mrf.mxu0
    %3481 = vmatprep.mubr.bf16.mxu0 %v1196
    %3482 = vmatmul.mubr.bf16.gmra.mxu0 %v1195
    %v3483 = vpop.f32.mrf.mxu0
    %v3484 = vadd.f32 %v3131, %v3483
    %v3485 = vpop.f32.mrf.mxu0
    %v3486 = vpop.f32.mrf.mxu0
    %v3487 = vadd.f32 %v3134, %v3486
    %v3488 = vpop.f32.mrf.mxu0
    %3489 = vmatprep.mubr.bf16.mxu0 %v1201
    %3490 = vmatmul.mubr.bf16.gmra.mxu0 %v1200
    %v3491 = vpop.f32.mrf.mxu0
    %v3492 = vadd.f32 %v3139, %v3491
    %v3493 = vpop.f32.mrf.mxu0
    %v3494 = vpop.f32.mrf.mxu0
    %v3495 = vadd.f32 %v3142, %v3494
    %v3496 = vpop.f32.mrf.mxu0
    %3497 = vmatprep.mubr.bf16.mxu0 %v1206
    %3498 = vmatmul.mubr.bf16.gmra.mxu0 %v1205
    %v3499 = vpop.f32.mrf.mxu0
    %v3500 = vadd.f32 %v3147, %v3499
    %v3501 = vpop.f32.mrf.mxu0
    %v3502 = vpop.f32.mrf.mxu0
    %v3503 = vadd.f32 %v3150, %v3502
    %v3504 = vpop.f32.mrf.mxu0
    %3505 = vmatprep.mubr.bf16.mxu0 %v1211
    %3506 = vmatmul.mubr.bf16.gmra.mxu0 %v1210
    %v3507 = vpop.f32.mrf.mxu0
    %v3508 = vadd.f32 %v3155, %v3507
    %v3509 = vpop.f32.mrf.mxu0
    %v3510 = vpop.f32.mrf.mxu0
    %v3511 = vadd.f32 %v3158, %v3510
    %v3512 = vpop.f32.mrf.mxu0
    %3513 = vmatprep.mubr.bf16.mxu0 %v1216
    %3514 = vmatmul.mubr.bf16.gmra.mxu0 %v1215
    %v3515 = vpop.f32.mrf.mxu0
    %v3516 = vadd.f32 %v3163, %v3515
    %v3517 = vpop.f32.mrf.mxu0
    %v3518 = vpop.f32.mrf.mxu0
    %v3519 = vadd.f32 %v3166, %v3518
    %v3520 = vpop.f32.mrf.mxu0
    %3521 = vmatprep.mubr.bf16.mxu0 %v1221
    %3522 = vmatmul.mubr.bf16.gmra.mxu0 %v1220
    %v3523 = vpop.f32.mrf.mxu0
    %v3524 = vadd.f32 %v3171, %v3523
    %v3525 = vpop.f32.mrf.mxu0
    %v3526 = vpop.f32.mrf.mxu0
    %v3527 = vadd.f32 %v3174, %v3526
    %v3528 = vpop.f32.mrf.mxu0
    %3529 = vmatprep.mubr.bf16.mxu0 %v1226
    %3530 = vmatmul.mubr.bf16.gmra.mxu0 %v1225
    %v3531 = vpop.f32.mrf.mxu0
    %v3532 = vadd.f32 %v3179, %v3531
    %v3533 = vpop.f32.mrf.mxu0
    %v3534 = vpop.f32.mrf.mxu0
    %v3535 = vadd.f32 %v3182, %v3534
    %v3536 = vpop.f32.mrf.mxu0
    %3537 = vmatprep.mubr.bf16.mxu0 %v1231
    %3538 = vmatmul.mubr.bf16.gmra.mxu0 %v1230
    %v3539 = vpop.f32.mrf.mxu0
    %v3540 = vadd.f32 %v3187, %v3539
    %v3541 = vpop.f32.mrf.mxu0
    %v3542 = vpop.f32.mrf.mxu0
    %v3543 = vadd.f32 %v3190, %v3542
    %v3544 = vpop.f32.mrf.mxu0
    %3545 = vmatprep.mubr.bf16.mxu0 %v1236
    %3546 = vmatmul.mubr.bf16.gmra.mxu0 %v1235
    %v3547 = vpop.f32.mrf.mxu0
    %v3548 = vadd.f32 %v3195, %v3547
    %v3549 = vpop.f32.mrf.mxu0
    %v3550 = vpop.f32.mrf.mxu0
    %v3551 = vadd.f32 %v3198, %v3550
    %v3552 = vpop.f32.mrf.mxu0
    %3553 = vmatprep.mubr.bf16.mxu0 %v1241
    %3554 = vmatmul.mubr.bf16.gmra.mxu0 %v1240
    %v3555 = vpop.f32.mrf.mxu0
    %v3556 = vadd.f32 %v3203, %v3555
    %v3557 = vpop.f32.mrf.mxu0
    %v3558 = vpop.f32.mrf.mxu0
    %v3559 = vadd.f32 %v3206, %v3558
    %v3560 = vpop.f32.mrf.mxu0
    %3561 = vmatprep.mubr.bf16.mxu0 %v1246
    %3562 = vmatmul.mubr.bf16.gmra.mxu0 %v1245
    %v3563 = vpop.f32.mrf.mxu0
    %v3564 = vadd.f32 %v3211, %v3563
    %v3565 = vpop.f32.mrf.mxu0
    %v3566 = vpop.f32.mrf.mxu0
    %v3567 = vadd.f32 %v3214, %v3566
    %v3568 = vpop.f32.mrf.mxu0
    %3569 = vmatprep.mubr.bf16.mxu0 %v1251
    %3570 = vmatmul.mubr.bf16.gmra.mxu0 %v1250
    %v3571 = vpop.f32.mrf.mxu0
    %v3572 = vadd.f32 %v3219, %v3571
    %v3573 = vpop.f32.mrf.mxu0
    %v3574 = vpop.f32.mrf.mxu0
    %v3575 = vadd.f32 %v3222, %v3574
    %v3576 = vpop.f32.mrf.mxu0
    %3577 = vdwg.mxu0
    %3578 = vmatprep.subr.bf16.mxu0 0
    %3579 = vmatpush1.bf16.msra.mxu0 %v2871
    %3580 = vmatprep.subr.bf16.mxu0 0
    %3581 = vmatpush1.bf16.msra.mxu0 %v2870
    %3582 = vmatprep.subr.bf16.mxu0 0
    %3583 = vmatpush1.bf16.msra.mxu0 %v2869
    %3584 = vmatprep.subr.bf16.mxu0 0
    %3585 = vmatpush1.bf16.msra.mxu0 %v2868
    %3586 = vmatprep.subr.bf16.mxu0 0
    %3587 = vmatpush1.bf16.msra.mxu0 %v2867
    %3588 = vmatprep.subr.bf16.mxu0 0
    %3589 = vmatpush1.bf16.msra.mxu0 %v2866
    %3590 = vmatprep.subr.bf16.mxu0 0
    %3591 = vmatpush1.bf16.msra.mxu0 %v2865
    %3592 = vmatprep.subr.bf16.mxu0 0
    %3593 = vmatpush1.bf16.msra.mxu0 %v2864
    %3594 = vmatprep.subr.bf16.mxu0 0
    %3595 = vmatpush2.bf16.msra.mxu0 0
    %3596 = vmatprep.subr.bf16.mxu0 0
    %3597 = vmatpush2.bf16.msra.mxu0 0
    %3598 = vmatprep.subr.bf16.mxu0 0
    %3599 = vmatpush2.bf16.msra.mxu0 0
    %3600 = vmatprep.subr.bf16.mxu0 0
    %3601 = vmatpush2.bf16.msra.mxu0 0
    %3602 = vmatprep.subr.bf16.mxu0 0
    %3603 = vmatpush2.bf16.msra.mxu0 0
    %3604 = vmatprep.subr.bf16.mxu0 0
    %3605 = vmatpush2.bf16.msra.mxu0 0
    %3606 = vmatprep.subr.bf16.mxu0 0
    %3607 = vmatpush2.bf16.msra.mxu0 0
    %3608 = vmatprep.subr.bf16.mxu0 0
    %3609 = vmatpush2.bf16.msra.mxu0 0
    %3610 = vmatprep.mubr.bf16.mxu0 0
    %3611 = vmatmul.mubr.bf16.gmra.mxu0 %v1057
    %v3612 = vpop.f32.mrf.mxu0
    %v3613 = vadd.f32 %v3260, %v3612
    %v3614 = vpop.f32.mrf.mxu0
    %v3615 = vpop.f32.mrf.mxu0
    %v3616 = vadd.f32 %v3263, %v3615
    %v3617 = vpop.f32.mrf.mxu0
    %3618 = vmatprep.mubr.bf16.mxu0 0
    %3619 = vmatmul.mubr.bf16.gmra.mxu0 %v1062
    %v3620 = vpop.f32.mrf.mxu0
    %v3621 = vadd.f32 %v3268, %v3620
    %v3622 = vpop.f32.mrf.mxu0
    %v3623 = vpop.f32.mrf.mxu0
    %v3624 = vadd.f32 %v3271, %v3623
    %v3625 = vpop.f32.mrf.mxu0
    %3626 = vmatprep.mubr.bf16.mxu0 0
    %3627 = vmatmul.mubr.bf16.gmra.mxu0 %v1067
    %v3628 = vpop.f32.mrf.mxu0
    %v3629 = vadd.f32 %v3276, %v3628
    %v3630 = vpop.f32.mrf.mxu0
    %v3631 = vpop.f32.mrf.mxu0
    %v3632 = vadd.f32 %v3279, %v3631
    %v3633 = vpop.f32.mrf.mxu0
    %3634 = vmatprep.mubr.bf16.mxu0 0
    %3635 = vmatmul.mubr.bf16.gmra.mxu0 %v1072
    %v3636 = vpop.f32.mrf.mxu0
    %v3637 = vadd.f32 %v3284, %v3636
    %v3638 = vpop.f32.mrf.mxu0
    %v3639 = vpop.f32.mrf.mxu0
    %v3640 = vadd.f32 %v3287, %v3639
    %v3641 = vpop.f32.mrf.mxu0
    %3642 = vmatprep.mubr.bf16.mxu0 0
    %3643 = vmatmul.mubr.bf16.gmra.mxu0 %v1077
    %v3644 = vpop.f32.mrf.mxu0
    %v3645 = vadd.f32 %v3292, %v3644
    %v3646 = vpop.f32.mrf.mxu0
    %v3647 = vpop.f32.mrf.mxu0
    %v3648 = vadd.f32 %v3295, %v3647
    %v3649 = vpop.f32.mrf.mxu0
    %3650 = vmatprep.mubr.bf16.mxu0 0
    %3651 = vmatmul.mubr.bf16.gmra.mxu0 %v1082
    %v3652 = vpop.f32.mrf.mxu0
    %v3653 = vadd.f32 %v3300, %v3652
    %v3654 = vpop.f32.mrf.mxu0
    %v3655 = vpop.f32.mrf.mxu0
    %v3656 = vadd.f32 %v3303, %v3655
    %v3657 = vpop.f32.mrf.mxu0
    %3658 = vmatprep.mubr.bf16.mxu0 0
    %3659 = vmatmul.mubr.bf16.gmra.mxu0 %v1087
    %v3660 = vpop.f32.mrf.mxu0
    %v3661 = vadd.f32 %v3308, %v3660
    %v3662 = vpop.f32.mrf.mxu0
    %v3663 = vpop.f32.mrf.mxu0
    %v3664 = vadd.f32 %v3311, %v3663
    %v3665 = vpop.f32.mrf.mxu0
    %3666 = vmatprep.mubr.bf16.mxu0 0
    %3667 = vmatmul.mubr.bf16.gmra.mxu0 %v1092
    %v3668 = vpop.f32.mrf.mxu0
    %v3669 = vadd.f32 %v3316, %v3668
    %v3670 = vpop.f32.mrf.mxu0
    %v3671 = vpop.f32.mrf.mxu0
    %v3672 = vadd.f32 %v3319, %v3671
    %v3673 = vpop.f32.mrf.mxu0
    %3674 = vmatprep.mubr.bf16.mxu0 0
    %3675 = vmatmul.mubr.bf16.gmra.mxu0 %v1097
    %v3676 = vpop.f32.mrf.mxu0
    %v3677 = vadd.f32 %v3324, %v3676
    %v3678 = vpop.f32.mrf.mxu0
    %v3679 = vpop.f32.mrf.mxu0
    %v3680 = vadd.f32 %v3327, %v3679
    %v3681 = vpop.f32.mrf.mxu0
    %3682 = vmatprep.mubr.bf16.mxu0 0
    %3683 = vmatmul.mubr.bf16.gmra.mxu0 %v1102
    %v3684 = vpop.f32.mrf.mxu0
    %v3685 = vadd.f32 %v3332, %v3684
    %v3686 = vpop.f32.mrf.mxu0
    %v3687 = vpop.f32.mrf.mxu0
    %v3688 = vadd.f32 %v3335, %v3687
    %v3689 = vpop.f32.mrf.mxu0
    %3690 = vmatprep.mubr.bf16.mxu0 0
    %3691 = vmatmul.mubr.bf16.gmra.mxu0 %v1107
    %v3692 = vpop.f32.mrf.mxu0
    %v3693 = vadd.f32 %v3340, %v3692
    %v3694 = vpop.f32.mrf.mxu0
    %v3695 = vpop.f32.mrf.mxu0
    %v3696 = vadd.f32 %v3343, %v3695
    %v3697 = vpop.f32.mrf.mxu0
    %3698 = vmatprep.mubr.bf16.mxu0 0
    %3699 = vmatmul.mubr.bf16.gmra.mxu0 %v1112
    %v3700 = vpop.f32.mrf.mxu0
    %v3701 = vadd.f32 %v3348, %v3700
    %v3702 = vpop.f32.mrf.mxu0
    %v3703 = vpop.f32.mrf.mxu0
    %v3704 = vadd.f32 %v3351, %v3703
    %v3705 = vpop.f32.mrf.mxu0
    %3706 = vmatprep.mubr.bf16.mxu0 0
    %3707 = vmatmul.mubr.bf16.gmra.mxu0 %v1117
    %v3708 = vpop.f32.mrf.mxu0
    %v3709 = vadd.f32 %v3356, %v3708
    %v3710 = vpop.f32.mrf.mxu0
    %v3711 = vpop.f32.mrf.mxu0
    %v3712 = vadd.f32 %v3359, %v3711
    %v3713 = vpop.f32.mrf.mxu0
    %3714 = vmatprep.mubr.bf16.mxu0 0
    %3715 = vmatmul.mubr.bf16.gmra.mxu0 %v1122
    %v3716 = vpop.f32.mrf.mxu0
    %v3717 = vadd.f32 %v3364, %v3716
    %v3718 = vpop.f32.mrf.mxu0
    %v3719 = vpop.f32.mrf.mxu0
    %v3720 = vadd.f32 %v3367, %v3719
    %v3721 = vpop.f32.mrf.mxu0
    %3722 = vmatprep.mubr.bf16.mxu0 0
    %3723 = vmatmul.mubr.bf16.gmra.mxu0 %v1127
    %v3724 = vpop.f32.mrf.mxu0
    %v3725 = vadd.f32 %v3372, %v3724
    %v3726 = vpop.f32.mrf.mxu0
    %v3727 = vpop.f32.mrf.mxu0
    %v3728 = vadd.f32 %v3375, %v3727
    %v3729 = vpop.f32.mrf.mxu0
    %3730 = vmatprep.mubr.bf16.mxu0 0
    %3731 = vmatmul.mubr.bf16.gmra.mxu0 %v1132
    %v3732 = vpop.f32.mrf.mxu0
    %v3733 = vadd.f32 %v3380, %v3732
    %v3734 = vpop.f32.mrf.mxu0
    %v3735 = vpop.f32.mrf.mxu0
    %v3736 = vadd.f32 %v3383, %v3735
    %v3737 = vpop.f32.mrf.mxu0
    %3738 = vmatprep.mubr.bf16.mxu0 0
    %3739 = vmatmul.mubr.bf16.gmra.mxu0 %v1137
    %v3740 = vpop.f32.mrf.mxu0
    %v3741 = vadd.f32 %v3388, %v3740
    %v3742 = vpop.f32.mrf.mxu0
    %v3743 = vpop.f32.mrf.mxu0
    %v3744 = vadd.f32 %v3391, %v3743
    %v3745 = vpop.f32.mrf.mxu0
    %3746 = vmatprep.mubr.bf16.mxu0 0
    %3747 = vmatmul.mubr.bf16.gmra.mxu0 %v1142
    %v3748 = vpop.f32.mrf.mxu0
    %v3749 = vadd.f32 %v3396, %v3748
    %v3750 = vpop.f32.mrf.mxu0
    %v3751 = vpop.f32.mrf.mxu0
    %v3752 = vadd.f32 %v3399, %v3751
    %v3753 = vpop.f32.mrf.mxu0
    %3754 = vmatprep.mubr.bf16.mxu0 0
    %3755 = vmatmul.mubr.bf16.gmra.mxu0 %v1147
    %v3756 = vpop.f32.mrf.mxu0
    %v3757 = vadd.f32 %v3404, %v3756
    %v3758 = vpop.f32.mrf.mxu0
    %v3759 = vpop.f32.mrf.mxu0
    %v3760 = vadd.f32 %v3407, %v3759
    %v3761 = vpop.f32.mrf.mxu0
    %3762 = vmatprep.mubr.bf16.mxu0 0
    %3763 = vmatmul.mubr.bf16.gmra.mxu0 %v1152
    %v3764 = vpop.f32.mrf.mxu0
    %v3765 = vadd.f32 %v3412, %v3764
    %v3766 = vpop.f32.mrf.mxu0
    %v3767 = vpop.f32.mrf.mxu0
    %v3768 = vadd.f32 %v3415, %v3767
    %v3769 = vpop.f32.mrf.mxu0
    %3770 = vmatprep.mubr.bf16.mxu0 0
    %3771 = vmatmul.mubr.bf16.gmra.mxu0 %v1157
    %v3772 = vpop.f32.mrf.mxu0
    %v3773 = vadd.f32 %v3420, %v3772
    %v3774 = vpop.f32.mrf.mxu0
    %v3775 = vpop.f32.mrf.mxu0
    %v3776 = vadd.f32 %v3423, %v3775
    %v3777 = vpop.f32.mrf.mxu0
    %3778 = vmatprep.mubr.bf16.mxu0 0
    %3779 = vmatmul.mubr.bf16.gmra.mxu0 %v1162
    %v3780 = vpop.f32.mrf.mxu0
    %v3781 = vadd.f32 %v3428, %v3780
    %v3782 = vpop.f32.mrf.mxu0
    %v3783 = vpop.f32.mrf.mxu0
    %v3784 = vadd.f32 %v3431, %v3783
    %v3785 = vpop.f32.mrf.mxu0
    %3786 = vmatprep.mubr.bf16.mxu0 0
    %3787 = vmatmul.mubr.bf16.gmra.mxu0 %v1167
    %v3788 = vpop.f32.mrf.mxu0
    %v3789 = vadd.f32 %v3436, %v3788
    %v3790 = vpop.f32.mrf.mxu0
    %v3791 = vpop.f32.mrf.mxu0
    %v3792 = vadd.f32 %v3439, %v3791
    %v3793 = vpop.f32.mrf.mxu0
    %3794 = vmatprep.mubr.bf16.mxu0 0
    %3795 = vmatmul.mubr.bf16.gmra.mxu0 %v1172
    %v3796 = vpop.f32.mrf.mxu0
    %v3797 = vadd.f32 %v3444, %v3796
    %v3798 = vpop.f32.mrf.mxu0
    %v3799 = vpop.f32.mrf.mxu0
    %v3800 = vadd.f32 %v3447, %v3799
    %v3801 = vpop.f32.mrf.mxu0
    %3802 = vmatprep.mubr.bf16.mxu0 0
    %3803 = vmatmul.mubr.bf16.gmra.mxu0 %v1177
    %v3804 = vpop.f32.mrf.mxu0
    %v3805 = vadd.f32 %v3452, %v3804
    %v3806 = vpop.f32.mrf.mxu0
    %v3807 = vpop.f32.mrf.mxu0
    %v3808 = vadd.f32 %v3455, %v3807
    %v3809 = vpop.f32.mrf.mxu0
    %3810 = vmatprep.mubr.bf16.mxu0 0
    %3811 = vmatmul.mubr.bf16.gmra.mxu0 %v1182
    %v3812 = vpop.f32.mrf.mxu0
    %v3813 = vadd.f32 %v3460, %v3812
    %v3814 = vpop.f32.mrf.mxu0
    %v3815 = vpop.f32.mrf.mxu0
    %v3816 = vadd.f32 %v3463, %v3815
    %v3817 = vpop.f32.mrf.mxu0
    %3818 = vmatprep.mubr.bf16.mxu0 0
    %3819 = vmatmul.mubr.bf16.gmra.mxu0 %v1187
    %v3820 = vpop.f32.mrf.mxu0
    %v3821 = vadd.f32 %v3468, %v3820
    %v3822 = vpop.f32.mrf.mxu0
    %v3823 = vpop.f32.mrf.mxu0
    %v3824 = vadd.f32 %v3471, %v3823
    %v3825 = vpop.f32.mrf.mxu0
    %3826 = vmatprep.mubr.bf16.mxu0 0
    %3827 = vmatmul.mubr.bf16.gmra.mxu0 %v1192
    %v3828 = vpop.f32.mrf.mxu0
    %v3829 = vadd.f32 %v3476, %v3828
    %v3830 = vpop.f32.mrf.mxu0
    %v3831 = vpop.f32.mrf.mxu0
    %v3832 = vadd.f32 %v3479, %v3831
    %v3833 = vpop.f32.mrf.mxu0
    %3834 = vmatprep.mubr.bf16.mxu0 0
    %3835 = vmatmul.mubr.bf16.gmra.mxu0 %v1197
    %v3836 = vpop.f32.mrf.mxu0
    %v3837 = vadd.f32 %v3484, %v3836
    %v3838 = vpop.f32.mrf.mxu0
    %v3839 = vpop.f32.mrf.mxu0
    %v3840 = vadd.f32 %v3487, %v3839
    %v3841 = vpop.f32.mrf.mxu0
    %3842 = vmatprep.mubr.bf16.mxu0 0
    %3843 = vmatmul.mubr.bf16.gmra.mxu0 %v1202
    %v3844 = vpop.f32.mrf.mxu0
    %v3845 = vadd.f32 %v3492, %v3844
    %v3846 = vpop.f32.mrf.mxu0
    %v3847 = vpop.f32.mrf.mxu0
    %v3848 = vadd.f32 %v3495, %v3847
    %v3849 = vpop.f32.mrf.mxu0
    %3850 = vmatprep.mubr.bf16.mxu0 0
    %3851 = vmatmul.mubr.bf16.gmra.mxu0 %v1207
    %v3852 = vpop.f32.mrf.mxu0
    %v3853 = vadd.f32 %v3500, %v3852
    %v3854 = vpop.f32.mrf.mxu0
    %v3855 = vpop.f32.mrf.mxu0
    %v3856 = vadd.f32 %v3503, %v3855
    %v3857 = vpop.f32.mrf.mxu0
    %3858 = vmatprep.mubr.bf16.mxu0 0
    %3859 = vmatmul.mubr.bf16.gmra.mxu0 %v1212
    %v3860 = vpop.f32.mrf.mxu0
    %v3861 = vadd.f32 %v3508, %v3860
    %v3862 = vpop.f32.mrf.mxu0
    %v3863 = vpop.f32.mrf.mxu0
    %v3864 = vadd.f32 %v3511, %v3863
    %v3865 = vpop.f32.mrf.mxu0
    %3866 = vmatprep.mubr.bf16.mxu0 0
    %3867 = vmatmul.mubr.bf16.gmra.mxu0 %v1217
    %v3868 = vpop.f32.mrf.mxu0
    %v3869 = vadd.f32 %v3516, %v3868
    %v3870 = vpop.f32.mrf.mxu0
    %v3871 = vpop.f32.mrf.mxu0
    %v3872 = vadd.f32 %v3519, %v3871
    %v3873 = vpop.f32.mrf.mxu0
    %3874 = vmatprep.mubr.bf16.mxu0 0
    %3875 = vmatmul.mubr.bf16.gmra.mxu0 %v1222
    %v3876 = vpop.f32.mrf.mxu0
    %v3877 = vadd.f32 %v3524, %v3876
    %v3878 = vpop.f32.mrf.mxu0
    %v3879 = vpop.f32.mrf.mxu0
    %v3880 = vadd.f32 %v3527, %v3879
    %v3881 = vpop.f32.mrf.mxu0
    %3882 = vmatprep.mubr.bf16.mxu0 0
    %3883 = vmatmul.mubr.bf16.gmra.mxu0 %v1227
    %v3884 = vpop.f32.mrf.mxu0
    %v3885 = vadd.f32 %v3532, %v3884
    %v3886 = vpop.f32.mrf.mxu0
    %v3887 = vpop.f32.mrf.mxu0
    %v3888 = vadd.f32 %v3535, %v3887
    %v3889 = vpop.f32.mrf.mxu0
    %3890 = vmatprep.mubr.bf16.mxu0 0
    %3891 = vmatmul.mubr.bf16.gmra.mxu0 %v1232
    %v3892 = vpop.f32.mrf.mxu0
    %v3893 = vadd.f32 %v3540, %v3892
    %v3894 = vpop.f32.mrf.mxu0
    %v3895 = vpop.f32.mrf.mxu0
    %v3896 = vadd.f32 %v3543, %v3895
    %v3897 = vpop.f32.mrf.mxu0
    %3898 = vmatprep.mubr.bf16.mxu0 0
    %3899 = vmatmul.mubr.bf16.gmra.mxu0 %v1237
    %v3900 = vpop.f32.mrf.mxu0
    %v3901 = vadd.f32 %v3548, %v3900
    %v3902 = vpop.f32.mrf.mxu0
    %v3903 = vpop.f32.mrf.mxu0
    %v3904 = vadd.f32 %v3551, %v3903
    %v3905 = vpop.f32.mrf.mxu0
    %3906 = vmatprep.mubr.bf16.mxu0 0
    %3907 = vmatmul.mubr.bf16.gmra.mxu0 %v1242
    %v3908 = vpop.f32.mrf.mxu0
    %v3909 = vadd.f32 %v3556, %v3908
    %v3910 = vpop.f32.mrf.mxu0
    %v3911 = vpop.f32.mrf.mxu0
    %v3912 = vadd.f32 %v3559, %v3911
    %v3913 = vpop.f32.mrf.mxu0
    %3914 = vmatprep.mubr.bf16.mxu0 0
    %3915 = vmatmul.mubr.bf16.gmra.mxu0 %v1247
    %v3916 = vpop.f32.mrf.mxu0
    %v3917 = vadd.f32 %v3564, %v3916
    %v3918 = vpop.f32.mrf.mxu0
    %v3919 = vpop.f32.mrf.mxu0
    %v3920 = vadd.f32 %v3567, %v3919
    %v3921 = vpop.f32.mrf.mxu0
    %3922 = vmatprep.mubr.bf16.mxu0 0
    %3923 = vmatmul.mubr.bf16.gmra.mxu0 %v1252
    %v3924 = vpop.f32.mrf.mxu0
    %v3925 = vadd.f32 %v3572, %v3924
    %v3926 = vpop.f32.mrf.mxu0
    %v3927 = vpop.f32.mrf.mxu0
    %v3928 = vadd.f32 %v3575, %v3927
    %v3929 = vpop.f32.mrf.mxu0
    %3930 = vdwg.mxu0
    %v3931 = vpack.c.bf16 %v3616, %v3613
    %v3932 = vpack.c.bf16 %v3624, %v3621
    %v3933 = vpack.c.bf16 %v3632, %v3629
    %v3934 = vpack.c.bf16 %v3640, %v3637
    %v3935 = vpack.c.bf16 %v3648, %v3645
    %v3936 = vpack.c.bf16 %v3656, %v3653
    %v3937 = vpack.c.bf16 %v3664, %v3661
    %v3938 = vpack.c.bf16 %v3672, %v3669
    %v3939 = vpack.c.bf16 %v3680, %v3677
    %v3940 = vpack.c.bf16 %v3688, %v3685
    %v3941 = vpack.c.bf16 %v3696, %v3693
    %v3942 = vpack.c.bf16 %v3704, %v3701
    %v3943 = vpack.c.bf16 %v3712, %v3709
    %v3944 = vpack.c.bf16 %v3720, %v3717
    %v3945 = vpack.c.bf16 %v3728, %v3725
    %v3946 = vpack.c.bf16 %v3736, %v3733
    %v3947 = vpack.c.bf16 %v3744, %v3741
    %v3948 = vpack.c.bf16 %v3752, %v3749
    %v3949 = vpack.c.bf16 %v3760, %v3757
    %v3950 = vpack.c.bf16 %v3768, %v3765
    %v3951 = vpack.c.bf16 %v3776, %v3773
    %v3952 = vpack.c.bf16 %v3784, %v3781
    %v3953 = vpack.c.bf16 %v3792, %v3789
    %v3954 = vpack.c.bf16 %v3800, %v3797
    %v3955 = vpack.c.bf16 %v3808, %v3805
    %v3956 = vpack.c.bf16 %v3816, %v3813
    %v3957 = vpack.c.bf16 %v3824, %v3821
    %v3958 = vpack.c.bf16 %v3832, %v3829
    %v3959 = vpack.c.bf16 %v3840, %v3837
    %v3960 = vpack.c.bf16 %v3848, %v3845
    %v3961 = vpack.c.bf16 %v3856, %v3853
    %v3962 = vpack.c.bf16 %v3864, %v3861
    %v3963 = vpack.c.bf16 %v3872, %v3869
    %v3964 = vpack.c.bf16 %v3880, %v3877
    %v3965 = vpack.c.bf16 %v3888, %v3885
    %v3966 = vpack.c.bf16 %v3896, %v3893
    %v3967 = vpack.c.bf16 %v3904, %v3901
    %v3968 = vpack.c.bf16 %v3912, %v3909
    %v3969 = vpack.c.bf16 %v3920, %v3917
    %v3970 = vpack.c.bf16 %v3928, %v3925
    %v3971 = vld [vmem:[#allocation7] sm:$0xf]
    %v3972 = vld [vmem:[#allocation7 + $0x4] sm:$0xf]
    %v3973 = vld [vmem:[#allocation7 + $0x8] sm:$0xf]
    %v3974 = vld [vmem:[#allocation7 + $0xc] sm:$0xf]
    %v3975 = vld [vmem:[#allocation7 + $0x10] sm:$0xf]
    %v3976 = vld [vmem:[#allocation7 + $0x14] sm:$0xf]
    %v3977 = vld [vmem:[#allocation7 + $0x18] sm:$0xf]
    %v3978 = vld [vmem:[#allocation7 + $0x1c] sm:$0xf]
    %v3979 = vld [vmem:[#allocation7 + $0x20] sm:$0xf]
    %v3980 = vld [vmem:[#allocation7 + $0x24] sm:$0xf]
    %v3981 = vld [vmem:[#allocation7 + $0x28] sm:$0xf]
    %v3982 = vld [vmem:[#allocation7 + $0x2c] sm:$0xf]
    %v3983 = vld [vmem:[#allocation7 + $0x30] sm:$0xf]
    %v3984 = vld [vmem:[#allocation7 + $0x34] sm:$0xf]
    %v3985 = vld [vmem:[#allocation7 + $0x38] sm:$0xf]
    %v3986 = vld [vmem:[#allocation7 + $0x3c] sm:$0xf]
    %v3987 = vld [vmem:[%s4] sm:$0x1]
    %v3989 = vlaneseq
    %v3990 = vshrl.u32 %v3989, 7
    %v3991 = vsub.s32 0, %v3990
    %v3992 = vrot.slane %v3987, %v3991
    %v4010 = vunpack.c.l.b16 %v3971
    %v4011 = vunpack.c.l.b16 %v3972
    %v4012 = vunpack.c.l.b16 %v3973
    %v4013 = vunpack.c.l.b16 %v3974
    %v4014 = vunpack.c.l.b16 %v3975
    %v4015 = vunpack.c.l.b16 %v3976
    %v4016 = vunpack.c.l.b16 %v3977
    %v4017 = vunpack.c.l.b16 %v3978
    %v4018 = vunpack.c.l.b16 %v3979
    %v4019 = vunpack.c.l.b16 %v3980
    %v4020 = vunpack.c.l.b16 %v3981
    %v4021 = vunpack.c.l.b16 %v3982
    %v4022 = vunpack.c.l.b16 %v3983
    %v4023 = vunpack.c.l.b16 %v3984
    %v4024 = vunpack.c.l.b16 %v3985
    %v4025 = vunpack.c.l.b16 %v3986
    %v4026 = vpack.c.b16 %v4011, %v4010
    %v4027 = vpack.c.b16 %v4013, %v4012
    %v4028 = vpack.c.b16 %v4015, %v4014
    %v4029 = vpack.c.b16 %v4017, %v4016
    %v4030 = vpack.c.b16 %v4019, %v4018
    %v4031 = vpack.c.b16 %v4021, %v4020
    %v4032 = vpack.c.b16 %v4023, %v4022
    %v4033 = vpack.c.b16 %v4025, %v4024
    %4042 = vmatprep.subr.bf16.mxu0 0
    %4043 = vmatpush1.bf16.msra.mxu0 %v4033
    %4044 = vmatprep.subr.bf16.mxu0 0
    %4045 = vmatpush1.bf16.msra.mxu0 %v4032
    %4046 = vmatprep.subr.bf16.mxu0 0
    %4047 = vmatpush1.bf16.msra.mxu0 %v4031
    %4048 = vmatprep.subr.bf16.mxu0 0
    %4049 = vmatpush1.bf16.msra.mxu0 %v4030
    %4050 = vmatprep.subr.bf16.mxu0 0
    %4051 = vmatpush1.bf16.msra.mxu0 %v4029
    %4052 = vmatprep.subr.bf16.mxu0 0
    %4053 = vmatpush1.bf16.msra.mxu0 %v4028
    %4054 = vmatprep.subr.bf16.mxu0 0
    %4055 = vmatpush1.bf16.msra.mxu0 %v4027
    %4056 = vmatprep.subr.bf16.mxu0 0
    %4057 = vmatpush1.bf16.msra.mxu0 %v4026
    %4058 = vmatprep.subr.bf16.mxu0 0
    %4059 = vmatpush2.bf16.msra.mxu0 0
    %4060 = vmatprep.subr.bf16.mxu0 0
    %4061 = vmatpush2.bf16.msra.mxu0 0
    %4062 = vmatprep.subr.bf16.mxu0 0
    %4063 = vmatpush2.bf16.msra.mxu0 0
    %4064 = vmatprep.subr.bf16.mxu0 0
    %4065 = vmatpush2.bf16.msra.mxu0 0
    %4066 = vmatprep.subr.bf16.mxu0 0
    %4067 = vmatpush2.bf16.msra.mxu0 0
    %4068 = vmatprep.subr.bf16.mxu0 0
    %4069 = vmatpush2.bf16.msra.mxu0 0
    %4070 = vmatprep.subr.bf16.mxu0 0
    %4071 = vmatpush2.bf16.msra.mxu0 0
    %4072 = vmatprep.subr.bf16.mxu0 0
    %4073 = vmatpush2.bf16.msra.mxu0 0
    %4074 = vmatprep.mubr.bf16.mxu0 0
    %4075 = vmatmul.mubr.bf16.gmra.mxu0 %v3931
    %v4076 = vpop.f32.mrf.mxu0
    %v4077 = vadd.f32 %v3992, %v4076
    %v4078 = vpop.f32.mrf.mxu0
    %v4079 = vpop.f32.mrf.mxu0
    %v4080 = vadd.f32 %v3992, %v4079
    %v4081 = vpop.f32.mrf.mxu0
    %4082 = vmatprep.mubr.bf16.mxu0 0
    %4083 = vmatmul.mubr.bf16.gmra.mxu0 %v3932
    %v4084 = vpop.f32.mrf.mxu0
    %v4085 = vadd.f32 %v3992, %v4084
    %v4086 = vpop.f32.mrf.mxu0
    %v4087 = vpop.f32.mrf.mxu0
    %v4088 = vadd.f32 %v3992, %v4087
    %v4089 = vpop.f32.mrf.mxu0
    %4090 = vmatprep.mubr.bf16.mxu0 0
    %4091 = vmatmul.mubr.bf16.gmra.mxu0 %v3933
    %v4092 = vpop.f32.mrf.mxu0
    %v4093 = vadd.f32 %v3992, %v4092
    %v4094 = vpop.f32.mrf.mxu0
    %v4095 = vpop.f32.mrf.mxu0
    %v4096 = vadd.f32 %v3992, %v4095
    %v4097 = vpop.f32.mrf.mxu0
    %4098 = vmatprep.mubr.bf16.mxu0 0
    %4099 = vmatmul.mubr.bf16.gmra.mxu0 %v3934
    %v4100 = vpop.f32.mrf.mxu0
    %v4101 = vadd.f32 %v3992, %v4100
    %v4102 = vpop.f32.mrf.mxu0
    %v4103 = vpop.f32.mrf.mxu0
    %v4104 = vadd.f32 %v3992, %v4103
    %v4105 = vpop.f32.mrf.mxu0
    %4106 = vmatprep.mubr.bf16.mxu0 0
    %4107 = vmatmul.mubr.bf16.gmra.mxu0 %v3935
    %v4108 = vpop.f32.mrf.mxu0
    %v4109 = vadd.f32 %v3992, %v4108
    %v4110 = vpop.f32.mrf.mxu0
    %v4111 = vpop.f32.mrf.mxu0
    %v4112 = vadd.f32 %v3992, %v4111
    %v4113 = vpop.f32.mrf.mxu0
    %4114 = vmatprep.mubr.bf16.mxu0 0
    %4115 = vmatmul.mubr.bf16.gmra.mxu0 %v3936
    %v4116 = vpop.f32.mrf.mxu0
    %v4117 = vadd.f32 %v3992, %v4116
    %v4118 = vpop.f32.mrf.mxu0
    %v4119 = vpop.f32.mrf.mxu0
    %v4120 = vadd.f32 %v3992, %v4119
    %v4121 = vpop.f32.mrf.mxu0
    %4122 = vmatprep.mubr.bf16.mxu0 0
    %4123 = vmatmul.mubr.bf16.gmra.mxu0 %v3937
    %v4124 = vpop.f32.mrf.mxu0
    %v4125 = vadd.f32 %v3992, %v4124
    %v4126 = vpop.f32.mrf.mxu0
    %v4127 = vpop.f32.mrf.mxu0
    %v4128 = vadd.f32 %v3992, %v4127
    %v4129 = vpop.f32.mrf.mxu0
    %4130 = vmatprep.mubr.bf16.mxu0 0
    %4131 = vmatmul.mubr.bf16.gmra.mxu0 %v3938
    %v4132 = vpop.f32.mrf.mxu0
    %v4133 = vadd.f32 %v3992, %v4132
    %v4134 = vpop.f32.mrf.mxu0
    %v4135 = vpop.f32.mrf.mxu0
    %v4136 = vadd.f32 %v3992, %v4135
    %v4137 = vpop.f32.mrf.mxu0
    %4138 = vmatprep.mubr.bf16.mxu0 0
    %4139 = vmatmul.mubr.bf16.gmra.mxu0 %v3939
    %v4140 = vpop.f32.mrf.mxu0
    %v4141 = vadd.f32 %v3992, %v4140
    %v4142 = vpop.f32.mrf.mxu0
    %v4143 = vpop.f32.mrf.mxu0
    %v4144 = vadd.f32 %v3992, %v4143
    %v4145 = vpop.f32.mrf.mxu0
    %4146 = vmatprep.mubr.bf16.mxu0 0
    %4147 = vmatmul.mubr.bf16.gmra.mxu0 %v3940
    %v4148 = vpop.f32.mrf.mxu0
    %v4149 = vadd.f32 %v3992, %v4148
    %v4150 = vpop.f32.mrf.mxu0
    %v4151 = vpop.f32.mrf.mxu0
    %v4152 = vadd.f32 %v3992, %v4151
    %v4153 = vpop.f32.mrf.mxu0
    %4154 = vmatprep.mubr.bf16.mxu0 0
    %4155 = vmatmul.mubr.bf16.gmra.mxu0 %v3941
    %v4156 = vpop.f32.mrf.mxu0
    %v4157 = vadd.f32 %v3992, %v4156
    %v4158 = vpop.f32.mrf.mxu0
    %v4159 = vpop.f32.mrf.mxu0
    %v4160 = vadd.f32 %v3992, %v4159
    %v4161 = vpop.f32.mrf.mxu0
    %4162 = vmatprep.mubr.bf16.mxu0 0
    %4163 = vmatmul.mubr.bf16.gmra.mxu0 %v3942
    %v4164 = vpop.f32.mrf.mxu0
    %v4165 = vadd.f32 %v3992, %v4164
    %v4166 = vpop.f32.mrf.mxu0
    %v4167 = vpop.f32.mrf.mxu0
    %v4168 = vadd.f32 %v3992, %v4167
    %v4169 = vpop.f32.mrf.mxu0
    %4170 = vmatprep.mubr.bf16.mxu0 0
    %4171 = vmatmul.mubr.bf16.gmra.mxu0 %v3943
    %v4172 = vpop.f32.mrf.mxu0
    %v4173 = vadd.f32 %v3992, %v4172
    %v4174 = vpop.f32.mrf.mxu0
    %v4175 = vpop.f32.mrf.mxu0
    %v4176 = vadd.f32 %v3992, %v4175
    %v4177 = vpop.f32.mrf.mxu0
    %4178 = vmatprep.mubr.bf16.mxu0 0
    %4179 = vmatmul.mubr.bf16.gmra.mxu0 %v3944
    %v4180 = vpop.f32.mrf.mxu0
    %v4181 = vadd.f32 %v3992, %v4180
    %v4182 = vpop.f32.mrf.mxu0
    %v4183 = vpop.f32.mrf.mxu0
    %v4184 = vadd.f32 %v3992, %v4183
    %v4185 = vpop.f32.mrf.mxu0
    %4186 = vmatprep.mubr.bf16.mxu0 0
    %4187 = vmatmul.mubr.bf16.gmra.mxu0 %v3945
    %v4188 = vpop.f32.mrf.mxu0
    %v4189 = vadd.f32 %v3992, %v4188
    %v4190 = vpop.f32.mrf.mxu0
    %v4191 = vpop.f32.mrf.mxu0
    %v4192 = vadd.f32 %v3992, %v4191
    %v4193 = vpop.f32.mrf.mxu0
    %4194 = vmatprep.mubr.bf16.mxu0 0
    %4195 = vmatmul.mubr.bf16.gmra.mxu0 %v3946
    %v4196 = vpop.f32.mrf.mxu0
    %v4197 = vadd.f32 %v3992, %v4196
    %v4198 = vpop.f32.mrf.mxu0
    %v4199 = vpop.f32.mrf.mxu0
    %v4200 = vadd.f32 %v3992, %v4199
    %v4201 = vpop.f32.mrf.mxu0
    %4202 = vmatprep.mubr.bf16.mxu0 0
    %4203 = vmatmul.mubr.bf16.gmra.mxu0 %v3947
    %v4204 = vpop.f32.mrf.mxu0
    %v4205 = vadd.f32 %v3992, %v4204
    %v4206 = vpop.f32.mrf.mxu0
    %v4207 = vpop.f32.mrf.mxu0
    %v4208 = vadd.f32 %v3992, %v4207
    %v4209 = vpop.f32.mrf.mxu0
    %4210 = vmatprep.mubr.bf16.mxu0 0
    %4211 = vmatmul.mubr.bf16.gmra.mxu0 %v3948
    %v4212 = vpop.f32.mrf.mxu0
    %v4213 = vadd.f32 %v3992, %v4212
    %v4214 = vpop.f32.mrf.mxu0
    %v4215 = vpop.f32.mrf.mxu0
    %v4216 = vadd.f32 %v3992, %v4215
    %v4217 = vpop.f32.mrf.mxu0
    %4218 = vmatprep.mubr.bf16.mxu0 0
    %4219 = vmatmul.mubr.bf16.gmra.mxu0 %v3949
    %v4220 = vpop.f32.mrf.mxu0
    %v4221 = vadd.f32 %v3992, %v4220
    %v4222 = vpop.f32.mrf.mxu0
    %v4223 = vpop.f32.mrf.mxu0
    %v4224 = vadd.f32 %v3992, %v4223
    %v4225 = vpop.f32.mrf.mxu0
    %4226 = vmatprep.mubr.bf16.mxu0 0
    %4227 = vmatmul.mubr.bf16.gmra.mxu0 %v3950
    %v4228 = vpop.f32.mrf.mxu0
    %v4229 = vadd.f32 %v3992, %v4228
    %v4230 = vpop.f32.mrf.mxu0
    %v4231 = vpop.f32.mrf.mxu0
    %v4232 = vadd.f32 %v3992, %v4231
    %v4233 = vpop.f32.mrf.mxu0
    %4234 = vmatprep.mubr.bf16.mxu0 0
    %4235 = vmatmul.mubr.bf16.gmra.mxu0 %v3951
    %v4236 = vpop.f32.mrf.mxu0
    %v4237 = vadd.f32 %v3992, %v4236
    %v4238 = vpop.f32.mrf.mxu0
    %v4239 = vpop.f32.mrf.mxu0
    %v4240 = vadd.f32 %v3992, %v4239
    %v4241 = vpop.f32.mrf.mxu0
    %4242 = vmatprep.mubr.bf16.mxu0 0
    %4243 = vmatmul.mubr.bf16.gmra.mxu0 %v3952
    %v4244 = vpop.f32.mrf.mxu0
    %v4245 = vadd.f32 %v3992, %v4244
    %v4246 = vpop.f32.mrf.mxu0
    %v4247 = vpop.f32.mrf.mxu0
    %v4248 = vadd.f32 %v3992, %v4247
    %v4249 = vpop.f32.mrf.mxu0
    %4250 = vmatprep.mubr.bf16.mxu0 0
    %4251 = vmatmul.mubr.bf16.gmra.mxu0 %v3953
    %v4252 = vpop.f32.mrf.mxu0
    %v4253 = vadd.f32 %v3992, %v4252
    %v4254 = vpop.f32.mrf.mxu0
    %v4255 = vpop.f32.mrf.mxu0
    %v4256 = vadd.f32 %v3992, %v4255
    %v4257 = vpop.f32.mrf.mxu0
    %4258 = vmatprep.mubr.bf16.mxu0 0
    %4259 = vmatmul.mubr.bf16.gmra.mxu0 %v3954
    %v4260 = vpop.f32.mrf.mxu0
    %v4261 = vadd.f32 %v3992, %v4260
    %v4262 = vpop.f32.mrf.mxu0
    %v4263 = vpop.f32.mrf.mxu0
    %v4264 = vadd.f32 %v3992, %v4263
    %v4265 = vpop.f32.mrf.mxu0
    %4266 = vmatprep.mubr.bf16.mxu0 0
    %4267 = vmatmul.mubr.bf16.gmra.mxu0 %v3955
    %v4268 = vpop.f32.mrf.mxu0
    %v4269 = vadd.f32 %v3992, %v4268
    %v4270 = vpop.f32.mrf.mxu0
    %v4271 = vpop.f32.mrf.mxu0
    %v4272 = vadd.f32 %v3992, %v4271
    %v4273 = vpop.f32.mrf.mxu0
    %4274 = vmatprep.mubr.bf16.mxu0 0
    %4275 = vmatmul.mubr.bf16.gmra.mxu0 %v3956
    %v4276 = vpop.f32.mrf.mxu0
    %v4277 = vadd.f32 %v3992, %v4276
    %v4278 = vpop.f32.mrf.mxu0
    %v4279 = vpop.f32.mrf.mxu0
    %v4280 = vadd.f32 %v3992, %v4279
    %v4281 = vpop.f32.mrf.mxu0
    %4282 = vmatprep.mubr.bf16.mxu0 0
    %4283 = vmatmul.mubr.bf16.gmra.mxu0 %v3957
    %v4284 = vpop.f32.mrf.mxu0
    %v4285 = vadd.f32 %v3992, %v4284
    %v4286 = vpop.f32.mrf.mxu0
    %v4287 = vpop.f32.mrf.mxu0
    %v4288 = vadd.f32 %v3992, %v4287
    %v4289 = vpop.f32.mrf.mxu0
    %4290 = vmatprep.mubr.bf16.mxu0 0
    %4291 = vmatmul.mubr.bf16.gmra.mxu0 %v3958
    %v4292 = vpop.f32.mrf.mxu0
    %v4293 = vadd.f32 %v3992, %v4292
    %v4294 = vpop.f32.mrf.mxu0
    %v4295 = vpop.f32.mrf.mxu0
    %v4296 = vadd.f32 %v3992, %v4295
    %v4297 = vpop.f32.mrf.mxu0
    %4298 = vmatprep.mubr.bf16.mxu0 0
    %4299 = vmatmul.mubr.bf16.gmra.mxu0 %v3959
    %v4300 = vpop.f32.mrf.mxu0
    %v4301 = vadd.f32 %v3992, %v4300
    %v4302 = vpop.f32.mrf.mxu0
    %v4303 = vpop.f32.mrf.mxu0
    %v4304 = vadd.f32 %v3992, %v4303
    %v4305 = vpop.f32.mrf.mxu0
    %4306 = vmatprep.mubr.bf16.mxu0 0
    %4307 = vmatmul.mubr.bf16.gmra.mxu0 %v3960
    %v4308 = vpop.f32.mrf.mxu0
    %v4309 = vadd.f32 %v3992, %v4308
    %v4310 = vpop.f32.mrf.mxu0
    %v4311 = vpop.f32.mrf.mxu0
    %v4312 = vadd.f32 %v3992, %v4311
    %v4313 = vpop.f32.mrf.mxu0
    %4314 = vmatprep.mubr.bf16.mxu0 0
    %4315 = vmatmul.mubr.bf16.gmra.mxu0 %v3961
    %v4316 = vpop.f32.mrf.mxu0
    %v4317 = vadd.f32 %v3992, %v4316
    %v4318 = vpop.f32.mrf.mxu0
    %v4319 = vpop.f32.mrf.mxu0
    %v4320 = vadd.f32 %v3992, %v4319
    %v4321 = vpop.f32.mrf.mxu0
    %4322 = vmatprep.mubr.bf16.mxu0 0
    %4323 = vmatmul.mubr.bf16.gmra.mxu0 %v3962
    %v4324 = vpop.f32.mrf.mxu0
    %v4325 = vadd.f32 %v3992, %v4324
    %v4326 = vpop.f32.mrf.mxu0
    %v4327 = vpop.f32.mrf.mxu0
    %v4328 = vadd.f32 %v3992, %v4327
    %v4329 = vpop.f32.mrf.mxu0
    %4330 = vmatprep.mubr.bf16.mxu0 0
    %4331 = vmatmul.mubr.bf16.gmra.mxu0 %v3963
    %v4332 = vpop.f32.mrf.mxu0
    %v4333 = vadd.f32 %v3992, %v4332
    %v4334 = vpop.f32.mrf.mxu0
    %v4335 = vpop.f32.mrf.mxu0
    %v4336 = vadd.f32 %v3992, %v4335
    %v4337 = vpop.f32.mrf.mxu0
    %4338 = vmatprep.mubr.bf16.mxu0 0
    %4339 = vmatmul.mubr.bf16.gmra.mxu0 %v3964
    %v4340 = vpop.f32.mrf.mxu0
    %v4341 = vadd.f32 %v3992, %v4340
    %v4342 = vpop.f32.mrf.mxu0
    %v4343 = vpop.f32.mrf.mxu0
    %v4344 = vadd.f32 %v3992, %v4343
    %v4345 = vpop.f32.mrf.mxu0
    %4346 = vmatprep.mubr.bf16.mxu0 0
    %4347 = vmatmul.mubr.bf16.gmra.mxu0 %v3965
    %v4348 = vpop.f32.mrf.mxu0
    %v4349 = vadd.f32 %v3992, %v4348
    %v4350 = vpop.f32.mrf.mxu0
    %v4351 = vpop.f32.mrf.mxu0
    %v4352 = vadd.f32 %v3992, %v4351
    %v4353 = vpop.f32.mrf.mxu0
    %4354 = vmatprep.mubr.bf16.mxu0 0
    %4355 = vmatmul.mubr.bf16.gmra.mxu0 %v3966
    %v4356 = vpop.f32.mrf.mxu0
    %v4357 = vadd.f32 %v3992, %v4356
    %v4358 = vpop.f32.mrf.mxu0
    %v4359 = vpop.f32.mrf.mxu0
    %v4360 = vadd.f32 %v3992, %v4359
    %v4361 = vpop.f32.mrf.mxu0
    %4362 = vmatprep.mubr.bf16.mxu0 0
    %4363 = vmatmul.mubr.bf16.gmra.mxu0 %v3967
    %v4364 = vpop.f32.mrf.mxu0
    %v4365 = vadd.f32 %v3992, %v4364
    %v4366 = vpop.f32.mrf.mxu0
    %v4367 = vpop.f32.mrf.mxu0
    %v4368 = vadd.f32 %v3992, %v4367
    %v4369 = vpop.f32.mrf.mxu0
    %4370 = vmatprep.mubr.bf16.mxu0 0
    %4371 = vmatmul.mubr.bf16.gmra.mxu0 %v3968
    %v4372 = vpop.f32.mrf.mxu0
    %v4373 = vadd.f32 %v3992, %v4372
    %v4374 = vpop.f32.mrf.mxu0
    %v4375 = vpop.f32.mrf.mxu0
    %v4376 = vadd.f32 %v3992, %v4375
    %v4377 = vpop.f32.mrf.mxu0
    %4378 = vmatprep.mubr.bf16.mxu0 0
    %4379 = vmatmul.mubr.bf16.gmra.mxu0 %v3969
    %v4380 = vpop.f32.mrf.mxu0
    %v4381 = vadd.f32 %v3992, %v4380
    %v4382 = vpop.f32.mrf.mxu0
    %v4383 = vpop.f32.mrf.mxu0
    %v4384 = vadd.f32 %v3992, %v4383
    %v4385 = vpop.f32.mrf.mxu0
    %4386 = vmatprep.mubr.bf16.mxu0 0
    %4387 = vmatmul.mubr.bf16.gmra.mxu0 %v3970
    %v4388 = vpop.f32.mrf.mxu0
    %v4389 = vadd.f32 %v3992, %v4388
    %v4390 = vpop.f32.mrf.mxu0
    %v4391 = vpop.f32.mrf.mxu0
    %v4392 = vadd.f32 %v3992, %v4391
    %v4393 = vpop.f32.mrf.mxu0
    %4394 = vdwg.mxu0
    %v4395 = vpack.c.bf16 %v4080, %v4077
    %v4396 = vpack.c.bf16 %v4088, %v4085
    %v4397 = vpack.c.bf16 %v4096, %v4093
    %v4398 = vpack.c.bf16 %v4104, %v4101
    %v4399 = vpack.c.bf16 %v4112, %v4109
    %v4400 = vpack.c.bf16 %v4120, %v4117
    %v4401 = vpack.c.bf16 %v4128, %v4125
    %v4402 = vpack.c.bf16 %v4136, %v4133
    %v4403 = vpack.c.bf16 %v4144, %v4141
    %v4404 = vpack.c.bf16 %v4152, %v4149
    %v4405 = vpack.c.bf16 %v4160, %v4157
    %v4406 = vpack.c.bf16 %v4168, %v4165
    %v4407 = vpack.c.bf16 %v4176, %v4173
    %v4408 = vpack.c.bf16 %v4184, %v4181
    %v4409 = vpack.c.bf16 %v4192, %v4189
    %v4410 = vpack.c.bf16 %v4200, %v4197
    %v4411 = vpack.c.bf16 %v4208, %v4205
    %v4412 = vpack.c.bf16 %v4216, %v4213
    %v4413 = vpack.c.bf16 %v4224, %v4221
    %v4414 = vpack.c.bf16 %v4232, %v4229
    %v4415 = vpack.c.bf16 %v4240, %v4237
    %v4416 = vpack.c.bf16 %v4248, %v4245
    %v4417 = vpack.c.bf16 %v4256, %v4253
    %v4418 = vpack.c.bf16 %v4264, %v4261
    %v4419 = vpack.c.bf16 %v4272, %v4269
    %v4420 = vpack.c.bf16 %v4280, %v4277
    %v4421 = vpack.c.bf16 %v4288, %v4285
    %v4422 = vpack.c.bf16 %v4296, %v4293
    %v4423 = vpack.c.bf16 %v4304, %v4301
    %v4424 = vpack.c.bf16 %v4312, %v4309
    %v4425 = vpack.c.bf16 %v4320, %v4317
    %v4426 = vpack.c.bf16 %v4328, %v4325
    %v4427 = vpack.c.bf16 %v4336, %v4333
    %v4428 = vpack.c.bf16 %v4344, %v4341
    %v4429 = vpack.c.bf16 %v4352, %v4349
    %v4430 = vpack.c.bf16 %v4360, %v4357
    %v4431 = vpack.c.bf16 %v4368, %v4365
    %v4432 = vpack.c.bf16 %v4376, %v4373
    %v4433 = vpack.c.bf16 %v4384, %v4381
    %v4434 = vpack.c.bf16 %v4392, %v4389
    %v4475 = vunpack.c.l.b16 %v4395
    %v4476 = vunpack.c.h.b16 %v4395
    %v4477 = vunpack.c.l.b16 %v4396
    %v4478 = vunpack.c.h.b16 %v4396
    %v4479 = vunpack.c.l.b16 %v4397
    %v4480 = vunpack.c.h.b16 %v4397
    %v4481 = vunpack.c.l.b16 %v4398
    %v4482 = vunpack.c.h.b16 %v4398
    %v4483 = vunpack.c.l.b16 %v4399
    %v4484 = vunpack.c.h.b16 %v4399
    %v4485 = vunpack.c.l.b16 %v4400
    %v4486 = vunpack.c.h.b16 %v4400
    %v4487 = vunpack.c.l.b16 %v4401
    %v4488 = vunpack.c.h.b16 %v4401
    %v4489 = vunpack.c.l.b16 %v4402
    %v4490 = vunpack.c.h.b16 %v4402
    %v4491 = vunpack.c.l.b16 %v4403
    %v4492 = vunpack.c.h.b16 %v4403
    %v4493 = vunpack.c.l.b16 %v4404
    %v4494 = vunpack.c.h.b16 %v4404
    %v4495 = vunpack.c.l.b16 %v4405
    %v4496 = vunpack.c.h.b16 %v4405
    %v4497 = vunpack.c.l.b16 %v4406
    %v4498 = vunpack.c.h.b16 %v4406
    %v4499 = vunpack.c.l.b16 %v4407
    %v4500 = vunpack.c.h.b16 %v4407
    %v4501 = vunpack.c.l.b16 %v4408
    %v4502 = vunpack.c.h.b16 %v4408
    %v4503 = vunpack.c.l.b16 %v4409
    %v4504 = vunpack.c.h.b16 %v4409
    %v4505 = vunpack.c.l.b16 %v4410
    %v4506 = vunpack.c.h.b16 %v4410
    %v4507 = vunpack.c.l.b16 %v4411
    %v4508 = vunpack.c.h.b16 %v4411
    %v4509 = vunpack.c.l.b16 %v4412
    %v4510 = vunpack.c.h.b16 %v4412
    %v4511 = vunpack.c.l.b16 %v4413
    %v4512 = vunpack.c.h.b16 %v4413
    %v4513 = vunpack.c.l.b16 %v4414
    %v4514 = vunpack.c.h.b16 %v4414
    %v4515 = vunpack.c.l.b16 %v4415
    %v4516 = vunpack.c.h.b16 %v4415
    %v4517 = vunpack.c.l.b16 %v4416
    %v4518 = vunpack.c.h.b16 %v4416
    %v4519 = vunpack.c.l.b16 %v4417
    %v4520 = vunpack.c.h.b16 %v4417
    %v4521 = vunpack.c.l.b16 %v4418
    %v4522 = vunpack.c.h.b16 %v4418
    %v4523 = vunpack.c.l.b16 %v4419
    %v4524 = vunpack.c.h.b16 %v4419
    %v4525 = vunpack.c.l.b16 %v4420
    %v4526 = vunpack.c.h.b16 %v4420
    %v4527 = vunpack.c.l.b16 %v4421
    %v4528 = vunpack.c.h.b16 %v4421
    %v4529 = vunpack.c.l.b16 %v4422
    %v4530 = vunpack.c.h.b16 %v4422
    %v4531 = vunpack.c.l.b16 %v4423
    %v4532 = vunpack.c.h.b16 %v4423
    %v4533 = vunpack.c.l.b16 %v4424
    %v4534 = vunpack.c.h.b16 %v4424
    %v4535 = vunpack.c.l.b16 %v4425
    %v4536 = vunpack.c.h.b16 %v4425
    %v4537 = vunpack.c.l.b16 %v4426
    %v4538 = vunpack.c.h.b16 %v4426
    %v4539 = vunpack.c.l.b16 %v4427
    %v4540 = vunpack.c.h.b16 %v4427
    %v4541 = vunpack.c.l.b16 %v4428
    %v4542 = vunpack.c.h.b16 %v4428
    %v4543 = vunpack.c.l.b16 %v4429
    %v4544 = vunpack.c.h.b16 %v4429
    %v4545 = vunpack.c.l.b16 %v4430
    %v4546 = vunpack.c.h.b16 %v4430
    %v4547 = vunpack.c.l.b16 %v4431
    %v4548 = vunpack.c.h.b16 %v4431
    %v4549 = vunpack.c.l.b16 %v4432
    %v4550 = vunpack.c.h.b16 %v4432
    %v4551 = vunpack.c.l.b16 %v4433
    %v4552 = vunpack.c.h.b16 %v4433
    %v4553 = vunpack.c.l.b16 %v4434
    %v4554 = vunpack.c.h.b16 %v4434
    %v4555 = vpack.c.b16 %v4475, %v4475
    %v4556 = vpack.c.b16 %v4476, %v4476
    %v4557 = vpack.c.b16 %v4477, %v4477
    %v4558 = vpack.c.b16 %v4478, %v4478
    %v4559 = vpack.c.b16 %v4479, %v4479
    %v4560 = vpack.c.b16 %v4480, %v4480
    %v4561 = vpack.c.b16 %v4481, %v4481
    %v4562 = vpack.c.b16 %v4482, %v4482
    %v4563 = vpack.c.b16 %v4483, %v4483
    %v4564 = vpack.c.b16 %v4484, %v4484
    %v4565 = vpack.c.b16 %v4485, %v4485
    %v4566 = vpack.c.b16 %v4486, %v4486
    %v4567 = vpack.c.b16 %v4487, %v4487
    %v4568 = vpack.c.b16 %v4488, %v4488
    %v4569 = vpack.c.b16 %v4489, %v4489
    %v4570 = vpack.c.b16 %v4490, %v4490
    %v4571 = vpack.c.b16 %v4491, %v4491
    %v4572 = vpack.c.b16 %v4492, %v4492
    %v4573 = vpack.c.b16 %v4493, %v4493
    %v4574 = vpack.c.b16 %v4494, %v4494
    %v4575 = vpack.c.b16 %v4495, %v4495
    %v4576 = vpack.c.b16 %v4496, %v4496
    %v4577 = vpack.c.b16 %v4497, %v4497
    %v4578 = vpack.c.b16 %v4498, %v4498
    %v4579 = vpack.c.b16 %v4499, %v4499
    %v4580 = vpack.c.b16 %v4500, %v4500
    %v4581 = vpack.c.b16 %v4501, %v4501
    %v4582 = vpack.c.b16 %v4502, %v4502
    %v4583 = vpack.c.b16 %v4503, %v4503
    %v4584 = vpack.c.b16 %v4504, %v4504
    %v4585 = vpack.c.b16 %v4505, %v4505
    %v4586 = vpack.c.b16 %v4506, %v4506
    %v4587 = vpack.c.b16 %v4507, %v4507
    %v4588 = vpack.c.b16 %v4508, %v4508
    %v4589 = vpack.c.b16 %v4509, %v4509
    %v4590 = vpack.c.b16 %v4510, %v4510
    %v4591 = vpack.c.b16 %v4511, %v4511
    %v4592 = vpack.c.b16 %v4512, %v4512
    %v4593 = vpack.c.b16 %v4513, %v4513
    %v4594 = vpack.c.b16 %v4514, %v4514
    %v4595 = vpack.c.b16 %v4515, %v4515
    %v4596 = vpack.c.b16 %v4516, %v4516
    %v4597 = vpack.c.b16 %v4517, %v4517
    %v4598 = vpack.c.b16 %v4518, %v4518
    %v4599 = vpack.c.b16 %v4519, %v4519
    %v4600 = vpack.c.b16 %v4520, %v4520
    %v4601 = vpack.c.b16 %v4521, %v4521
    %v4602 = vpack.c.b16 %v4522, %v4522
    %v4603 = vpack.c.b16 %v4523, %v4523
    %v4604 = vpack.c.b16 %v4524, %v4524
    %v4605 = vpack.c.b16 %v4525, %v4525
    %v4606 = vpack.c.b16 %v4526, %v4526
    %v4607 = vpack.c.b16 %v4527, %v4527
    %v4608 = vpack.c.b16 %v4528, %v4528
    %v4609 = vpack.c.b16 %v4529, %v4529
    %v4610 = vpack.c.b16 %v4530, %v4530
    %v4611 = vpack.c.b16 %v4531, %v4531
    %v4612 = vpack.c.b16 %v4532, %v4532
    %v4613 = vpack.c.b16 %v4533, %v4533
    %v4614 = vpack.c.b16 %v4534, %v4534
    %v4615 = vpack.c.b16 %v4535, %v4535
    %v4616 = vpack.c.b16 %v4536, %v4536
    %v4617 = vpack.c.b16 %v4537, %v4537
    %v4618 = vpack.c.b16 %v4538, %v4538
    %v4619 = vpack.c.b16 %v4539, %v4539
    %v4620 = vpack.c.b16 %v4540, %v4540
    %v4621 = vpack.c.b16 %v4541, %v4541
    %v4622 = vpack.c.b16 %v4542, %v4542
    %v4623 = vpack.c.b16 %v4543, %v4543
    %v4624 = vpack.c.b16 %v4544, %v4544
    %v4625 = vpack.c.b16 %v4545, %v4545
    %v4626 = vpack.c.b16 %v4546, %v4546
    %v4627 = vpack.c.b16 %v4547, %v4547
    %v4628 = vpack.c.b16 %v4548, %v4548
    %v4629 = vpack.c.b16 %v4549, %v4549
    %v4630 = vpack.c.b16 %v4550, %v4550
    %v4631 = vpack.c.b16 %v4551, %v4551
    %v4632 = vpack.c.b16 %v4552, %v4552
    %v4633 = vpack.c.b16 %v4553, %v4553
    %v4634 = vpack.c.b16 %v4554, %v4554
    %4715 = vst [vmem:[#allocation10] sm:$0xf] %v4555
    %4716 = vst [vmem:[#allocation10 + $0x4] sm:$0xf] %v4556
    %4717 = vst [vmem:[#allocation10 + $0x8] sm:$0xf] %v4557
    %4718 = vst [vmem:[#allocation10 + $0xc] sm:$0xf] %v4558
    %4719 = vst [vmem:[#allocation10 + $0x10] sm:$0xf] %v4559
    %4720 = vst [vmem:[#allocation10 + $0x14] sm:$0xf] %v4560
    %4721 = vst [vmem:[#allocation10 + $0x18] sm:$0xf] %v4561
    %4722 = vst [vmem:[#allocation10 + $0x1c] sm:$0xf] %v4562
    %4723 = vst [vmem:[#allocation10 + $0x20] sm:$0xf] %v4563
    %4724 = vst [vmem:[#allocation10 + $0x24] sm:$0xf] %v4564
    %4725 = vst [vmem:[#allocation10 + $0x28] sm:$0xf] %v4565
    %4726 = vst [vmem:[#allocation10 + $0x2c] sm:$0xf] %v4566
    %4727 = vst [vmem:[#allocation10 + $0x30] sm:$0xf] %v4567
    %4728 = vst [vmem:[#allocation10 + $0x34] sm:$0xf] %v4568
    %4729 = vst [vmem:[#allocation10 + $0x38] sm:$0xf] %v4569
    %4730 = vst [vmem:[#allocation10 + $0x3c] sm:$0xf] %v4570
    %4731 = vst [vmem:[#allocation10 + $0x40] sm:$0xf] %v4571
    %4732 = vst [vmem:[#allocation10 + $0x44] sm:$0xf] %v4572
    %4733 = vst [vmem:[#allocation10 + $0x48] sm:$0xf] %v4573
    %4734 = vst [vmem:[#allocation10 + $0x4c] sm:$0xf] %v4574
    %4735 = vst [vmem:[#allocation10 + $0x50] sm:$0xf] %v4575
    %4736 = vst [vmem:[#allocation10 + $0x54] sm:$0xf] %v4576
    %4737 = vst [vmem:[#allocation10 + $0x58] sm:$0xf] %v4577
    %4738 = vst [vmem:[#allocation10 + $0x5c] sm:$0xf] %v4578
    %4739 = vst [vmem:[#allocation10 + $0x60] sm:$0xf] %v4579
    %4740 = vst [vmem:[#allocation10 + $0x64] sm:$0xf] %v4580
    %4741 = vst [vmem:[#allocation10 + $0x68] sm:$0xf] %v4581
    %4742 = vst [vmem:[#allocation10 + $0x6c] sm:$0xf] %v4582
    %4743 = vst [vmem:[#allocation10 + $0x70] sm:$0xf] %v4583
    %4744 = vst [vmem:[#allocation10 + $0x74] sm:$0xf] %v4584
    %4745 = vst [vmem:[#allocation10 + $0x78] sm:$0xf] %v4585
    %4746 = vst [vmem:[#allocation10 + $0x7c] sm:$0xf] %v4586
    %4747 = vst [vmem:[#allocation10 + $0x80] sm:$0xf] %v4587
    %4748 = vst [vmem:[#allocation10 + $0x84] sm:$0xf] %v4588
    %4749 = vst [vmem:[#allocation10 + $0x88] sm:$0xf] %v4589
    %4750 = vst [vmem:[#allocation10 + $0x8c] sm:$0xf] %v4590
    %4751 = vst [vmem:[#allocation10 + $0x90] sm:$0xf] %v4591
    %4752 = vst [vmem:[#allocation10 + $0x94] sm:$0xf] %v4592
    %4753 = vst [vmem:[#allocation10 + $0x98] sm:$0xf] %v4593
    %4754 = vst [vmem:[#allocation10 + $0x9c] sm:$0xf] %v4594
    %4755 = vst [vmem:[#allocation10 + $0xa0] sm:$0xf] %v4595
    %4756 = vst [vmem:[#allocation10 + $0xa4] sm:$0xf] %v4596
    %4757 = vst [vmem:[#allocation10 + $0xa8] sm:$0xf] %v4597
    %4758 = vst [vmem:[#allocation10 + $0xac] sm:$0xf] %v4598
    %4759 = vst [vmem:[#allocation10 + $0xb0] sm:$0xf] %v4599
    %4760 = vst [vmem:[#allocation10 + $0xb4] sm:$0xf] %v4600
    %4761 = vst [vmem:[#allocation10 + $0xb8] sm:$0xf] %v4601
    %4762 = vst [vmem:[#allocation10 + $0xbc] sm:$0xf] %v4602
    %4763 = vst [vmem:[#allocation10 + $0xc0] sm:$0xf] %v4603
    %4764 = vst [vmem:[#allocation10 + $0xc4] sm:$0xf] %v4604
    %4765 = vst [vmem:[#allocation10 + $0xc8] sm:$0xf] %v4605
    %4766 = vst [vmem:[#allocation10 + $0xcc] sm:$0xf] %v4606
    %4767 = vst [vmem:[#allocation10 + $0xd0] sm:$0xf] %v4607
    %4768 = vst [vmem:[#allocation10 + $0xd4] sm:$0xf] %v4608
    %4769 = vst [vmem:[#allocation10 + $0xd8] sm:$0xf] %v4609
    %4770 = vst [vmem:[#allocation10 + $0xdc] sm:$0xf] %v4610
    %4771 = vst [vmem:[#allocation10 + $0xe0] sm:$0xf] %v4611
    %4772 = vst [vmem:[#allocation10 + $0xe4] sm:$0xf] %v4612
    %4773 = vst [vmem:[#allocation10 + $0xe8] sm:$0xf] %v4613
    %4774 = vst [vmem:[#allocation10 + $0xec] sm:$0xf] %v4614
    %4775 = vst [vmem:[#allocation10 + $0xf0] sm:$0xf] %v4615
    %4776 = vst [vmem:[#allocation10 + $0xf4] sm:$0xf] %v4616
    %4777 = vst [vmem:[#allocation10 + $0xf8] sm:$0xf] %v4617
    %4778 = vst [vmem:[#allocation10 + $0xfc] sm:$0xf] %v4618
    %4779 = vst [vmem:[#allocation10 + $0x100] sm:$0xf] %v4619
    %4780 = vst [vmem:[#allocation10 + $0x104] sm:$0xf] %v4620
    %4781 = vst [vmem:[#allocation10 + $0x108] sm:$0xf] %v4621
    %4782 = vst [vmem:[#allocation10 + $0x10c] sm:$0xf] %v4622
    %4783 = vst [vmem:[#allocation10 + $0x110] sm:$0xf] %v4623
    %4784 = vst [vmem:[#allocation10 + $0x114] sm:$0xf] %v4624
    %4785 = vst [vmem:[#allocation10 + $0x118] sm:$0xf] %v4625
    %4786 = vst [vmem:[#allocation10 + $0x11c] sm:$0xf] %v4626
    %4787 = vst [vmem:[#allocation10 + $0x120] sm:$0xf] %v4627
    %4788 = vst [vmem:[#allocation10 + $0x124] sm:$0xf] %v4628
    %4789 = vst [vmem:[#allocation10 + $0x128] sm:$0xf] %v4629
    %4790 = vst [vmem:[#allocation10 + $0x12c] sm:$0xf] %v4630
    %4791 = vst [vmem:[#allocation10 + $0x130] sm:$0xf] %v4631
    %4792 = vst [vmem:[#allocation10 + $0x134] sm:$0xf] %v4632
    %4793 = vst [vmem:[#allocation10 + $0x138] sm:$0xf] %v4633
    %4794 = vst [vmem:[#allocation10 + $0x13c] sm:$0xf] %v4634
    %v4795 = vmax.f32 %v4077, 0.0
    %v4796 = vmax.f32 %v4080, 0.0
    %v4797 = vmax.f32 %v4085, 0.0
    %v4798 = vmax.f32 %v4088, 0.0
    %v4799 = vmax.f32 %v4093, 0.0
    %v4800 = vmax.f32 %v4096, 0.0
    %v4801 = vmax.f32 %v4101, 0.0
    %v4802 = vmax.f32 %v4104, 0.0
    %v4803 = vmax.f32 %v4109, 0.0
    %v4804 = vmax.f32 %v4112, 0.0
    %v4805 = vmax.f32 %v4117, 0.0
    %v4806 = vmax.f32 %v4120, 0.0
    %v4807 = vmax.f32 %v4125, 0.0
    %v4808 = vmax.f32 %v4128, 0.0
    %v4809 = vmax.f32 %v4133, 0.0
    %v4810 = vmax.f32 %v4136, 0.0
    %v4811 = vmax.f32 %v4141, 0.0
    %v4812 = vmax.f32 %v4144, 0.0
    %v4813 = vmax.f32 %v4149, 0.0
    %v4814 = vmax.f32 %v4152, 0.0
    %v4815 = vmax.f32 %v4157, 0.0
    %v4816 = vmax.f32 %v4160, 0.0
    %v4817 = vmax.f32 %v4165, 0.0
    %v4818 = vmax.f32 %v4168, 0.0
    %v4819 = vmax.f32 %v4173, 0.0
    %v4820 = vmax.f32 %v4176, 0.0
    %v4821 = vmax.f32 %v4181, 0.0
    %v4822 = vmax.f32 %v4184, 0.0
    %v4823 = vmax.f32 %v4189, 0.0
    %v4824 = vmax.f32 %v4192, 0.0
    %v4825 = vmax.f32 %v4197, 0.0
    %v4826 = vmax.f32 %v4200, 0.0
    %v4827 = vmax.f32 %v4205, 0.0
    %v4828 = vmax.f32 %v4208, 0.0
    %v4829 = vmax.f32 %v4213, 0.0
    %v4830 = vmax.f32 %v4216, 0.0
    %v4831 = vmax.f32 %v4221, 0.0
    %v4832 = vmax.f32 %v4224, 0.0
    %v4833 = vmax.f32 %v4229, 0.0
    %v4834 = vmax.f32 %v4232, 0.0
    %v4835 = vmax.f32 %v4237, 0.0
    %v4836 = vmax.f32 %v4240, 0.0
    %v4837 = vmax.f32 %v4245, 0.0
    %v4838 = vmax.f32 %v4248, 0.0
    %v4839 = vmax.f32 %v4253, 0.0
    %v4840 = vmax.f32 %v4256, 0.0
    %v4841 = vmax.f32 %v4261, 0.0
    %v4842 = vmax.f32 %v4264, 0.0
    %v4843 = vmax.f32 %v4269, 0.0
    %v4844 = vmax.f32 %v4272, 0.0
    %v4845 = vmax.f32 %v4277, 0.0
    %v4846 = vmax.f32 %v4280, 0.0
    %v4847 = vmax.f32 %v4285, 0.0
    %v4848 = vmax.f32 %v4288, 0.0
    %v4849 = vmax.f32 %v4293, 0.0
    %v4850 = vmax.f32 %v4296, 0.0
    %v4851 = vmax.f32 %v4301, 0.0
    %v4852 = vmax.f32 %v4304, 0.0
    %v4853 = vmax.f32 %v4309, 0.0
    %v4854 = vmax.f32 %v4312, 0.0
    %v4855 = vmax.f32 %v4317, 0.0
    %v4856 = vmax.f32 %v4320, 0.0
    %v4857 = vmax.f32 %v4325, 0.0
    %v4858 = vmax.f32 %v4328, 0.0
    %v4859 = vmax.f32 %v4333, 0.0
    %v4860 = vmax.f32 %v4336, 0.0
    %v4861 = vmax.f32 %v4341, 0.0
    %v4862 = vmax.f32 %v4344, 0.0
    %v4863 = vmax.f32 %v4349, 0.0
    %v4864 = vmax.f32 %v4352, 0.0
    %v4865 = vmax.f32 %v4357, 0.0
    %v4866 = vmax.f32 %v4360, 0.0
    %v4867 = vmax.f32 %v4365, 0.0
    %v4868 = vmax.f32 %v4368, 0.0
    %v4869 = vmax.f32 %v4373, 0.0
    %v4870 = vmax.f32 %v4376, 0.0
    %v4871 = vmax.f32 %v4381, 0.0
    %v4872 = vmax.f32 %v4384, 0.0
    %v4873 = vmax.f32 %v4389, 0.0
    %v4874 = vmax.f32 %v4392, 0.0
    %v4875 = vpack.c.bf16 %v4796, %v4795
    %v4876 = vpack.c.bf16 %v4798, %v4797
    %v4877 = vpack.c.bf16 %v4800, %v4799
    %v4878 = vpack.c.bf16 %v4802, %v4801
    %v4879 = vpack.c.bf16 %v4804, %v4803
    %v4880 = vpack.c.bf16 %v4806, %v4805
    %v4881 = vpack.c.bf16 %v4808, %v4807
    %v4882 = vpack.c.bf16 %v4810, %v4809
    %v4883 = vpack.c.bf16 %v4812, %v4811
    %v4884 = vpack.c.bf16 %v4814, %v4813
    %v4885 = vpack.c.bf16 %v4816, %v4815
    %v4886 = vpack.c.bf16 %v4818, %v4817
    %v4887 = vpack.c.bf16 %v4820, %v4819
    %v4888 = vpack.c.bf16 %v4822, %v4821
    %v4889 = vpack.c.bf16 %v4824, %v4823
    %v4890 = vpack.c.bf16 %v4826, %v4825
    %v4891 = vpack.c.bf16 %v4828, %v4827
    %v4892 = vpack.c.bf16 %v4830, %v4829
    %v4893 = vpack.c.bf16 %v4832, %v4831
    %v4894 = vpack.c.bf16 %v4834, %v4833
    %v4895 = vpack.c.bf16 %v4836, %v4835
    %v4896 = vpack.c.bf16 %v4838, %v4837
    %v4897 = vpack.c.bf16 %v4840, %v4839
    %v4898 = vpack.c.bf16 %v4842, %v4841
    %v4899 = vpack.c.bf16 %v4844, %v4843
    %v4900 = vpack.c.bf16 %v4846, %v4845
    %v4901 = vpack.c.bf16 %v4848, %v4847
    %v4902 = vpack.c.bf16 %v4850, %v4849
    %v4903 = vpack.c.bf16 %v4852, %v4851
    %v4904 = vpack.c.bf16 %v4854, %v4853
    %v4905 = vpack.c.bf16 %v4856, %v4855
    %v4906 = vpack.c.bf16 %v4858, %v4857
    %v4907 = vpack.c.bf16 %v4860, %v4859
    %v4908 = vpack.c.bf16 %v4862, %v4861
    %v4909 = vpack.c.bf16 %v4864, %v4863
    %v4910 = vpack.c.bf16 %v4866, %v4865
    %v4911 = vpack.c.bf16 %v4868, %v4867
    %v4912 = vpack.c.bf16 %v4870, %v4869
    %v4913 = vpack.c.bf16 %v4872, %v4871
    %v4914 = vpack.c.bf16 %v4874, %v4873
    %v4915 = vld [vmem:[#allocation8] sm:$0xf]
    %v4916 = vld [vmem:[#allocation8 + $0x4] sm:$0xf]
    %v4917 = vld [vmem:[#allocation8 + $0x8] sm:$0xf]
    %v4918 = vld [vmem:[#allocation8 + $0xc] sm:$0xf]
    %v4919 = vld [vmem:[#allocation8 + $0x10] sm:$0xf]
    %v4920 = vld [vmem:[#allocation8 + $0x14] sm:$0xf]
    %v4921 = vld [vmem:[#allocation8 + $0x18] sm:$0xf]
    %v4922 = vld [vmem:[#allocation8 + $0x1c] sm:$0xf]
    %v4923 = vld [vmem:[#allocation8 + $0x20] sm:$0xf]
    %v4924 = vld [vmem:[#allocation8 + $0x24] sm:$0xf]
    %v4925 = vld [vmem:[#allocation8 + $0x28] sm:$0xf]
    %v4926 = vld [vmem:[#allocation8 + $0x2c] sm:$0xf]
    %v4927 = vld [vmem:[#allocation8 + $0x30] sm:$0xf]
    %v4928 = vld [vmem:[#allocation8 + $0x34] sm:$0xf]
    %v4929 = vld [vmem:[#allocation8 + $0x38] sm:$0xf]
    %v4930 = vld [vmem:[#allocation8 + $0x3c] sm:$0xf]
    %v4931 = vld [vmem:[%s6] sm:$0x1]
    %v4933 = vlaneseq
    %v4934 = vshrl.u32 %v4933, 7
    %v4935 = vsub.s32 0, %v4934
    %v4936 = vrot.slane %v4931, %v4935
    %v4954 = vunpack.c.l.b16 %v4915
    %v4955 = vunpack.c.l.b16 %v4916
    %v4956 = vunpack.c.l.b16 %v4917
    %v4957 = vunpack.c.l.b16 %v4918
    %v4958 = vunpack.c.l.b16 %v4919
    %v4959 = vunpack.c.l.b16 %v4920
    %v4960 = vunpack.c.l.b16 %v4921
    %v4961 = vunpack.c.l.b16 %v4922
    %v4962 = vunpack.c.l.b16 %v4923
    %v4963 = vunpack.c.l.b16 %v4924
    %v4964 = vunpack.c.l.b16 %v4925
    %v4965 = vunpack.c.l.b16 %v4926
    %v4966 = vunpack.c.l.b16 %v4927
    %v4967 = vunpack.c.l.b16 %v4928
    %v4968 = vunpack.c.l.b16 %v4929
    %v4969 = vunpack.c.l.b16 %v4930
    %v4970 = vpack.c.b16 %v4955, %v4954
    %v4971 = vpack.c.b16 %v4957, %v4956
    %v4972 = vpack.c.b16 %v4959, %v4958
    %v4973 = vpack.c.b16 %v4961, %v4960
    %v4974 = vpack.c.b16 %v4963, %v4962
    %v4975 = vpack.c.b16 %v4965, %v4964
    %v4976 = vpack.c.b16 %v4967, %v4966
    %v4977 = vpack.c.b16 %v4969, %v4968
    %4986 = vmatprep.subr.bf16.mxu0 0
    %4987 = vmatpush1.bf16.msra.mxu0 %v4977
    %4988 = vmatprep.subr.bf16.mxu0 0
    %4989 = vmatpush1.bf16.msra.mxu0 %v4976
    %4990 = vmatprep.subr.bf16.mxu0 0
    %4991 = vmatpush1.bf16.msra.mxu0 %v4975
    %4992 = vmatprep.subr.bf16.mxu0 0
    %4993 = vmatpush1.bf16.msra.mxu0 %v4974
    %4994 = vmatprep.subr.bf16.mxu0 0
    %4995 = vmatpush1.bf16.msra.mxu0 %v4973
    %4996 = vmatprep.subr.bf16.mxu0 0
    %4997 = vmatpush1.bf16.msra.mxu0 %v4972
    %4998 = vmatprep.subr.bf16.mxu0 0
    %4999 = vmatpush1.bf16.msra.mxu0 %v4971
    %5000 = vmatprep.subr.bf16.mxu0 0
    %5001 = vmatpush1.bf16.msra.mxu0 %v4970
    %5002 = vmatprep.subr.bf16.mxu0 0
    %5003 = vmatpush2.bf16.msra.mxu0 0
    %5004 = vmatprep.subr.bf16.mxu0 0
    %5005 = vmatpush2.bf16.msra.mxu0 0
    %5006 = vmatprep.subr.bf16.mxu0 0
    %5007 = vmatpush2.bf16.msra.mxu0 0
    %5008 = vmatprep.subr.bf16.mxu0 0
    %5009 = vmatpush2.bf16.msra.mxu0 0
    %5010 = vmatprep.subr.bf16.mxu0 0
    %5011 = vmatpush2.bf16.msra.mxu0 0
    %5012 = vmatprep.subr.bf16.mxu0 0
    %5013 = vmatpush2.bf16.msra.mxu0 0
    %5014 = vmatprep.subr.bf16.mxu0 0
    %5015 = vmatpush2.bf16.msra.mxu0 0
    %5016 = vmatprep.subr.bf16.mxu0 0
    %5017 = vmatpush2.bf16.msra.mxu0 0
    %5018 = vmatprep.mubr.bf16.mxu0 0
    %5019 = vmatmul.mubr.bf16.gmra.mxu0 %v4875
    %v5020 = vpop.f32.mrf.mxu0
    %v5021 = vadd.f32 %v4936, %v5020
    %v5022 = vpop.f32.mrf.mxu0
    %v5023 = vpop.f32.mrf.mxu0
    %v5024 = vadd.f32 %v4936, %v5023
    %v5025 = vpop.f32.mrf.mxu0
    %5026 = vmatprep.mubr.bf16.mxu0 0
    %5027 = vmatmul.mubr.bf16.gmra.mxu0 %v4876
    %v5028 = vpop.f32.mrf.mxu0
    %v5029 = vadd.f32 %v4936, %v5028
    %v5030 = vpop.f32.mrf.mxu0
    %v5031 = vpop.f32.mrf.mxu0
    %v5032 = vadd.f32 %v4936, %v5031
    %v5033 = vpop.f32.mrf.mxu0
    %5034 = vmatprep.mubr.bf16.mxu0 0
    %5035 = vmatmul.mubr.bf16.gmra.mxu0 %v4877
    %v5036 = vpop.f32.mrf.mxu0
    %v5037 = vadd.f32 %v4936, %v5036
    %v5038 = vpop.f32.mrf.mxu0
    %v5039 = vpop.f32.mrf.mxu0
    %v5040 = vadd.f32 %v4936, %v5039
    %v5041 = vpop.f32.mrf.mxu0
    %5042 = vmatprep.mubr.bf16.mxu0 0
    %5043 = vmatmul.mubr.bf16.gmra.mxu0 %v4878
    %v5044 = vpop.f32.mrf.mxu0
    %v5045 = vadd.f32 %v4936, %v5044
    %v5046 = vpop.f32.mrf.mxu0
    %v5047 = vpop.f32.mrf.mxu0
    %v5048 = vadd.f32 %v4936, %v5047
    %v5049 = vpop.f32.mrf.mxu0
    %5050 = vmatprep.mubr.bf16.mxu0 0
    %5051 = vmatmul.mubr.bf16.gmra.mxu0 %v4879
    %v5052 = vpop.f32.mrf.mxu0
    %v5053 = vadd.f32 %v4936, %v5052
    %v5054 = vpop.f32.mrf.mxu0
    %v5055 = vpop.f32.mrf.mxu0
    %v5056 = vadd.f32 %v4936, %v5055
    %v5057 = vpop.f32.mrf.mxu0
    %5058 = vmatprep.mubr.bf16.mxu0 0
    %5059 = vmatmul.mubr.bf16.gmra.mxu0 %v4880
    %v5060 = vpop.f32.mrf.mxu0
    %v5061 = vadd.f32 %v4936, %v5060
    %v5062 = vpop.f32.mrf.mxu0
    %v5063 = vpop.f32.mrf.mxu0
    %v5064 = vadd.f32 %v4936, %v5063
    %v5065 = vpop.f32.mrf.mxu0
    %5066 = vmatprep.mubr.bf16.mxu0 0
    %5067 = vmatmul.mubr.bf16.gmra.mxu0 %v4881
    %v5068 = vpop.f32.mrf.mxu0
    %v5069 = vadd.f32 %v4936, %v5068
    %v5070 = vpop.f32.mrf.mxu0
    %v5071 = vpop.f32.mrf.mxu0
    %v5072 = vadd.f32 %v4936, %v5071
    %v5073 = vpop.f32.mrf.mxu0
    %5074 = vmatprep.mubr.bf16.mxu0 0
    %5075 = vmatmul.mubr.bf16.gmra.mxu0 %v4882
    %v5076 = vpop.f32.mrf.mxu0
    %v5077 = vadd.f32 %v4936, %v5076
    %v5078 = vpop.f32.mrf.mxu0
    %v5079 = vpop.f32.mrf.mxu0
    %v5080 = vadd.f32 %v4936, %v5079
    %v5081 = vpop.f32.mrf.mxu0
    %5082 = vmatprep.mubr.bf16.mxu0 0
    %5083 = vmatmul.mubr.bf16.gmra.mxu0 %v4883
    %v5084 = vpop.f32.mrf.mxu0
    %v5085 = vadd.f32 %v4936, %v5084
    %v5086 = vpop.f32.mrf.mxu0
    %v5087 = vpop.f32.mrf.mxu0
    %v5088 = vadd.f32 %v4936, %v5087
    %v5089 = vpop.f32.mrf.mxu0
    %5090 = vmatprep.mubr.bf16.mxu0 0
    %5091 = vmatmul.mubr.bf16.gmra.mxu0 %v4884
    %v5092 = vpop.f32.mrf.mxu0
    %v5093 = vadd.f32 %v4936, %v5092
    %v5094 = vpop.f32.mrf.mxu0
    %v5095 = vpop.f32.mrf.mxu0
    %v5096 = vadd.f32 %v4936, %v5095
    %v5097 = vpop.f32.mrf.mxu0
    %5098 = vmatprep.mubr.bf16.mxu0 0
    %5099 = vmatmul.mubr.bf16.gmra.mxu0 %v4885
    %v5100 = vpop.f32.mrf.mxu0
    %v5101 = vadd.f32 %v4936, %v5100
    %v5102 = vpop.f32.mrf.mxu0
    %v5103 = vpop.f32.mrf.mxu0
    %v5104 = vadd.f32 %v4936, %v5103
    %v5105 = vpop.f32.mrf.mxu0
    %5106 = vmatprep.mubr.bf16.mxu0 0
    %5107 = vmatmul.mubr.bf16.gmra.mxu0 %v4886
    %v5108 = vpop.f32.mrf.mxu0
    %v5109 = vadd.f32 %v4936, %v5108
    %v5110 = vpop.f32.mrf.mxu0
    %v5111 = vpop.f32.mrf.mxu0
    %v5112 = vadd.f32 %v4936, %v5111
    %v5113 = vpop.f32.mrf.mxu0
    %5114 = vmatprep.mubr.bf16.mxu0 0
    %5115 = vmatmul.mubr.bf16.gmra.mxu0 %v4887
    %v5116 = vpop.f32.mrf.mxu0
    %v5117 = vadd.f32 %v4936, %v5116
    %v5118 = vpop.f32.mrf.mxu0
    %v5119 = vpop.f32.mrf.mxu0
    %v5120 = vadd.f32 %v4936, %v5119
    %v5121 = vpop.f32.mrf.mxu0
    %5122 = vmatprep.mubr.bf16.mxu0 0
    %5123 = vmatmul.mubr.bf16.gmra.mxu0 %v4888
    %v5124 = vpop.f32.mrf.mxu0
    %v5125 = vadd.f32 %v4936, %v5124
    %v5126 = vpop.f32.mrf.mxu0
    %v5127 = vpop.f32.mrf.mxu0
    %v5128 = vadd.f32 %v4936, %v5127
    %v5129 = vpop.f32.mrf.mxu0
    %5130 = vmatprep.mubr.bf16.mxu0 0
    %5131 = vmatmul.mubr.bf16.gmra.mxu0 %v4889
    %v5132 = vpop.f32.mrf.mxu0
    %v5133 = vadd.f32 %v4936, %v5132
    %v5134 = vpop.f32.mrf.mxu0
    %v5135 = vpop.f32.mrf.mxu0
    %v5136 = vadd.f32 %v4936, %v5135
    %v5137 = vpop.f32.mrf.mxu0
    %5138 = vmatprep.mubr.bf16.mxu0 0
    %5139 = vmatmul.mubr.bf16.gmra.mxu0 %v4890
    %v5140 = vpop.f32.mrf.mxu0
    %v5141 = vadd.f32 %v4936, %v5140
    %v5142 = vpop.f32.mrf.mxu0
    %v5143 = vpop.f32.mrf.mxu0
    %v5144 = vadd.f32 %v4936, %v5143
    %v5145 = vpop.f32.mrf.mxu0
    %5146 = vmatprep.mubr.bf16.mxu0 0
    %5147 = vmatmul.mubr.bf16.gmra.mxu0 %v4891
    %v5148 = vpop.f32.mrf.mxu0
    %v5149 = vadd.f32 %v4936, %v5148
    %v5150 = vpop.f32.mrf.mxu0
    %v5151 = vpop.f32.mrf.mxu0
    %v5152 = vadd.f32 %v4936, %v5151
    %v5153 = vpop.f32.mrf.mxu0
    %5154 = vmatprep.mubr.bf16.mxu0 0
    %5155 = vmatmul.mubr.bf16.gmra.mxu0 %v4892
    %v5156 = vpop.f32.mrf.mxu0
    %v5157 = vadd.f32 %v4936, %v5156
    %v5158 = vpop.f32.mrf.mxu0
    %v5159 = vpop.f32.mrf.mxu0
    %v5160 = vadd.f32 %v4936, %v5159
    %v5161 = vpop.f32.mrf.mxu0
    %5162 = vmatprep.mubr.bf16.mxu0 0
    %5163 = vmatmul.mubr.bf16.gmra.mxu0 %v4893
    %v5164 = vpop.f32.mrf.mxu0
    %v5165 = vadd.f32 %v4936, %v5164
    %v5166 = vpop.f32.mrf.mxu0
    %v5167 = vpop.f32.mrf.mxu0
    %v5168 = vadd.f32 %v4936, %v5167
    %v5169 = vpop.f32.mrf.mxu0
    %5170 = vmatprep.mubr.bf16.mxu0 0
    %5171 = vmatmul.mubr.bf16.gmra.mxu0 %v4894
    %v5172 = vpop.f32.mrf.mxu0
    %v5173 = vadd.f32 %v4936, %v5172
    %v5174 = vpop.f32.mrf.mxu0
    %v5175 = vpop.f32.mrf.mxu0
    %v5176 = vadd.f32 %v4936, %v5175
    %v5177 = vpop.f32.mrf.mxu0
    %5178 = vmatprep.mubr.bf16.mxu0 0
    %5179 = vmatmul.mubr.bf16.gmra.mxu0 %v4895
    %v5180 = vpop.f32.mrf.mxu0
    %v5181 = vadd.f32 %v4936, %v5180
    %v5182 = vpop.f32.mrf.mxu0
    %v5183 = vpop.f32.mrf.mxu0
    %v5184 = vadd.f32 %v4936, %v5183
    %v5185 = vpop.f32.mrf.mxu0
    %5186 = vmatprep.mubr.bf16.mxu0 0
    %5187 = vmatmul.mubr.bf16.gmra.mxu0 %v4896
    %v5188 = vpop.f32.mrf.mxu0
    %v5189 = vadd.f32 %v4936, %v5188
    %v5190 = vpop.f32.mrf.mxu0
    %v5191 = vpop.f32.mrf.mxu0
    %v5192 = vadd.f32 %v4936, %v5191
    %v5193 = vpop.f32.mrf.mxu0
    %5194 = vmatprep.mubr.bf16.mxu0 0
    %5195 = vmatmul.mubr.bf16.gmra.mxu0 %v4897
    %v5196 = vpop.f32.mrf.mxu0
    %v5197 = vadd.f32 %v4936, %v5196
    %v5198 = vpop.f32.mrf.mxu0
    %v5199 = vpop.f32.mrf.mxu0
    %v5200 = vadd.f32 %v4936, %v5199
    %v5201 = vpop.f32.mrf.mxu0
    %5202 = vmatprep.mubr.bf16.mxu0 0
    %5203 = vmatmul.mubr.bf16.gmra.mxu0 %v4898
    %v5204 = vpop.f32.mrf.mxu0
    %v5205 = vadd.f32 %v4936, %v5204
    %v5206 = vpop.f32.mrf.mxu0
    %v5207 = vpop.f32.mrf.mxu0
    %v5208 = vadd.f32 %v4936, %v5207
    %v5209 = vpop.f32.mrf.mxu0
    %5210 = vmatprep.mubr.bf16.mxu0 0
    %5211 = vmatmul.mubr.bf16.gmra.mxu0 %v4899
    %v5212 = vpop.f32.mrf.mxu0
    %v5213 = vadd.f32 %v4936, %v5212
    %v5214 = vpop.f32.mrf.mxu0
    %v5215 = vpop.f32.mrf.mxu0
    %v5216 = vadd.f32 %v4936, %v5215
    %v5217 = vpop.f32.mrf.mxu0
    %5218 = vmatprep.mubr.bf16.mxu0 0
    %5219 = vmatmul.mubr.bf16.gmra.mxu0 %v4900
    %v5220 = vpop.f32.mrf.mxu0
    %v5221 = vadd.f32 %v4936, %v5220
    %v5222 = vpop.f32.mrf.mxu0
    %v5223 = vpop.f32.mrf.mxu0
    %v5224 = vadd.f32 %v4936, %v5223
    %v5225 = vpop.f32.mrf.mxu0
    %5226 = vmatprep.mubr.bf16.mxu0 0
    %5227 = vmatmul.mubr.bf16.gmra.mxu0 %v4901
    %v5228 = vpop.f32.mrf.mxu0
    %v5229 = vadd.f32 %v4936, %v5228
    %v5230 = vpop.f32.mrf.mxu0
    %v5231 = vpop.f32.mrf.mxu0
    %v5232 = vadd.f32 %v4936, %v5231
    %v5233 = vpop.f32.mrf.mxu0
    %5234 = vmatprep.mubr.bf16.mxu0 0
    %5235 = vmatmul.mubr.bf16.gmra.mxu0 %v4902
    %v5236 = vpop.f32.mrf.mxu0
    %v5237 = vadd.f32 %v4936, %v5236
    %v5238 = vpop.f32.mrf.mxu0
    %v5239 = vpop.f32.mrf.mxu0
    %v5240 = vadd.f32 %v4936, %v5239
    %v5241 = vpop.f32.mrf.mxu0
    %5242 = vmatprep.mubr.bf16.mxu0 0
    %5243 = vmatmul.mubr.bf16.gmra.mxu0 %v4903
    %v5244 = vpop.f32.mrf.mxu0
    %v5245 = vadd.f32 %v4936, %v5244
    %v5246 = vpop.f32.mrf.mxu0
    %v5247 = vpop.f32.mrf.mxu0
    %v5248 = vadd.f32 %v4936, %v5247
    %v5249 = vpop.f32.mrf.mxu0
    %5250 = vmatprep.mubr.bf16.mxu0 0
    %5251 = vmatmul.mubr.bf16.gmra.mxu0 %v4904
    %v5252 = vpop.f32.mrf.mxu0
    %v5253 = vadd.f32 %v4936, %v5252
    %v5254 = vpop.f32.mrf.mxu0
    %v5255 = vpop.f32.mrf.mxu0
    %v5256 = vadd.f32 %v4936, %v5255
    %v5257 = vpop.f32.mrf.mxu0
    %5258 = vmatprep.mubr.bf16.mxu0 0
    %5259 = vmatmul.mubr.bf16.gmra.mxu0 %v4905
    %v5260 = vpop.f32.mrf.mxu0
    %v5261 = vadd.f32 %v4936, %v5260
    %v5262 = vpop.f32.mrf.mxu0
    %v5263 = vpop.f32.mrf.mxu0
    %v5264 = vadd.f32 %v4936, %v5263
    %v5265 = vpop.f32.mrf.mxu0
    %5266 = vmatprep.mubr.bf16.mxu0 0
    %5267 = vmatmul.mubr.bf16.gmra.mxu0 %v4906
    %v5268 = vpop.f32.mrf.mxu0
    %v5269 = vadd.f32 %v4936, %v5268
    %v5270 = vpop.f32.mrf.mxu0
    %v5271 = vpop.f32.mrf.mxu0
    %v5272 = vadd.f32 %v4936, %v5271
    %v5273 = vpop.f32.mrf.mxu0
    %5274 = vmatprep.mubr.bf16.mxu0 0
    %5275 = vmatmul.mubr.bf16.gmra.mxu0 %v4907
    %v5276 = vpop.f32.mrf.mxu0
    %v5277 = vadd.f32 %v4936, %v5276
    %v5278 = vpop.f32.mrf.mxu0
    %v5279 = vpop.f32.mrf.mxu0
    %v5280 = vadd.f32 %v4936, %v5279
    %v5281 = vpop.f32.mrf.mxu0
    %5282 = vmatprep.mubr.bf16.mxu0 0
    %5283 = vmatmul.mubr.bf16.gmra.mxu0 %v4908
    %v5284 = vpop.f32.mrf.mxu0
    %v5285 = vadd.f32 %v4936, %v5284
    %v5286 = vpop.f32.mrf.mxu0
    %v5287 = vpop.f32.mrf.mxu0
    %v5288 = vadd.f32 %v4936, %v5287
    %v5289 = vpop.f32.mrf.mxu0
    %5290 = vmatprep.mubr.bf16.mxu0 0
    %5291 = vmatmul.mubr.bf16.gmra.mxu0 %v4909
    %v5292 = vpop.f32.mrf.mxu0
    %v5293 = vadd.f32 %v4936, %v5292
    %v5294 = vpop.f32.mrf.mxu0
    %v5295 = vpop.f32.mrf.mxu0
    %v5296 = vadd.f32 %v4936, %v5295
    %v5297 = vpop.f32.mrf.mxu0
    %5298 = vmatprep.mubr.bf16.mxu0 0
    %5299 = vmatmul.mubr.bf16.gmra.mxu0 %v4910
    %v5300 = vpop.f32.mrf.mxu0
    %v5301 = vadd.f32 %v4936, %v5300
    %v5302 = vpop.f32.mrf.mxu0
    %v5303 = vpop.f32.mrf.mxu0
    %v5304 = vadd.f32 %v4936, %v5303
    %v5305 = vpop.f32.mrf.mxu0
    %5306 = vmatprep.mubr.bf16.mxu0 0
    %5307 = vmatmul.mubr.bf16.gmra.mxu0 %v4911
    %v5308 = vpop.f32.mrf.mxu0
    %v5309 = vadd.f32 %v4936, %v5308
    %v5310 = vpop.f32.mrf.mxu0
    %v5311 = vpop.f32.mrf.mxu0
    %v5312 = vadd.f32 %v4936, %v5311
    %v5313 = vpop.f32.mrf.mxu0
    %5314 = vmatprep.mubr.bf16.mxu0 0
    %5315 = vmatmul.mubr.bf16.gmra.mxu0 %v4912
    %v5316 = vpop.f32.mrf.mxu0
    %v5317 = vadd.f32 %v4936, %v5316
    %v5318 = vpop.f32.mrf.mxu0
    %v5319 = vpop.f32.mrf.mxu0
    %v5320 = vadd.f32 %v4936, %v5319
    %v5321 = vpop.f32.mrf.mxu0
    %5322 = vmatprep.mubr.bf16.mxu0 0
    %5323 = vmatmul.mubr.bf16.gmra.mxu0 %v4913
    %v5324 = vpop.f32.mrf.mxu0
    %v5325 = vadd.f32 %v4936, %v5324
    %v5326 = vpop.f32.mrf.mxu0
    %v5327 = vpop.f32.mrf.mxu0
    %v5328 = vadd.f32 %v4936, %v5327
    %v5329 = vpop.f32.mrf.mxu0
    %5330 = vmatprep.mubr.bf16.mxu0 0
    %5331 = vmatmul.mubr.bf16.gmra.mxu0 %v4914
    %v5332 = vpop.f32.mrf.mxu0
    %v5333 = vadd.f32 %v4936, %v5332
    %v5334 = vpop.f32.mrf.mxu0
    %v5335 = vpop.f32.mrf.mxu0
    %v5336 = vadd.f32 %v4936, %v5335
    %v5337 = vpop.f32.mrf.mxu0
    %5338 = vdwg.mxu0
    %5339 = vst [vmem:[#allocation11] sm:$0xff] %v5021
    %5340 = vst [vmem:[#allocation11 + $0x8] sm:$0xff] %v5024
    %5341 = vst [vmem:[#allocation11 + $0x10] sm:$0xff] %v5029
    %5342 = vst [vmem:[#allocation11 + $0x18] sm:$0xff] %v5032
    %5343 = vst [vmem:[#allocation11 + $0x20] sm:$0xff] %v5037
    %5344 = vst [vmem:[#allocation11 + $0x28] sm:$0xff] %v5040
    %5345 = vst [vmem:[#allocation11 + $0x30] sm:$0xff] %v5045
    %5346 = vst [vmem:[#allocation11 + $0x38] sm:$0xff] %v5048
    %5347 = vst [vmem:[#allocation11 + $0x40] sm:$0xff] %v5053
    %5348 = vst [vmem:[#allocation11 + $0x48] sm:$0xff] %v5056
    %5349 = vst [vmem:[#allocation11 + $0x50] sm:$0xff] %v5061
    %5350 = vst [vmem:[#allocation11 + $0x58] sm:$0xff] %v5064
    %5351 = vst [vmem:[#allocation11 + $0x60] sm:$0xff] %v5069
    %5352 = vst [vmem:[#allocation11 + $0x68] sm:$0xff] %v5072
    %5353 = vst [vmem:[#allocation11 + $0x70] sm:$0xff] %v5077
    %5354 = vst [vmem:[#allocation11 + $0x78] sm:$0xff] %v5080
    %5355 = vst [vmem:[#allocation11 + $0x80] sm:$0xff] %v5085
    %5356 = vst [vmem:[#allocation11 + $0x88] sm:$0xff] %v5088
    %5357 = vst [vmem:[#allocation11 + $0x90] sm:$0xff] %v5093
    %5358 = vst [vmem:[#allocation11 + $0x98] sm:$0xff] %v5096
    %5359 = vst [vmem:[#allocation11 + $0xa0] sm:$0xff] %v5101
    %5360 = vst [vmem:[#allocation11 + $0xa8] sm:$0xff] %v5104
    %5361 = vst [vmem:[#allocation11 + $0xb0] sm:$0xff] %v5109
    %5362 = vst [vmem:[#allocation11 + $0xb8] sm:$0xff] %v5112
    %5363 = vst [vmem:[#allocation11 + $0xc0] sm:$0xff] %v5117
    %5364 = vst [vmem:[#allocation11 + $0xc8] sm:$0xff] %v5120
    %5365 = vst [vmem:[#allocation11 + $0xd0] sm:$0xff] %v5125
    %5366 = vst [vmem:[#allocation11 + $0xd8] sm:$0xff] %v5128
    %5367 = vst [vmem:[#allocation11 + $0xe0] sm:$0xff] %v5133
    %5368 = vst [vmem:[#allocation11 + $0xe8] sm:$0xff] %v5136
    %5369 = vst [vmem:[#allocation11 + $0xf0] sm:$0xff] %v5141
    %5370 = vst [vmem:[#allocation11 + $0xf8] sm:$0xff] %v5144
    %5371 = vst [vmem:[#allocation11 + $0x100] sm:$0xff] %v5149
    %5372 = vst [vmem:[#allocation11 + $0x108] sm:$0xff] %v5152
    %5373 = vst [vmem:[#allocation11 + $0x110] sm:$0xff] %v5157
    %5374 = vst [vmem:[#allocation11 + $0x118] sm:$0xff] %v5160
    %5375 = vst [vmem:[#allocation11 + $0x120] sm:$0xff] %v5165
    %5376 = vst [vmem:[#allocation11 + $0x128] sm:$0xff] %v5168
    %5377 = vst [vmem:[#allocation11 + $0x130] sm:$0xff] %v5173
    %5378 = vst [vmem:[#allocation11 + $0x138] sm:$0xff] %v5176
    %5379 = vst [vmem:[#allocation11 + $0x140] sm:$0xff] %v5181
    %5380 = vst [vmem:[#allocation11 + $0x148] sm:$0xff] %v5184
    %5381 = vst [vmem:[#allocation11 + $0x150] sm:$0xff] %v5189
    %5382 = vst [vmem:[#allocation11 + $0x158] sm:$0xff] %v5192
    %5383 = vst [vmem:[#allocation11 + $0x160] sm:$0xff] %v5197
    %5384 = vst [vmem:[#allocation11 + $0x168] sm:$0xff] %v5200
    %5385 = vst [vmem:[#allocation11 + $0x170] sm:$0xff] %v5205
    %5386 = vst [vmem:[#allocation11 + $0x178] sm:$0xff] %v5208
    %5387 = vst [vmem:[#allocation11 + $0x180] sm:$0xff] %v5213
    %5388 = vst [vmem:[#allocation11 + $0x188] sm:$0xff] %v5216
    %5389 = vst [vmem:[#allocation11 + $0x190] sm:$0xff] %v5221
    %5390 = vst [vmem:[#allocation11 + $0x198] sm:$0xff] %v5224
    %5391 = vst [vmem:[#allocation11 + $0x1a0] sm:$0xff] %v5229
    %5392 = vst [vmem:[#allocation11 + $0x1a8] sm:$0xff] %v5232
    %5393 = vst [vmem:[#allocation11 + $0x1b0] sm:$0xff] %v5237
    %5394 = vst [vmem:[#allocation11 + $0x1b8] sm:$0xff] %v5240
    %5395 = vst [vmem:[#allocation11 + $0x1c0] sm:$0xff] %v5245
    %5396 = vst [vmem:[#allocation11 + $0x1c8] sm:$0xff] %v5248
    %5397 = vst [vmem:[#allocation11 + $0x1d0] sm:$0xff] %v5253
    %5398 = vst [vmem:[#allocation11 + $0x1d8] sm:$0xff] %v5256
    %5399 = vst [vmem:[#allocation11 + $0x1e0] sm:$0xff] %v5261
    %5400 = vst [vmem:[#allocation11 + $0x1e8] sm:$0xff] %v5264
    %5401 = vst [vmem:[#allocation11 + $0x1f0] sm:$0xff] %v5269
    %5402 = vst [vmem:[#allocation11 + $0x1f8] sm:$0xff] %v5272
    %5403 = vst [vmem:[#allocation11 + $0x200] sm:$0xff] %v5277
    %5404 = vst [vmem:[#allocation11 + $0x208] sm:$0xff] %v5280
    %5405 = vst [vmem:[#allocation11 + $0x210] sm:$0xff] %v5285
    %5406 = vst [vmem:[#allocation11 + $0x218] sm:$0xff] %v5288
    %5407 = vst [vmem:[#allocation11 + $0x220] sm:$0xff] %v5293
    %5408 = vst [vmem:[#allocation11 + $0x228] sm:$0xff] %v5296
    %5409 = vst [vmem:[#allocation11 + $0x230] sm:$0xff] %v5301
    %5410 = vst [vmem:[#allocation11 + $0x238] sm:$0xff] %v5304
    %5411 = vst [vmem:[#allocation11 + $0x240] sm:$0xff] %v5309
    %5412 = vst [vmem:[#allocation11 + $0x248] sm:$0xff] %v5312
    %5413 = vst [vmem:[#allocation11 + $0x250] sm:$0xff] %v5317
    %5414 = vst [vmem:[#allocation11 + $0x258] sm:$0xff] %v5320
    %5415 = vst [vmem:[#allocation11 + $0x260] sm:$0xff] %v5325
    %5416 = vst [vmem:[#allocation11 + $0x268] sm:$0xff] %v5328
    %5417 = vst [vmem:[#allocation11 + $0x270] sm:$0xff] %v5333
    %5418 = vst [vmem:[#allocation11 + $0x278] sm:$0xff] %v5336
    // Predicated region
    $region46: #{tpu_custom_call.1} parent=1 // pred_check
      _
    $region47: #{tpu_custom_call.1} parent=1 // pred_check_branch
      %5420 = sbr.rel (0) target = $region49
    $region48: #{tpu_custom_call.1} parent=1 // pred_region
      %s5422 = ssub.s32 5120, 5120
      %5423 = vsyncadd [#allocation4], %s5422
      %s5424 = sshll.u32 [#allocation10], 4
      %s5425 = int_to_ptr.vmem [resolvable:$true] %s5424
      %5430 = dma.vmem_to_hbm [thread:$0]  %s5425, 5120, %s7, [#allocation4], 64, 64, 4
    $region49: #{tpu_custom_call.1} parent=1 // pred_fallthru
      _
    // Predicated region
    $region50: #{tpu_custom_call.1} parent=1 // pred_check
      _
    $region51: #{tpu_custom_call.1} parent=1 // pred_check_branch
      %5432 = sbr.rel (0) target = $region53
    $region52: #{tpu_custom_call.1} parent=1 // pred_region
      %s5434 = ssub.s32 10240, 10240
      %5435 = vsyncadd [#allocation12], %s5434
      %s5436 = sshll.u32 [#allocation11], 4
      %s5437 = int_to_ptr.vmem [resolvable:$true] %s5436
      %5442 = dma.vmem_to_hbm [thread:$0]  %s5437, 10240, %s8, [#allocation12], 128, 128, 8
    $region53: #{tpu_custom_call.1} parent=1 // pred_fallthru
      _
    // Predicated region
    $region54: #{tpu_custom_call.1} parent=1 // pred_check
      _
    $region55: #{tpu_custom_call.1} parent=1 // pred_check_branch
      %5444 = sbr.rel (0) target = $region57
    $region56: #{tpu_custom_call.1} parent=1 // pred_region
      %5445 = dma.done [#allocation4], 5120
    $region57: #{tpu_custom_call.1} parent=1 // pred_fallthru
      _
    // Predicated region
    $region58: #{tpu_custom_call.1} parent=1 // pred_check
      _
    $region59: #{tpu_custom_call.1} parent=1 // pred_check_branch
      %5447 = sbr.rel (0) target = $region61
    $region60: #{tpu_custom_call.1} parent=1 // pred_region
      %5448 = dma.done [#allocation12], 10240
    $region61: #{tpu_custom_call.1} parent=1 // pred_fallthru
      _
    %5449 = vsyncpa [#allocation3], 1
    %5450 = vsyncpa [#allocation6], 1
    %5451 = vsyncpa [#allocation9], 1
    %5452 = vsyncpa [#allocation4], 1
    %5453 = vsyncpa [#allocation12], 1

</llo_original>
